<compile_context>
chip_gen: v5e
topology: v5e:2x2
jax: 0.10.0
libtpu: 0.0.40
codegen_flags: <defaults>
</compile_context>

<pallas_src>
import functools

import jax
import jax.numpy as jnp
from jax import lax
from jax.experimental import pallas as pl
from jax.experimental.pallas import tpu as pltpu

_EPS = 1e-5


# ----------------------------------------------------------------------------
# Pallas kernel: the whole ResBlock3 forward for one image.
# ----------------------------------------------------------------------------
def _resblock3_kernel(x_ref, *refs, has_downsample, W, P, HALO):
    f32 = jnp.float32
    bf16 = jnp.bfloat16
    dot = functools.partial(jnp.dot, preferred_element_type=f32)

    if has_downsample:
        (wds_ref, bds_ref, w1r_ref, b1r_ref, w2_ref, b2_ref, w3_ref, b3_ref,
         cmask_ref, o_ref, hpad_ref) = refs
    else:
        (w1r_ref, b1r_ref, w2_ref, b2_ref, w3_ref, b3_ref,
         cmask_ref, o_ref, hpad_ref) = refs

    cm_p = hpad_ref.shape[1]                       # lane-padded mid channels

    xb = x_ref[0]                                  # (P, Cin) bf16 (cast in glue)

    if has_downsample:
        # 1x1 stride-2 conv + BN (spatial subsample applied in glue), no relu.
        xb = (dot(xb, wds_ref[...]) + bds_ref[...]).astype(bf16)        # (P, Cm_p)

    # Fused conv_1 + res_conv 1x1 convs (folded BN): one MXU pass, N = Cm_p + Co_p.
    y = dot(xb, w1r_ref[...]) + b1r_ref[...]       # (P, Cm_p + Co_p) f32
    h = jnp.maximum(y[:, :cm_p], 0.0)              # conv_1 + relu       (P, Cm_p)
    res = y[:, cm_p:]                              # residual branch     (P, Co_p), no relu

    # conv_2: 3x3 conv, padding=1, via a bf16 row-halo scratch.
    # h lives at rows [HALO, HALO + P); HALO >= W + 1 zero rows above/below cover the
    # dy = +-1 taps at the top/bottom image rows.  Halo re-zeroed every step (see header).
    hpad_ref[pl.ds(0, HALO), :] = jnp.zeros((HALO, cm_p), bf16)
    hpad_ref[pl.ds(HALO + P, HALO), :] = jnp.zeros((HALO, cm_p), bf16)
    hpad_ref[pl.ds(HALO, P), :] = h.astype(bf16)

    mask_l = cmask_ref[0]                          # (P, 1) bf16: dx = -1 stays in-row
    mask_r = cmask_ref[1]                          # (P, 1) bf16: dx = +1 stays in-row

    taps = ((-1, -1), (-1, 0), (-1, 1),
            (0, -1), (0, 0), (0, 1),
            (1, -1), (1, 0), (1, 1))
    cols = []
    for dy, dx in taps:
        start = HALO + dy * W + dx                 # static sublane offset into the scratch
        g = hpad_ref[pl.ds(start, P), :]           # (P, Cm_p) bf16
        if dx == -1:
            g = g * mask_l
        elif dx == 1:
            g = g * mask_r
        cols.append(g)
    lhs = jnp.concatenate(cols, axis=-1)           # (P, 9 * Cm_p) bf16, lane-aligned slabs

    # Single big-K matmul: all 9 taps accumulate inside the MXU (no VMEM acc round trips).
    h2 = jnp.maximum(dot(lhs, w2_ref[...]) + b2_ref[...], 0.0)          # (P, Cm_p) f32

    # conv_3: 1x1 conv + BN + relu
    h3 = jnp.maximum(dot(h2.astype(bf16), w3_ref[...]) + b3_ref[...], 0.0)   # (P, Co_p)

    # residual add + final relu; lane-dense bf16 output store.
    o_ref[0] = jnp.maximum(h3 + res, 0.0).astype(o_ref.dtype)


# ----------------------------------------------------------------------------
# Glue: parameter init, BN folding, padding, wrapper.
# ----------------------------------------------------------------------------
def init_conv_bn(key, cin, cout, k):
    kw, kg, kb, km, kv = jax.random.split(key, 5)
    return dict(
        w=0.2 * jax.random.normal(kw, (k, k, cin, cout), jnp.float32),   # HWIO
        gamma=jax.random.uniform(kg, (cout,), jnp.float32, 0.5, 1.5),
        beta=0.1 * jax.random.normal(kb, (cout,), jnp.float32),
        mean=0.1 * jax.random.normal(km, (cout,), jnp.float32),
        var=jax.random.uniform(kv, (cout,), jnp.float32, 0.5, 1.5),
    )


def init_resblock3(key, cin, cmid, cout, downsample):
    keys = jax.random.split(key, 5)
    params = {}
    if downsample:
        params["downsample"] = init_conv_bn(keys[0], cin, cmid, 1)
        params["conv_1"] = init_conv_bn(keys[1], cmid, cmid, 1)
        params["res_conv"] = init_conv_bn(keys[2], cmid, cout, 1)
    else:
        params["conv_1"] = init_conv_bn(keys[1], cin, cmid, 1)
        params["res_conv"] = init_conv_bn(keys[2], cin, cout, 1)
    params["conv_2"] = init_conv_bn(keys[3], cmid, cmid, 3)
    params["conv_3"] = init_conv_bn(keys[4], cmid, cout, 1)
    return params


def fold_conv_bn(p):
    """Fold inference-mode BatchNorm into the conv weight + a per-channel shift."""
    scale = p["gamma"] / jnp.sqrt(p["var"] + _EPS)
    w = p["w"] * scale                                      # broadcast over out-channel dim
    b = (p["beta"] - p["mean"] * scale).reshape(1, -1)      # (1, cout)
    k = w.shape[0]
    if k == 1:
        return w[0, 0], b                                   # (cin, cout)
    return w.reshape(k * k, w.shape[2], w.shape[3]), b      # (k*k, cin, cout)


def _round_up(x, m):
    return ((x + m - 1) // m) * m


def resblock3_pallas(x_nchw, params, *, downsample=False):
    N, Cin, H, W = x_nchw.shape
    x_nhwc = jnp.transpose(x_nchw, (0, 2, 3, 1))
    if downsample:
        # stride-2 spatial subsampling (fused by XLA with the transpose above); the 1x1
        # conv+BN of the downsample path runs in-kernel.
        x_nhwc = x_nhwc[:, ::2, ::2, :]
        H, W = x_nhwc.shape[1], x_nhwc.shape[2]
    P = H * W
    x = x_nhwc.reshape(N, P, Cin).astype(jnp.bfloat16)      # bf16 input DMA

    # folded (BN-absorbed) parameters
    w1, b1 = fold_conv_bn(params["conv_1"])
    w2, b2 = fold_conv_bn(params["conv_2"])                 # (9, Cmid, Cmid)
    w3, b3 = fold_conv_bn(params["conv_3"])
    wres, bres = fold_conv_bn(params["res_conv"])

    Cmid = w2.shape[-1]
    Cout = w3.shape[1]
    Cm_p = _round_up(Cmid, 128)                             # lane-dense mid channels
    Co_p = _round_up(Cout, 128)                             # lane-dense out channels
    HALO = _round_up(W + 1, 8)                              # zero rows above/below h

    bf16 = jnp.bfloat16

    def pad2(w, rows, cols):
        return jnp.pad(w, ((0, rows - w.shape[0]), (0, cols - w.shape[1])))

    def padb(b, cols):
        return jnp.pad(b, ((0, 0), (0, cols - b.shape[1])))

    if downsample:
        wds, bds = fold_conv_bn(params["downsample"])
        wds = pad2(wds, Cin, Cm_p).astype(bf16)             # (Cin, Cm_p)
        bds = padb(bds, Cm_p)
        cin_inner = Cm_p                                    # conv_1 / res_conv see padded mid
    else:
        cin_inner = Cin

    # Fused conv_1 / res_conv RHS: (cin_inner, Cm_p + Co_p), single MXU pass in-kernel.
    w1r = jnp.concatenate(
        [pad2(w1, cin_inner, Cm_p), pad2(wres, cin_inner, Co_p)], axis=1).astype(bf16)
    b1r = jnp.concatenate([padb(b1, Cm_p), padb(bres, Co_p)], axis=1)

    # conv_2 weights flattened to (9*Cm_p, Cm_p) to match the tap-concat LHS.
    w2 = jnp.pad(w2, ((0, 0), (0, Cm_p - Cmid), (0, Cm_p - Cmid)))
    w2 = w2.reshape(9 * Cm_p, Cm_p).astype(bf16)
    b2 = padb(b2, Cm_p)
    w3 = pad2(w3, Cm_p, Co_p).astype(bf16)
    b3 = padb(b3, Co_p)

    # column-edge validity masks for the dx = -1 / +1 taps (static, tiny, bf16 0/1 exact)
    j = jnp.arange(P, dtype=jnp.int32) % W
    colmask = jnp.stack([(j >= 1), (j <= W - 2)], axis=0).astype(bf16).reshape(2, P, 1)

    kernel = functools.partial(_resblock3_kernel, has_downsample=downsample,
                               W=W, P=P, HALO=HALO)

    def const_spec(a):
        return pl.BlockSpec(a.shape, lambda n, nd=a.ndim: (0,) * nd)

    operands = [x]
    in_specs = [pl.BlockSpec((1, P, Cin), lambda n: (n, 0, 0))]
    if downsample:
        operands += [wds, bds]
        in_specs += [const_spec(wds), const_spec(bds)]
    const_ops = [w1r, b1r, w2, b2, w3, b3, colmask]
    operands += const_ops
    in_specs += [const_spec(a) for a in const_ops]

    # Explicit VMEM budget (default scoped limit: 16 MiB v5e / 32 MiB v6e+), with headroom.
    const_bytes = sum(int(a.size) * a.dtype.itemsize for a in operands[1:])
    est = (
        2 * P * _round_up(Cin, 128) * 2            # x, double-buffered, lane-padded
        + 2 * P * Co_p * 2                          # out, double-buffered
        + (P + 2 * HALO) * Cm_p * 2                 # bf16 row-halo scratch
        + 9 * P * Cm_p * 2                          # conv_2 concat LHS temp
        + 2 * const_bytes                           # constants, double-buffered
        + 6 * P * (Cm_p + Co_p) * 4                 # f32 intermediates headroom
    )
    vmem_limit = int(min(64 << 20, max(2 * est, 32 << 20)))

    out = pl.pallas_call(
        kernel,
        out_shape=jax.ShapeDtypeStruct((N, P, Co_p), jnp.bfloat16),
        grid_spec=pltpu.PrefetchScalarGridSpec(
            num_scalar_prefetch=0,
            grid=(N,),
            in_specs=in_specs,
            out_specs=pl.BlockSpec((1, P, Co_p), lambda n: (n, 0, 0)),
            scratch_shapes=[
                pltpu.VMEM((P + 2 * HALO, Cm_p), jnp.bfloat16),   # row-halo scratch
            ],
        ),
        compiler_params=pltpu.CompilerParams(
            dimension_semantics=("parallel",),
            vmem_limit_bytes=vmem_limit,
        ),
    )(*operands)

    out = out[..., :Cout]            # drop lane padding (XLA fuses with transpose below)
    return jnp.transpose(out.reshape(N, H, W, Cout), (0, 3, 1, 2))


# ----------------------------------------------------------------------------
# Pure-JAX reference (unfolded BN, f32) for verification.
# ----------------------------------------------------------------------------
def _conv_bn_ref(x_nhwc, p, *, stride=1, padding=((0, 0), (0, 0))):
    y = lax.conv_general_dilated(
        x_nhwc, p["w"], (stride, stride), padding,
        dimension_numbers=("NHWC", "HWIO", "NHWC"),
        precision=jax.lax.Precision.HIGHEST)
    inv = p["gamma"] / jnp.sqrt(p["var"] + _EPS)
    return (y - p["mean"]) * inv + p["beta"]


def resblock3_ref(x_nchw, params, *, downsample=False):
    x = jnp.transpose(x_nchw, (0, 2, 3, 1))
    if downsample:
        x = _conv_bn_ref(x, params["downsample"], stride=2)
    res = _conv_bn_ref(x, params["res_conv"])
    h = jax.nn.relu(_conv_bn_ref(x, params["conv_1"]))
    h = jax.nn.relu(_conv_bn_ref(h, params["conv_2"], padding=((1, 1), (1, 1))))
    h = jax.nn.relu(_conv_bn_ref(h, params["conv_3"]))
    return jnp.transpose(jax.nn.relu(h + res), (0, 3, 1, 2))


if __name__ == "__main__":
    key = jax.random.PRNGKey(0)
    kx, kp_a, kp_b = jax.random.split(key, 3)

    N, Cin, H, W = 2, 4, 16, 16
    Cmid, Cout = 8, 4
    x = jax.random.normal(kx, (N, Cin, H, W), jnp.float32)

    for downsample, kp in ((False, kp_a), (True, kp_b)):
        params = init_resblock3(kp, Cin, Cmid, Cout, downsample)
        y = resblock3_pallas(x, params, downsample=downsample)
        y = jax.block_until_ready(y)
        y_ref = resblock3_ref(x, params, downsample=downsample)
        assert y.shape == y_ref.shape, (y.shape, y_ref.shape)
        # bf16 MXU operands + bf16 output (f32 accumulate) vs. f32 HIGHEST reference.
        err = jnp.max(jnp.abs(y.astype(jnp.float32) - y_ref))
        assert jnp.allclose(y.astype(jnp.float32), y_ref, atol=8e-2, rtol=8e-2), (
            f"mismatch (downsample={downsample}): max abs err {err}")

    print("KERNEL_OK")
</pallas_src>

<mosaic_0001>
module attributes {stable_mosaic.version = 11 : i64} {
  func.func @_resblock3_kernel(%arg0: i32, %arg1: memref<1x256x4xbf16, #tpu.memory_space<vmem>>, %arg2: memref<4x256xbf16, #tpu.memory_space<vmem>>, %arg3: memref<1x256xf32, #tpu.memory_space<vmem>>, %arg4: memref<1152x128xbf16, #tpu.memory_space<vmem>>, %arg5: memref<1x128xf32, #tpu.memory_space<vmem>>, %arg6: memref<128x128xbf16, #tpu.memory_space<vmem>>, %arg7: memref<1x128xf32, #tpu.memory_space<vmem>>, %arg8: memref<2x256x1xbf16, #tpu.memory_space<vmem>>, %arg9: memref<1x256x128xbf16, #tpu.memory_space<vmem>>, %arg10: memref<304x128xbf16, #tpu.memory_space<vmem>>) attributes {dimension_semantics = [#tpu.dimension_semantics<parallel>], iteration_bounds = array<i64: 2>, scalar_prefetch = 0 : i64, scratch_operands = 1 : i64, tpu.core_type = #tpu.core_type<tc>, window_params = [{transform_indices = @transform_0, window_bounds = array<i64: 1, 256, 4>}, {pipeline_mode = #tpu.pipeline_mode<synchronous>, transform_indices = @transform_1, window_bounds = array<i64: 4, 256>}, {pipeline_mode = #tpu.pipeline_mode<synchronous>, transform_indices = @transform_2, window_bounds = array<i64: 1, 256>}, {pipeline_mode = #tpu.pipeline_mode<synchronous>, transform_indices = @transform_3, window_bounds = array<i64: 1152, 128>}, {pipeline_mode = #tpu.pipeline_mode<synchronous>, transform_indices = @transform_4, window_bounds = array<i64: 1, 128>}, {pipeline_mode = #tpu.pipeline_mode<synchronous>, transform_indices = @transform_5, window_bounds = array<i64: 128, 128>}, {pipeline_mode = #tpu.pipeline_mode<synchronous>, transform_indices = @transform_6, window_bounds = array<i64: 1, 128>}, {pipeline_mode = #tpu.pipeline_mode<synchronous>, transform_indices = @transform_7, window_bounds = array<i64: 2, 256, 1>}, {transform_indices = @transform_8, window_bounds = array<i64: 1, 256, 128>}]} {
    %c0 = arith.constant 0 : index
    %c0_0 = arith.constant 0 : index
    %c0_1 = arith.constant 0 : index
    %0 = vector.load %arg1[%c0, %c0_0, %c0_1] : memref<1x256x4xbf16, #tpu.memory_space<vmem>>, vector<1x256x4xbf16>
    %1 = vector.shape_cast %0 : vector<1x256x4xbf16> to vector<256x4xbf16>
    %c0_2 = arith.constant 0 : index
    %c0_3 = arith.constant 0 : index
    %2 = vector.load %arg2[%c0_2, %c0_3] : memref<4x256xbf16, #tpu.memory_space<vmem>>, vector<4x256xbf16>
    %cst = arith.constant dense<0.000000e+00> : vector<256x256xf32>
    %3 = tpu.matmul %1, %2, %cst {dimension_numbers = #tpu.dot_dimension_numbers<[1], [0], [0], [1], [0, 0, 1, 1], [], []>} : vector<256x4xbf16>, vector<4x256xbf16>, vector<256x256xf32> -> vector<256x256xf32>
    %c0_4 = arith.constant 0 : index
    %c0_5 = arith.constant 0 : index
    %4 = vector.load %arg3[%c0_4, %c0_5] : memref<1x256xf32, #tpu.memory_space<vmem>>, vector<1x256xf32>
    %5 = vector.broadcast %4 : vector<1x256xf32> to vector<256x256xf32>
    %6 = arith.addf %3, %5 : vector<256x256xf32>
    %7 = vector.extract_strided_slice %6 {offsets = [0, 0], sizes = [256, 128], strides = [1, 1]} : vector<256x256xf32> to vector<256x128xf32>
    %cst_6 = arith.constant 0.000000e+00 : f32
    %8 = vector.broadcast %cst_6 : f32 to vector<256x128xf32>
    %9 = arith.maximumf %7, %8 : vector<256x128xf32>
    %10 = vector.extract_strided_slice %6 {offsets = [0, 128], sizes = [256, 128], strides = [1, 1]} : vector<256x256xf32> to vector<256x128xf32>
    %cst_7 = arith.constant 0.000000e+00 : bf16
    %11 = vector.broadcast %cst_7 : bf16 to vector<24x128xbf16>
    %c0_8 = arith.constant 0 : index
    %c0_9 = arith.constant 0 : index
    %12 = vector.load %arg10[%c0_8, %c0_9] : memref<304x128xbf16, #tpu.memory_space<vmem>>, vector<24x128xbf16>
    tpu.vector_store %arg10[%c0_8, %c0_9], %11 {strides = array<i32>} : memref<304x128xbf16, #tpu.memory_space<vmem>>, vector<24x128xbf16>,
    %cst_10 = arith.constant 0.000000e+00 : bf16
    %13 = vector.broadcast %cst_10 : bf16 to vector<24x128xbf16>
    %c280 = arith.constant 280 : index
    %c0_11 = arith.constant 0 : index
    %14 = vector.load %arg10[%c280, %c0_11] : memref<304x128xbf16, #tpu.memory_space<vmem>>, vector<24x128xbf16>
    tpu.vector_store %arg10[%c280, %c0_11], %13 {strides = array<i32>} : memref<304x128xbf16, #tpu.memory_space<vmem>>, vector<24x128xbf16>,
    %15 = arith.truncf %9 : vector<256x128xf32> to vector<256x128xbf16>
    %c24 = arith.constant 24 : index
    %c0_12 = arith.constant 0 : index
    %16 = vector.load %arg10[%c24, %c0_12] : memref<304x128xbf16, #tpu.memory_space<vmem>>, vector<256x128xbf16>
    tpu.vector_store %arg10[%c24, %c0_12], %15 {strides = array<i32>} : memref<304x128xbf16, #tpu.memory_space<vmem>>, vector<256x128xbf16>,
    %c0_13 = arith.constant 0 : index
    %c0_14 = arith.constant 0 : index
    %c0_15 = arith.constant 0 : index
    %17 = vector.load %arg8[%c0_13, %c0_14, %c0_15] : memref<2x256x1xbf16, #tpu.memory_space<vmem>>, vector<1x256x1xbf16>
    %18 = vector.shape_cast %17 : vector<1x256x1xbf16> to vector<256x1xbf16>
    %c1 = arith.constant 1 : index
    %c0_16 = arith.constant 0 : index
    %c0_17 = arith.constant 0 : index
    %19 = vector.load %arg8[%c1, %c0_16, %c0_17] : memref<2x256x1xbf16, #tpu.memory_space<vmem>>, vector<1x256x1xbf16>
    %20 = vector.shape_cast %19 : vector<1x256x1xbf16> to vector<256x1xbf16>
    %c7 = arith.constant 7 : index
    %c0_18 = arith.constant 0 : index
    %21 = vector.load %arg10[%c7, %c0_18] : memref<304x128xbf16, #tpu.memory_space<vmem>>, vector<256x128xbf16>
    %22 = vector.broadcast %18 : vector<256x1xbf16> to vector<256x128xbf16>
    %23 = arith.mulf %21, %22 : vector<256x128xbf16>
    %c8 = arith.constant 8 : index
    %c0_19 = arith.constant 0 : index
    %24 = vector.load %arg10[%c8, %c0_19] : memref<304x128xbf16, #tpu.memory_space<vmem>>, vector<256x128xbf16>
    %c9 = arith.constant 9 : index
    %c0_20 = arith.constant 0 : index
    %25 = vector.load %arg10[%c9, %c0_20] : memref<304x128xbf16, #tpu.memory_space<vmem>>, vector<256x128xbf16>
    %26 = vector.broadcast %20 : vector<256x1xbf16> to vector<256x128xbf16>
    %27 = arith.mulf %25, %26 : vector<256x128xbf16>
    %c23 = arith.constant 23 : index
    %c0_21 = arith.constant 0 : index
    %28 = vector.load %arg10[%c23, %c0_21] : memref<304x128xbf16, #tpu.memory_space<vmem>>, vector<256x128xbf16>
    %29 = vector.broadcast %18 : vector<256x1xbf16> to vector<256x128xbf16>
    %30 = arith.mulf %28, %29 : vector<256x128xbf16>
    %c24_22 = arith.constant 24 : index
    %c0_23 = arith.constant 0 : index
    %31 = vector.load %arg10[%c24_22, %c0_23] : memref<304x128xbf16, #tpu.memory_space<vmem>>, vector<256x128xbf16>
    %c25 = arith.constant 25 : index
    %c0_24 = arith.constant 0 : index
    %32 = vector.load %arg10[%c25, %c0_24] : memref<304x128xbf16, #tpu.memory_space<vmem>>, vector<256x128xbf16>
    %33 = vector.broadcast %20 : vector<256x1xbf16> to vector<256x128xbf16>
    %34 = arith.mulf %32, %33 : vector<256x128xbf16>
    %c39 = arith.constant 39 : index
    %c0_25 = arith.constant 0 : index
    %35 = vector.load %arg10[%c39, %c0_25] : memref<304x128xbf16, #tpu.memory_space<vmem>>, vector<256x128xbf16>
    %36 = vector.broadcast %18 : vector<256x1xbf16> to vector<256x128xbf16>
    %37 = arith.mulf %35, %36 : vector<256x128xbf16>
    %c40 = arith.constant 40 : index
    %c0_26 = arith.constant 0 : index
    %38 = vector.load %arg10[%c40, %c0_26] : memref<304x128xbf16, #tpu.memory_space<vmem>>, vector<256x128xbf16>
    %c41 = arith.constant 41 : index
    %c0_27 = arith.constant 0 : index
    %39 = vector.load %arg10[%c41, %c0_27] : memref<304x128xbf16, #tpu.memory_space<vmem>>, vector<256x128xbf16>
    %40 = vector.broadcast %20 : vector<256x1xbf16> to vector<256x128xbf16>
    %41 = arith.mulf %39, %40 : vector<256x128xbf16>
    %42 = tpu.concatenate %23, %24, %27, %30, %31, %34, %37, %38, %41 in 1 : vector<256x128xbf16>, vector<256x128xbf16>, vector<256x128xbf16>, vector<256x128xbf16>, vector<256x128xbf16>, vector<256x128xbf16>, vector<256x128xbf16>, vector<256x128xbf16>, vector<256x128xbf16> -> vector<256x1152xbf16>
    %c0_28 = arith.constant 0 : index
    %c0_29 = arith.constant 0 : index
    %43 = vector.load %arg4[%c0_28, %c0_29] : memref<1152x128xbf16, #tpu.memory_space<vmem>>, vector<1152x128xbf16>
    %cst_30 = arith.constant dense<0.000000e+00> : vector<256x128xf32>
    %44 = tpu.matmul %42, %43, %cst_30 {dimension_numbers = #tpu.dot_dimension_numbers<[1], [0], [0], [1], [0, 0, 1, 1], [], []>} : vector<256x1152xbf16>, vector<1152x128xbf16>, vector<256x128xf32> -> vector<256x128xf32>
    %c0_31 = arith.constant 0 : index
    %c0_32 = arith.constant 0 : index
    %45 = vector.load %arg5[%c0_31, %c0_32] : memref<1x128xf32, #tpu.memory_space<vmem>>, vector<1x128xf32>
    %46 = vector.broadcast %45 : vector<1x128xf32> to vector<256x128xf32>
    %47 = arith.addf %44, %46 : vector<256x128xf32>
    %cst_33 = arith.constant 0.000000e+00 : f32
    %48 = vector.broadcast %cst_33 : f32 to vector<256x128xf32>
    %49 = arith.maximumf %47, %48 : vector<256x128xf32>
    %50 = arith.truncf %49 : vector<256x128xf32> to vector<256x128xbf16>
    %c0_34 = arith.constant 0 : index
    %c0_35 = arith.constant 0 : index
    %51 = vector.load %arg6[%c0_34, %c0_35] : memref<128x128xbf16, #tpu.memory_space<vmem>>, vector<128x128xbf16>
    %cst_36 = arith.constant dense<0.000000e+00> : vector<256x128xf32>
    %52 = tpu.matmul %50, %51, %cst_36 {dimension_numbers = #tpu.dot_dimension_numbers<[1], [0], [0], [1], [0, 0, 1, 1], [], []>} : vector<256x128xbf16>, vector<128x128xbf16>, vector<256x128xf32> -> vector<256x128xf32>
    %c0_37 = arith.constant 0 : index
    %c0_38 = arith.constant 0 : index
    %53 = vector.load %arg7[%c0_37, %c0_38] : memref<1x128xf32, #tpu.memory_space<vmem>>, vector<1x128xf32>
    %54 = vector.broadcast %53 : vector<1x128xf32> to vector<256x128xf32>
    %55 = arith.addf %52, %54 : vector<256x128xf32>
    %cst_39 = arith.constant 0.000000e+00 : f32
    %56 = vector.broadcast %cst_39 : f32 to vector<256x128xf32>
    %57 = arith.maximumf %55, %56 : vector<256x128xf32>
    %58 = arith.addf %57, %10 : vector<256x128xf32>
    %cst_40 = arith.constant 0.000000e+00 : f32
    %59 = vector.broadcast %cst_40 : f32 to vector<256x128xf32>
    %60 = arith.maximumf %58, %59 : vector<256x128xf32>
    %61 = arith.truncf %60 : vector<256x128xf32> to vector<256x128xbf16>
    %c0_41 = arith.constant 0 : index
    %c0_42 = arith.constant 0 : index
    %c0_43 = arith.constant 0 : index
    %62 = vector.load %arg9[%c0_41, %c0_42, %c0_43] : memref<1x256x128xbf16, #tpu.memory_space<vmem>>, vector<1x256x128xbf16>
    %63 = vector.shape_cast %62 : vector<1x256x128xbf16> to vector<256x128xbf16>
    %64 = vector.shape_cast %61 : vector<256x128xbf16> to vector<1x256x128xbf16>
    tpu.vector_store %arg9[%c0_41, %c0_42, %c0_43], %64 {strides = array<i32>} : memref<1x256x128xbf16, #tpu.memory_space<vmem>>, vector<1x256x128xbf16>,
    return
  }
  func.func @transform_0(%arg0: i32) -> (i32, i32, i32) {
    %c0_i32 = arith.constant 0 : i32
    %c0_i32_0 = arith.constant 0 : i32
    %c0_i32_1 = arith.constant 0 : i32
    return %arg0, %c0_i32, %c0_i32_0 : i32, i32, i32
  }
  func.func @transform_1(%arg0: i32) -> (i32, i32) {
    %c0_i32 = arith.constant 0 : i32
    %c0_i32_0 = arith.constant 0 : i32
    %c0_i32_1 = arith.constant 0 : i32
    return %c0_i32, %c0_i32_0 : i32, i32
  }
  func.func @transform_2(%arg0: i32) -> (i32, i32) {
    %c0_i32 = arith.constant 0 : i32
    %c0_i32_0 = arith.constant 0 : i32
    %c0_i32_1 = arith.constant 0 : i32
    return %c0_i32, %c0_i32_0 : i32, i32
  }
  func.func @transform_3(%arg0: i32) -> (i32, i32) {
    %c0_i32 = arith.constant 0 : i32
    %c0_i32_0 = arith.constant 0 : i32
    %c0_i32_1 = arith.constant 0 : i32
    return %c0_i32, %c0_i32_0 : i32, i32
  }
  func.func @transform_4(%arg0: i32) -> (i32, i32) {
    %c0_i32 = arith.constant 0 : i32
    %c0_i32_0 = arith.constant 0 : i32
    %c0_i32_1 = arith.constant 0 : i32
    return %c0_i32, %c0_i32_0 : i32, i32
  }
  func.func @transform_5(%arg0: i32) -> (i32, i32) {
    %c0_i32 = arith.constant 0 : i32
    %c0_i32_0 = arith.constant 0 : i32
    %c0_i32_1 = arith.constant 0 : i32
    return %c0_i32, %c0_i32_0 : i32, i32
  }
  func.func @transform_6(%arg0: i32) -> (i32, i32) {
    %c0_i32 = arith.constant 0 : i32
    %c0_i32_0 = arith.constant 0 : i32
    %c0_i32_1 = arith.constant 0 : i32
    return %c0_i32, %c0_i32_0 : i32, i32
  }
  func.func @transform_7(%arg0: i32) -> (i32, i32, i32) {
    %c0_i32 = arith.constant 0 : i32
    %c0_i32_0 = arith.constant 0 : i32
    %c0_i32_1 = arith.constant 0 : i32
    %c0_i32_2 = arith.constant 0 : i32
    return %c0_i32, %c0_i32_0, %c0_i32_1 : i32, i32, i32
  }
  func.func @transform_8(%arg0: i32) -> (i32, i32, i32) {
    %c0_i32 = arith.constant 0 : i32
    %c0_i32_0 = arith.constant 0 : i32
    %c0_i32_1 = arith.constant 0 : i32
    return %arg0, %c0_i32, %c0_i32_0 : i32, i32, i32
  }
}

</mosaic_0001>

<llo_original>
// kernel: tpu_custom_call.1
$region0: #{tpu_custom_call.1}
  #allocation0 [shape = 'u32[]', space=smem, size = 0x4, offset = 0x4, fixed_abs, tag = 'smem constant byte address 0x4 - core index']
  #allocation1 [shape = 'u32[72,128]{1,0:T(1,128)}', space=vmem, size = 0x9000, scoped, tag = 'internal scratch']
  #allocation2 [shape = 'bf16[304,128]{1,0:T(8,128)(2,1)}', space=vmem, size = 0x13000, scoped, tag = 'scratch operand']
  %s0 = inlined_call_operand.vmem [shape: bf16[2,256,4], index: 0, kind: input, shape index: {}]
  %s1 = inlined_call_operand.vmem [shape: bf16[4,256], index: 1, kind: input, shape index: {}]
  %s2 = inlined_call_operand.vmem [shape: f32[1,256], index: 2, kind: input, shape index: {}]
  %s3 = inlined_call_operand.hbm [shape: bf16[1152,128], index: 3, kind: input, shape index: {}]
  %s4 = inlined_call_operand.vmem [shape: f32[1,128], index: 4, kind: input, shape index: {}]
  %s5 = inlined_call_operand.vmem [shape: bf16[128,128], index: 5, kind: input, shape index: {}]
  %s6 = inlined_call_operand.vmem [shape: f32[1,128], index: 6, kind: input, shape index: {}]
  %s7 = inlined_call_operand.vmem [shape: bf16[2,256,1], index: 7, kind: input, shape index: {}]
  %s8 = inlined_call_operand.hbm [shape: bf16[2,256,128], index: 8, kind: output, shape index: {}]
  %s9 = sld [smem:[#allocation0]]
  $region69: #{tpu_custom_call.1} parent=0
    _
  %s11 = ssub.s32 1, %s9
  %s12 = scalar_select 0, %s11, %s9
  $region1: #{tpu_custom_call.1} parent=0
    #allocation3 [shape = 'u8[294912]{0}', space=vmem, size = 0x48000, scoped, tag = 'input window, operand 3, single buffered']
    #allocation4 [shape = 's32[2]{0}', space=sflag, size = 0x8, scoped, tag = 'scoped memory for tpu_custom_call.1']
    #allocation5 [shape = 's32[2]{0}', space=sflag, size = 0x8, scoped, tag = 'scoped memory for tpu_custom_call.1']
    #allocation6 [shape = 'u8[131072]{0}', space=vmem, size = 0x20000, scoped, tag = 'output window, operand 0']
    %13 = vsyncpa [#allocation4], 0
    %14 = vsyncpa [#allocation5], 0
    %s15 = scalar_lea.sflag [#allocation5], 1
    %16 = vsyncpa %s15, 0
    loop: start=0, step=1, limit=4
    $region2: #{tpu_custom_call.1} parent=1 // loop_pre_header
      _
    $region3: #{tpu_custom_call.1} parent=1 // loop_header
      %s18 = sphi 0, %s22
      %p19 = scmp.ge.s32.totalorder %s18, 4
      %s28 = sphi 0, %s30
      %s31 = sphi 0, %s28
      %s32 = sphi 0, %s31
      %s48 = sphi 0, %s32
      %s52 = sphi 0, %s52
      %s54 = sphi 0, %s52
      %s55 = sphi 0, %s54
      %s69 = sphi 0, %s55
      %s73 = sphi 0, %s73
      %s75 = sphi 0, %s73
      %s76 = sphi 0, %s75
      %s90 = sphi 0, %s76
      %s94 = sphi 0, %s94
      %s96 = sphi 0, %s94
      %s97 = sphi 0, %s96
      %s111 = sphi 0, %s97
      %s115 = sphi 0, %s115
      %s117 = sphi 0, %s115
      %s118 = sphi 0, %s117
      %s132 = sphi 0, %s118
      %s136 = sphi 0, %s136
      %s138 = sphi 0, %s136
      %s139 = sphi 0, %s138
      %s153 = sphi 0, %s139
      %s157 = sphi 0, %s157
      %s159 = sphi 0, %s157
      %s160 = sphi 0, %s159
      %s174 = sphi 0, %s160
      %s178 = sphi 0, %s178
      %s180 = sphi 0, %s178
      %s181 = sphi 0, %s180
      %s195 = sphi 0, %s181
      %s201 = sphi 0, %s203
      %s204 = sphi 0, %s201
      %s205 = sphi 0, %s204
      %s221 = sphi 0, %s205
    $region4: #{tpu_custom_call.1} parent=1 // loop_header_branch
      %21 = sbr.rel (%p19) target = $region8
    $region5: #{tpu_custom_call.1} parent=1 // loop_body
      %s23 = ssub.s32 %s18, 1
      %s24 = ssub.s32 %s18, 2
      %s25 = sadd.s32 %s18, 1
      %s26 = ssub.s32 %s18, %s25
      %p27 = scmp.eq.s32.totalorder %s26, 0
      %s29 = sadd.s32 %s28, 1
      %s30 = scalar_select %p27, %s28, %s29
      %p33 = pneg %p27
      %p34 = scmp.eq.s32.totalorder %s18, 1
      %p35 = por %p33, %p34
      %p36 = scmp.ne.s32.totalorder %s28, %s31
      %p37 = scmp.eq.s32.totalorder %s18, 0
      %p38 = por %p36, %p37
      %p39 = scmp.ne.s32.totalorder %s28, %s31
      %p40 = scmp.eq.s32.totalorder %s23, 1
      %p41 = por %p39, %p40
      %p42 = scmp.ne.s32.totalorder %s31, %s32
      %p43 = scmp.eq.s32.totalorder %s23, 0
      %p44 = por %p42, %p43
      %p45 = scmp.ne.s32.totalorder %s31, %s32
      %p46 = scmp.eq.s32.totalorder %s24, 1
      %p47 = por %p45, %p46
      %p49 = scmp.ne.s32.totalorder %s32, %s48
      %p50 = scmp.eq.s32.totalorder %s24, 0
      %p51 = por %p49, %p50
      %s53 = sadd.s32 %s52, 1
      %p56 = scmp.eq.s32.totalorder %s18, 1
      %p57 = scmp.ne.s32.totalorder %s52, %s54
      %p58 = scmp.eq.s32.totalorder %s18, 0
      %p59 = por %p57, %p58
      %p60 = scmp.ne.s32.totalorder %s52, %s54
      %p61 = scmp.eq.s32.totalorder %s23, 1
      %p62 = por %p60, %p61
      %p63 = scmp.ne.s32.totalorder %s54, %s55
      %p64 = scmp.eq.s32.totalorder %s23, 0
      %p65 = por %p63, %p64
      %p66 = scmp.ne.s32.totalorder %s54, %s55
      %p67 = scmp.eq.s32.totalorder %s24, 1
      %p68 = por %p66, %p67
      %p70 = scmp.ne.s32.totalorder %s55, %s69
      %p71 = scmp.eq.s32.totalorder %s24, 0
      %p72 = por %p70, %p71
      %s74 = sadd.s32 %s73, 1
      %p77 = scmp.eq.s32.totalorder %s18, 1
      %p78 = scmp.ne.s32.totalorder %s73, %s75
      %p79 = scmp.eq.s32.totalorder %s18, 0
      %p80 = por %p78, %p79
      %p81 = scmp.ne.s32.totalorder %s73, %s75
      %p82 = scmp.eq.s32.totalorder %s23, 1
      %p83 = por %p81, %p82
      %p84 = scmp.ne.s32.totalorder %s75, %s76
      %p85 = scmp.eq.s32.totalorder %s23, 0
      %p86 = por %p84, %p85
      %p87 = scmp.ne.s32.totalorder %s75, %s76
      %p88 = scmp.eq.s32.totalorder %s24, 1
      %p89 = por %p87, %p88
      %p91 = scmp.ne.s32.totalorder %s76, %s90
      %p92 = scmp.eq.s32.totalorder %s24, 0
      %p93 = por %p91, %p92
      %s95 = sadd.s32 %s94, 1
      %p98 = scmp.eq.s32.totalorder %s18, 1
      %p99 = scmp.ne.s32.totalorder %s94, %s96
      %p100 = scmp.eq.s32.totalorder %s18, 0
      %p101 = por %p99, %p100
      %p102 = scmp.ne.s32.totalorder %s94, %s96
      %p103 = scmp.eq.s32.totalorder %s23, 1
      %p104 = por %p102, %p103
      %p105 = scmp.ne.s32.totalorder %s96, %s97
      %p106 = scmp.eq.s32.totalorder %s23, 0
      %p107 = por %p105, %p106
      %p108 = scmp.ne.s32.totalorder %s96, %s97
      %p109 = scmp.eq.s32.totalorder %s24, 1
      %p110 = por %p108, %p109
      %p112 = scmp.ne.s32.totalorder %s97, %s111
      %p113 = scmp.eq.s32.totalorder %s24, 0
      %p114 = por %p112, %p113
      %s116 = sadd.s32 %s115, 1
      %p119 = scmp.eq.s32.totalorder %s18, 1
      %p120 = scmp.ne.s32.totalorder %s115, %s117
      %p121 = scmp.eq.s32.totalorder %s18, 0
      %p122 = por %p120, %p121
      %p123 = scmp.ne.s32.totalorder %s115, %s117
      %p124 = scmp.eq.s32.totalorder %s23, 1
      %p125 = por %p123, %p124
      %p126 = scmp.ne.s32.totalorder %s117, %s118
      %p127 = scmp.eq.s32.totalorder %s23, 0
      %p128 = por %p126, %p127
      %p129 = scmp.ne.s32.totalorder %s117, %s118
      %p130 = scmp.eq.s32.totalorder %s24, 1
      %p131 = por %p129, %p130
      %p133 = scmp.ne.s32.totalorder %s118, %s132
      %p134 = scmp.eq.s32.totalorder %s24, 0
      %p135 = por %p133, %p134
      %s137 = sadd.s32 %s136, 1
      %p140 = scmp.eq.s32.totalorder %s18, 1
      %p141 = scmp.ne.s32.totalorder %s136, %s138
      %p142 = scmp.eq.s32.totalorder %s18, 0
      %p143 = por %p141, %p142
      %p144 = scmp.ne.s32.totalorder %s136, %s138
      %p145 = scmp.eq.s32.totalorder %s23, 1
      %p146 = por %p144, %p145
      %p147 = scmp.ne.s32.totalorder %s138, %s139
      %p148 = scmp.eq.s32.totalorder %s23, 0
      %p149 = por %p147, %p148
      %p150 = scmp.ne.s32.totalorder %s138, %s139
      %p151 = scmp.eq.s32.totalorder %s24, 1
      %p152 = por %p150, %p151
      %p154 = scmp.ne.s32.totalorder %s139, %s153
      %p155 = scmp.eq.s32.totalorder %s24, 0
      %p156 = por %p154, %p155
      %s158 = sadd.s32 %s157, 1
      %p161 = scmp.eq.s32.totalorder %s18, 1
      %p162 = scmp.ne.s32.totalorder %s157, %s159
      %p163 = scmp.eq.s32.totalorder %s18, 0
      %p164 = por %p162, %p163
      %p165 = scmp.ne.s32.totalorder %s157, %s159
      %p166 = scmp.eq.s32.totalorder %s23, 1
      %p167 = por %p165, %p166
      %p168 = scmp.ne.s32.totalorder %s159, %s160
      %p169 = scmp.eq.s32.totalorder %s23, 0
      %p170 = por %p168, %p169
      %p171 = scmp.ne.s32.totalorder %s159, %s160
      %p172 = scmp.eq.s32.totalorder %s24, 1
      %p173 = por %p171, %p172
      %p175 = scmp.ne.s32.totalorder %s160, %s174
      %p176 = scmp.eq.s32.totalorder %s24, 0
      %p177 = por %p175, %p176
      %s179 = sadd.s32 %s178, 1
      %p182 = scmp.eq.s32.totalorder %s18, 1
      %p183 = scmp.ne.s32.totalorder %s178, %s180
      %p184 = scmp.eq.s32.totalorder %s18, 0
      %p185 = por %p183, %p184
      %p186 = scmp.ne.s32.totalorder %s178, %s180
      %p187 = scmp.eq.s32.totalorder %s23, 1
      %p188 = por %p186, %p187
      %p189 = scmp.ne.s32.totalorder %s180, %s181
      %p190 = scmp.eq.s32.totalorder %s23, 0
      %p191 = por %p189, %p190
      %p192 = scmp.ne.s32.totalorder %s180, %s181
      %p193 = scmp.eq.s32.totalorder %s24, 1
      %p194 = por %p192, %p193
      %p196 = scmp.ne.s32.totalorder %s181, %s195
      %p197 = scmp.eq.s32.totalorder %s24, 0
      %p198 = por %p196, %p197
      %s199 = ssub.s32 %s18, %s25
      %p200 = scmp.eq.s32.totalorder %s199, 0
      %s202 = sadd.s32 %s201, 1
      %s203 = scalar_select %p200, %s201, %s202
      %p206 = pneg %p200
      %p207 = scmp.eq.s32.totalorder %s18, 1
      %p208 = por %p206, %p207
      %p209 = scmp.ne.s32.totalorder %s201, %s204
      %p210 = scmp.eq.s32.totalorder %s18, 0
      %p211 = por %p209, %p210
      %p212 = scmp.ne.s32.totalorder %s201, %s204
      %p213 = scmp.eq.s32.totalorder %s23, 1
      %p214 = por %p212, %p213
      %p215 = scmp.ne.s32.totalorder %s204, %s205
      %p216 = scmp.eq.s32.totalorder %s23, 0
      %p217 = por %p215, %p216
      %p218 = scmp.ne.s32.totalorder %s204, %s205
      %p219 = scmp.eq.s32.totalorder %s24, 1
      %p220 = por %p218, %p219
      %p222 = scmp.ne.s32.totalorder %s205, %s221
      %p223 = scmp.eq.s32.totalorder %s24, 0
      %p224 = por %p222, %p223
      %p225 = scmp.le.s32.totalorder 1, %s18
      %p226 = scmp.lt.s32.totalorder %s18, 3
      %p227 = pnand %p225, %p226
      %p228 = pneg %p227
      // Predicated region
      $region9: #{tpu_custom_call.1} parent=5 // pred_check
        _
      $region10: #{tpu_custom_call.1} parent=5 // pred_check_branch
        %230 = sbr.rel (%p227) target = $region12
      $region11: #{tpu_custom_call.1} parent=5 // pred_region
        %s231 = ssub.s32 %s18, 1
        // Predicated region
        $region13: #{tpu_custom_call.1} parent=11 // pred_check
          %p232 = pneg %p65
        $region14: #{tpu_custom_call.1} parent=11 // pred_check_branch
          %234 = sbr.rel (%p232) target = $region16
        $region15: #{tpu_custom_call.1} parent=11 // pred_region
          _
        $region16: #{tpu_custom_call.1} parent=11 // pred_fallthru
          _
        // Predicated region
        $region17: #{tpu_custom_call.1} parent=11 // pred_check
          %p235 = pneg %p86
        $region18: #{tpu_custom_call.1} parent=11 // pred_check_branch
          %237 = sbr.rel (%p235) target = $region20
        $region19: #{tpu_custom_call.1} parent=11 // pred_region
          _
        $region20: #{tpu_custom_call.1} parent=11 // pred_fallthru
          _
        // Predicated region
        $region21: #{tpu_custom_call.1} parent=11 // pred_check
          %p238 = pneg %p107
        $region22: #{tpu_custom_call.1} parent=11 // pred_check_branch
          %240 = sbr.rel (%p238) target = $region24
        $region23: #{tpu_custom_call.1} parent=11 // pred_region
          %242 = vsyncadd [#allocation4], 0
          %s243 = sshll.u32 %s3, 4
          %s244 = int_to_ptr.hbm [resolvable:$true] %s243
          %s245 = sshll.u32 [#allocation3], 4
          %s246 = int_to_ptr.vmem [resolvable:$true] %s245
          %251 = dma.hbm_to_vmem [thread:$0]  %s244, 9216, %s246, [#allocation4], 64, 64, 4
        $region24: #{tpu_custom_call.1} parent=11 // pred_fallthru
          _
        // Predicated region
        $region25: #{tpu_custom_call.1} parent=11 // pred_check
          %p252 = pneg %p128
        $region26: #{tpu_custom_call.1} parent=11 // pred_check_branch
          %254 = sbr.rel (%p252) target = $region28
        $region27: #{tpu_custom_call.1} parent=11 // pred_region
          _
        $region28: #{tpu_custom_call.1} parent=11 // pred_fallthru
          _
        // Predicated region
        $region29: #{tpu_custom_call.1} parent=11 // pred_check
          %p255 = pneg %p149
        $region30: #{tpu_custom_call.1} parent=11 // pred_check_branch
          %257 = sbr.rel (%p255) target = $region32
        $region31: #{tpu_custom_call.1} parent=11 // pred_region
          _
        $region32: #{tpu_custom_call.1} parent=11 // pred_fallthru
          _
        // Predicated region
        $region33: #{tpu_custom_call.1} parent=11 // pred_check
          %p258 = pneg %p170
        $region34: #{tpu_custom_call.1} parent=11 // pred_check_branch
          %260 = sbr.rel (%p258) target = $region36
        $region35: #{tpu_custom_call.1} parent=11 // pred_region
          _
        $region36: #{tpu_custom_call.1} parent=11 // pred_fallthru
          _
        // Predicated region
        $region37: #{tpu_custom_call.1} parent=11 // pred_check
          %p261 = pneg %p191
        $region38: #{tpu_custom_call.1} parent=11 // pred_check_branch
          %263 = sbr.rel (%p261) target = $region40
        $region39: #{tpu_custom_call.1} parent=11 // pred_region
          _
        $region40: #{tpu_custom_call.1} parent=11 // pred_fallthru
          _
      $region12: #{tpu_custom_call.1} parent=5 // pred_fallthru
        _
      %p264 = scmp.lt.s32.totalorder %s18, 2
      // Predicated region
      $region41: #{tpu_custom_call.1} parent=5 // pred_check
        %p265 = pneg %p264
      $region42: #{tpu_custom_call.1} parent=5 // pred_check_branch
        %267 = sbr.rel (%p265) target = $region44
      $region43: #{tpu_custom_call.1} parent=5 // pred_region
        // Predicated region
        $region45: #{tpu_custom_call.1} parent=43 // pred_check
          %p268 = pneg %p38
        $region46: #{tpu_custom_call.1} parent=43 // pred_check_branch
          %270 = sbr.rel (%p268) target = $region48
        $region47: #{tpu_custom_call.1} parent=43 // pred_region
          %p271 = scmp.lt.s32.totalorder %s18, 1
          %s272 = scalar_select %p271, %s18, 1
          %s273 = smul.addr %s272, 32
          %s274 = smul.addr %s273, 4
          %s275 = scalar_lea.vmem %s0, %s274
        $region48: #{tpu_custom_call.1} parent=43 // pred_fallthru
          _
      $region44: #{tpu_custom_call.1} parent=5 // pred_fallthru
        _
      %p276 = scmp.le.s32.totalorder 1, %s18
      %p277 = scmp.lt.s32.totalorder %s18, 3
      %p278 = pnand %p276, %p277
      %p279 = pneg %p278
      // Predicated region
      $region49: #{tpu_custom_call.1} parent=5 // pred_check
        _
      $region50: #{tpu_custom_call.1} parent=5 // pred_check_branch
        %281 = sbr.rel (%p278) target = $region52
      $region51: #{tpu_custom_call.1} parent=5 // pred_region
        %s282 = ssub.s32 %s18, 1
        // Predicated region
        $region53: #{tpu_custom_call.1} parent=51 // pred_check
          %p283 = pneg %p107
        $region54: #{tpu_custom_call.1} parent=51 // pred_check_branch
          %285 = sbr.rel (%p283) target = $region56
        $region55: #{tpu_custom_call.1} parent=51 // pred_region
          %287 = dma.done [#allocation4], 9216
        $region56: #{tpu_custom_call.1} parent=51 // pred_fallthru
          _
        %p288 = scmp.lt.s32.totalorder %s23, 1
        %s289 = scalar_select %p288, %s23, 1
        %s290 = smul.addr %s289, 32
        %s291 = smul.addr %s290, 4
        %s292 = scalar_lea.vmem %s0, %s291
        %p293 = pneg %p44
        %p294 = pneg %p41
        %p295 = pneg %p65
        %p296 = pneg %p62
        %p297 = pneg %p86
        %p298 = pneg %p83
        %p299 = pneg %p107
        %p300 = pneg %p104
        %p301 = pneg %p128
        %p302 = pneg %p125
        %p303 = pneg %p149
        %p304 = pneg %p146
        %p305 = pneg %p170
        %p306 = pneg %p167
        %p307 = pneg %p191
        %p308 = pneg %p188
        %p309 = pneg %p217
        %p310 = pneg %p214
        %s311 = sand.u32 %s204, 1
        %s312 = scalar_lea.sflag [#allocation5], %s311
        %s313 = sand.u32 %s204, 1
        %s314 = smul.addr %s313, 128
        %s315 = scalar_lea.vmem [#allocation6], %s314
        %p316 = scmp.lt.s32.totalorder %s23, 1
        %s317 = scalar_select %p316, %s23, 1
        %s318 = smul.addr %s317, 32
        %s319 = smul.addr %s318, 4
        %s320 = scalar_lea.vmem %s0, %s319
        %v322 = vld [vmem:[%s320] sm:$0xf]
        %v323 = vld [vmem:[%s320 + $0x4] sm:$0xf]
        %v324 = vld [vmem:[%s320 + $0x8] sm:$0xf]
        %v325 = vld [vmem:[%s320 + $0xc] sm:$0xf]
        %v326 = vld [vmem:[%s320 + $0x10] sm:$0xf]
        %v327 = vld [vmem:[%s320 + $0x14] sm:$0xf]
        %v328 = vld [vmem:[%s320 + $0x18] sm:$0xf]
        %v329 = vld [vmem:[%s320 + $0x1c] sm:$0xf]
        %v330 = vld [vmem:[%s320 + $0x20] sm:$0xf]
        %v331 = vld [vmem:[%s320 + $0x24] sm:$0xf]
        %v332 = vld [vmem:[%s320 + $0x28] sm:$0xf]
        %v333 = vld [vmem:[%s320 + $0x2c] sm:$0xf]
        %v334 = vld [vmem:[%s320 + $0x30] sm:$0xf]
        %v335 = vld [vmem:[%s320 + $0x34] sm:$0xf]
        %v336 = vld [vmem:[%s320 + $0x38] sm:$0xf]
        %v337 = vld [vmem:[%s320 + $0x3c] sm:$0xf]
        %v338 = vld [vmem:[%s320 + $0x40] sm:$0xf]
        %v339 = vld [vmem:[%s320 + $0x44] sm:$0xf]
        %v340 = vld [vmem:[%s320 + $0x48] sm:$0xf]
        %v341 = vld [vmem:[%s320 + $0x4c] sm:$0xf]
        %v342 = vld [vmem:[%s320 + $0x50] sm:$0xf]
        %v343 = vld [vmem:[%s320 + $0x54] sm:$0xf]
        %v344 = vld [vmem:[%s320 + $0x58] sm:$0xf]
        %v345 = vld [vmem:[%s320 + $0x5c] sm:$0xf]
        %v346 = vld [vmem:[%s320 + $0x60] sm:$0xf]
        %v347 = vld [vmem:[%s320 + $0x64] sm:$0xf]
        %v348 = vld [vmem:[%s320 + $0x68] sm:$0xf]
        %v349 = vld [vmem:[%s320 + $0x6c] sm:$0xf]
        %v350 = vld [vmem:[%s320 + $0x70] sm:$0xf]
        %v351 = vld [vmem:[%s320 + $0x74] sm:$0xf]
        %v352 = vld [vmem:[%s320 + $0x78] sm:$0xf]
        %v353 = vld [vmem:[%s320 + $0x7c] sm:$0xf]
        %v354 = vld [vmem:[%s1] sm:$0xf]
        %v355 = vld [vmem:[%s2] sm:$0x3]
        %v357 = vperm.slane %v355, 0
        %v358 = vperm.slane %v355, 1
        %v393 = vunpack.c.l.b16 %v322
        %v394 = vunpack.c.l.b16 %v323
        %v395 = vunpack.c.l.b16 %v324
        %v396 = vunpack.c.l.b16 %v325
        %v397 = vunpack.c.l.b16 %v326
        %v398 = vunpack.c.l.b16 %v327
        %v399 = vunpack.c.l.b16 %v328
        %v400 = vunpack.c.l.b16 %v329
        %v401 = vunpack.c.l.b16 %v330
        %v402 = vunpack.c.l.b16 %v331
        %v403 = vunpack.c.l.b16 %v332
        %v404 = vunpack.c.l.b16 %v333
        %v405 = vunpack.c.l.b16 %v334
        %v406 = vunpack.c.l.b16 %v335
        %v407 = vunpack.c.l.b16 %v336
        %v408 = vunpack.c.l.b16 %v337
        %v409 = vunpack.c.l.b16 %v338
        %v410 = vunpack.c.l.b16 %v339
        %v411 = vunpack.c.l.b16 %v340
        %v412 = vunpack.c.l.b16 %v341
        %v413 = vunpack.c.l.b16 %v342
        %v414 = vunpack.c.l.b16 %v343
        %v415 = vunpack.c.l.b16 %v344
        %v416 = vunpack.c.l.b16 %v345
        %v417 = vunpack.c.l.b16 %v346
        %v418 = vunpack.c.l.b16 %v347
        %v419 = vunpack.c.l.b16 %v348
        %v420 = vunpack.c.l.b16 %v349
        %v421 = vunpack.c.l.b16 %v350
        %v422 = vunpack.c.l.b16 %v351
        %v423 = vunpack.c.l.b16 %v352
        %v424 = vunpack.c.l.b16 %v353
        %v425 = vpack.c.b16 %v394, %v393
        %v426 = vpack.c.b16 %v396, %v395
        %v427 = vpack.c.b16 %v398, %v397
        %v428 = vpack.c.b16 %v400, %v399
        %v429 = vpack.c.b16 %v402, %v401
        %v430 = vpack.c.b16 %v404, %v403
        %v431 = vpack.c.b16 %v406, %v405
        %v432 = vpack.c.b16 %v408, %v407
        %v433 = vpack.c.b16 %v410, %v409
        %v434 = vpack.c.b16 %v412, %v411
        %v435 = vpack.c.b16 %v414, %v413
        %v436 = vpack.c.b16 %v416, %v415
        %v437 = vpack.c.b16 %v418, %v417
        %v438 = vpack.c.b16 %v420, %v419
        %v439 = vpack.c.b16 %v422, %v421
        %v440 = vpack.c.b16 %v424, %v423
        %442 = vst [vmem:[#allocation1] ss:$4 sm:$0xff] %v354
        %v443 = vld.sshfl [vmem:[#allocation1] sm:$0xff pattern:$0x73625140]
        %v444 = vld.sshfl [vmem:[#allocation1 + $0x8] sm:$0xff pattern:$0x73625140]
        %vm445 = vcmask 31744
        %v447 = vsel %vm445, %v425, 0
        %v450 = vsel %vm445, %v426, 0
        %v453 = vsel %vm445, %v427, 0
        %v456 = vsel %vm445, %v428, 0
        %v459 = vsel %vm445, %v429, 0
        %v462 = vsel %vm445, %v430, 0
        %v465 = vsel %vm445, %v431, 0
        %v468 = vsel %vm445, %v432, 0
        %v471 = vsel %vm445, %v433, 0
        %v474 = vsel %vm445, %v434, 0
        %v477 = vsel %vm445, %v435, 0
        %v480 = vsel %vm445, %v436, 0
        %v483 = vsel %vm445, %v437, 0
        %v486 = vsel %vm445, %v438, 0
        %v489 = vsel %vm445, %v439, 0
        %v492 = vsel %vm445, %v440, 0
        %vm494 = vcmask 1041408
        %v495 = vsel %vm494, %v443, 0
        %v497 = vsel %vm494, %v444, 0
        %499 = vmatpush.bf16.msra.mxu0 0
        %500 = vmatpush.bf16.msra.mxu0 0
        %501 = vmatpush.bf16.msra.mxu0 0
        %502 = vmatpush.bf16.msra.mxu0 0
        %503 = vmatpush.bf16.msra.mxu0 0
        %504 = vmatpush.bf16.msra.mxu0 0
        %505 = vmatpush.bf16.msra.mxu0 0
        %506 = vmatpush.bf16.msra.mxu0 %v495
        %507 = vmatmul.bf16.gmra.mxu0 %v447
        %v508 = vpop.f32.mrf.mxu0
        %v509 = vadd.f32 %v357, %v508
        %v510 = vpop.f32.mrf.mxu0
        %v511 = vadd.f32 %v357, %v510
        %512 = vmatmul.bf16.gmra.mxu0 %v450
        %v513 = vpop.f32.mrf.mxu0
        %v514 = vadd.f32 %v357, %v513
        %v515 = vpop.f32.mrf.mxu0
        %v516 = vadd.f32 %v357, %v515
        %517 = vmatmul.bf16.gmra.mxu0 %v453
        %v518 = vpop.f32.mrf.mxu0
        %v519 = vadd.f32 %v357, %v518
        %v520 = vpop.f32.mrf.mxu0
        %v521 = vadd.f32 %v357, %v520
        %522 = vmatmul.bf16.gmra.mxu0 %v456
        %v523 = vpop.f32.mrf.mxu0
        %v524 = vadd.f32 %v357, %v523
        %v525 = vpop.f32.mrf.mxu0
        %v526 = vadd.f32 %v357, %v525
        %527 = vmatmul.bf16.gmra.mxu0 %v459
        %v528 = vpop.f32.mrf.mxu0
        %v529 = vadd.f32 %v357, %v528
        %v530 = vpop.f32.mrf.mxu0
        %v531 = vadd.f32 %v357, %v530
        %532 = vmatmul.bf16.gmra.mxu0 %v462
        %v533 = vpop.f32.mrf.mxu0
        %v534 = vadd.f32 %v357, %v533
        %v535 = vpop.f32.mrf.mxu0
        %v536 = vadd.f32 %v357, %v535
        %537 = vmatmul.bf16.gmra.mxu0 %v465
        %v538 = vpop.f32.mrf.mxu0
        %v539 = vadd.f32 %v357, %v538
        %v540 = vpop.f32.mrf.mxu0
        %v541 = vadd.f32 %v357, %v540
        %542 = vmatmul.bf16.gmra.mxu0 %v468
        %v543 = vpop.f32.mrf.mxu0
        %v544 = vadd.f32 %v357, %v543
        %v545 = vpop.f32.mrf.mxu0
        %v546 = vadd.f32 %v357, %v545
        %547 = vmatmul.bf16.gmra.mxu0 %v471
        %v548 = vpop.f32.mrf.mxu0
        %v549 = vadd.f32 %v357, %v548
        %v550 = vpop.f32.mrf.mxu0
        %v551 = vadd.f32 %v357, %v550
        %552 = vmatmul.bf16.gmra.mxu0 %v474
        %v553 = vpop.f32.mrf.mxu0
        %v554 = vadd.f32 %v357, %v553
        %v555 = vpop.f32.mrf.mxu0
        %v556 = vadd.f32 %v357, %v555
        %557 = vmatmul.bf16.gmra.mxu0 %v477
        %v558 = vpop.f32.mrf.mxu0
        %v559 = vadd.f32 %v357, %v558
        %v560 = vpop.f32.mrf.mxu0
        %v561 = vadd.f32 %v357, %v560
        %562 = vmatmul.bf16.gmra.mxu0 %v480
        %v563 = vpop.f32.mrf.mxu0
        %v564 = vadd.f32 %v357, %v563
        %v565 = vpop.f32.mrf.mxu0
        %v566 = vadd.f32 %v357, %v565
        %567 = vmatmul.bf16.gmra.mxu0 %v483
        %v568 = vpop.f32.mrf.mxu0
        %v569 = vadd.f32 %v357, %v568
        %v570 = vpop.f32.mrf.mxu0
        %v571 = vadd.f32 %v357, %v570
        %572 = vmatmul.bf16.gmra.mxu0 %v486
        %v573 = vpop.f32.mrf.mxu0
        %v574 = vadd.f32 %v357, %v573
        %v575 = vpop.f32.mrf.mxu0
        %v576 = vadd.f32 %v357, %v575
        %577 = vmatmul.bf16.gmra.mxu0 %v489
        %v578 = vpop.f32.mrf.mxu0
        %v579 = vadd.f32 %v357, %v578
        %v580 = vpop.f32.mrf.mxu0
        %v581 = vadd.f32 %v357, %v580
        %582 = vmatmul.bf16.gmra.mxu0 %v492
        %v583 = vpop.f32.mrf.mxu0
        %v584 = vadd.f32 %v357, %v583
        %v585 = vpop.f32.mrf.mxu0
        %v586 = vadd.f32 %v357, %v585
        %587 = vdwg.mxu0
        %588 = vmatpush.bf16.msra.mxu0 0
        %589 = vmatpush.bf16.msra.mxu0 0
        %590 = vmatpush.bf16.msra.mxu0 0
        %591 = vmatpush.bf16.msra.mxu0 0
        %592 = vmatpush.bf16.msra.mxu0 0
        %593 = vmatpush.bf16.msra.mxu0 0
        %594 = vmatpush.bf16.msra.mxu0 0
        %595 = vmatpush.bf16.msra.mxu0 %v497
        %596 = vmatmul.bf16.gmra.mxu0 %v447
        %v597 = vpop.f32.mrf.mxu0
        %v598 = vadd.f32 %v358, %v597
        %v599 = vpop.f32.mrf.mxu0
        %v600 = vadd.f32 %v358, %v599
        %601 = vmatmul.bf16.gmra.mxu0 %v450
        %v602 = vpop.f32.mrf.mxu0
        %v603 = vadd.f32 %v358, %v602
        %v604 = vpop.f32.mrf.mxu0
        %v605 = vadd.f32 %v358, %v604
        %606 = vmatmul.bf16.gmra.mxu0 %v453
        %v607 = vpop.f32.mrf.mxu0
        %v608 = vadd.f32 %v358, %v607
        %v609 = vpop.f32.mrf.mxu0
        %v610 = vadd.f32 %v358, %v609
        %611 = vmatmul.bf16.gmra.mxu0 %v456
        %v612 = vpop.f32.mrf.mxu0
        %v613 = vadd.f32 %v358, %v612
        %v614 = vpop.f32.mrf.mxu0
        %v615 = vadd.f32 %v358, %v614
        %616 = vmatmul.bf16.gmra.mxu0 %v459
        %v617 = vpop.f32.mrf.mxu0
        %v618 = vadd.f32 %v358, %v617
        %v619 = vpop.f32.mrf.mxu0
        %v620 = vadd.f32 %v358, %v619
        %621 = vmatmul.bf16.gmra.mxu0 %v462
        %v622 = vpop.f32.mrf.mxu0
        %v623 = vadd.f32 %v358, %v622
        %v624 = vpop.f32.mrf.mxu0
        %v625 = vadd.f32 %v358, %v624
        %626 = vmatmul.bf16.gmra.mxu0 %v465
        %v627 = vpop.f32.mrf.mxu0
        %v628 = vadd.f32 %v358, %v627
        %v629 = vpop.f32.mrf.mxu0
        %v630 = vadd.f32 %v358, %v629
        %631 = vmatmul.bf16.gmra.mxu0 %v468
        %v632 = vpop.f32.mrf.mxu0
        %v633 = vadd.f32 %v358, %v632
        %v634 = vpop.f32.mrf.mxu0
        %v635 = vadd.f32 %v358, %v634
        %636 = vmatmul.bf16.gmra.mxu0 %v471
        %v637 = vpop.f32.mrf.mxu0
        %v638 = vadd.f32 %v358, %v637
        %v639 = vpop.f32.mrf.mxu0
        %v640 = vadd.f32 %v358, %v639
        %641 = vmatmul.bf16.gmra.mxu0 %v474
        %v642 = vpop.f32.mrf.mxu0
        %v643 = vadd.f32 %v358, %v642
        %v644 = vpop.f32.mrf.mxu0
        %v645 = vadd.f32 %v358, %v644
        %646 = vmatmul.bf16.gmra.mxu0 %v477
        %v647 = vpop.f32.mrf.mxu0
        %v648 = vadd.f32 %v358, %v647
        %v649 = vpop.f32.mrf.mxu0
        %v650 = vadd.f32 %v358, %v649
        %651 = vmatmul.bf16.gmra.mxu0 %v480
        %v652 = vpop.f32.mrf.mxu0
        %v653 = vadd.f32 %v358, %v652
        %v654 = vpop.f32.mrf.mxu0
        %v655 = vadd.f32 %v358, %v654
        %656 = vmatmul.bf16.gmra.mxu0 %v483
        %v657 = vpop.f32.mrf.mxu0
        %v658 = vadd.f32 %v358, %v657
        %v659 = vpop.f32.mrf.mxu0
        %v660 = vadd.f32 %v358, %v659
        %661 = vmatmul.bf16.gmra.mxu0 %v486
        %v662 = vpop.f32.mrf.mxu0
        %v663 = vadd.f32 %v358, %v662
        %v664 = vpop.f32.mrf.mxu0
        %v665 = vadd.f32 %v358, %v664
        %666 = vmatmul.bf16.gmra.mxu0 %v489
        %v667 = vpop.f32.mrf.mxu0
        %v668 = vadd.f32 %v358, %v667
        %v669 = vpop.f32.mrf.mxu0
        %v670 = vadd.f32 %v358, %v669
        %671 = vmatmul.bf16.gmra.mxu0 %v492
        %v672 = vpop.f32.mrf.mxu0
        %v673 = vadd.f32 %v358, %v672
        %v674 = vpop.f32.mrf.mxu0
        %v675 = vadd.f32 %v358, %v674
        %676 = vdwg.mxu0
        %v677 = vmax.f32 %v509, 0.0
        %v678 = vmax.f32 %v511, 0.0
        %v679 = vmax.f32 %v514, 0.0
        %v680 = vmax.f32 %v516, 0.0
        %v681 = vmax.f32 %v519, 0.0
        %v682 = vmax.f32 %v521, 0.0
        %v683 = vmax.f32 %v524, 0.0
        %v684 = vmax.f32 %v526, 0.0
        %v685 = vmax.f32 %v529, 0.0
        %v686 = vmax.f32 %v531, 0.0
        %v687 = vmax.f32 %v534, 0.0
        %v688 = vmax.f32 %v536, 0.0
        %v689 = vmax.f32 %v539, 0.0
        %v690 = vmax.f32 %v541, 0.0
        %v691 = vmax.f32 %v544, 0.0
        %v692 = vmax.f32 %v546, 0.0
        %v693 = vmax.f32 %v549, 0.0
        %v694 = vmax.f32 %v551, 0.0
        %v695 = vmax.f32 %v554, 0.0
        %v696 = vmax.f32 %v556, 0.0
        %v697 = vmax.f32 %v559, 0.0
        %v698 = vmax.f32 %v561, 0.0
        %v699 = vmax.f32 %v564, 0.0
        %v700 = vmax.f32 %v566, 0.0
        %v701 = vmax.f32 %v569, 0.0
        %v702 = vmax.f32 %v571, 0.0
        %v703 = vmax.f32 %v574, 0.0
        %v704 = vmax.f32 %v576, 0.0
        %v705 = vmax.f32 %v579, 0.0
        %v706 = vmax.f32 %v581, 0.0
        %v707 = vmax.f32 %v584, 0.0
        %v708 = vmax.f32 %v586, 0.0
        %709 = vst [vmem:[#allocation2] sm:$0xf] 0
        %710 = vst [vmem:[#allocation2 + $0x4] sm:$0xf] 0
        %711 = vst [vmem:[#allocation2 + $0x8] sm:$0xf] 0
        %712 = vst [vmem:[#allocation2 + $0x8c] sm:$0xf] 0
        %713 = vst [vmem:[#allocation2 + $0x90] sm:$0xf] 0
        %714 = vst [vmem:[#allocation2 + $0x94] sm:$0xf] 0
        %v715 = vpack.c.bf16 %v677, %v677
        %v716 = vpack.c.bf16 %v678, %v678
        %v717 = vpack.c.bf16 %v679, %v679
        %v718 = vpack.c.bf16 %v680, %v680
        %v719 = vpack.c.bf16 %v681, %v681
        %v720 = vpack.c.bf16 %v682, %v682
        %v721 = vpack.c.bf16 %v683, %v683
        %v722 = vpack.c.bf16 %v684, %v684
        %v723 = vpack.c.bf16 %v685, %v685
        %v724 = vpack.c.bf16 %v686, %v686
        %v725 = vpack.c.bf16 %v687, %v687
        %v726 = vpack.c.bf16 %v688, %v688
        %v727 = vpack.c.bf16 %v689, %v689
        %v728 = vpack.c.bf16 %v690, %v690
        %v729 = vpack.c.bf16 %v691, %v691
        %v730 = vpack.c.bf16 %v692, %v692
        %v731 = vpack.c.bf16 %v693, %v693
        %v732 = vpack.c.bf16 %v694, %v694
        %v733 = vpack.c.bf16 %v695, %v695
        %v734 = vpack.c.bf16 %v696, %v696
        %v735 = vpack.c.bf16 %v697, %v697
        %v736 = vpack.c.bf16 %v698, %v698
        %v737 = vpack.c.bf16 %v699, %v699
        %v738 = vpack.c.bf16 %v700, %v700
        %v739 = vpack.c.bf16 %v701, %v701
        %v740 = vpack.c.bf16 %v702, %v702
        %v741 = vpack.c.bf16 %v703, %v703
        %v742 = vpack.c.bf16 %v704, %v704
        %v743 = vpack.c.bf16 %v705, %v705
        %v744 = vpack.c.bf16 %v706, %v706
        %v745 = vpack.c.bf16 %v707, %v707
        %v746 = vpack.c.bf16 %v708, %v708
        %747 = vst [vmem:[#allocation2 + $0xc] sm:$0xf] %v715
        %748 = vst [vmem:[#allocation2 + $0x10] sm:$0xf] %v716
        %749 = vst [vmem:[#allocation2 + $0x14] sm:$0xf] %v717
        %750 = vst [vmem:[#allocation2 + $0x18] sm:$0xf] %v718
        %751 = vst [vmem:[#allocation2 + $0x1c] sm:$0xf] %v719
        %752 = vst [vmem:[#allocation2 + $0x20] sm:$0xf] %v720
        %753 = vst [vmem:[#allocation2 + $0x24] sm:$0xf] %v721
        %754 = vst [vmem:[#allocation2 + $0x28] sm:$0xf] %v722
        %755 = vst [vmem:[#allocation2 + $0x2c] sm:$0xf] %v723
        %756 = vst [vmem:[#allocation2 + $0x30] sm:$0xf] %v724
        %757 = vst [vmem:[#allocation2 + $0x34] sm:$0xf] %v725
        %758 = vst [vmem:[#allocation2 + $0x38] sm:$0xf] %v726
        %759 = vst [vmem:[#allocation2 + $0x3c] sm:$0xf] %v727
        %760 = vst [vmem:[#allocation2 + $0x40] sm:$0xf] %v728
        %761 = vst [vmem:[#allocation2 + $0x44] sm:$0xf] %v729
        %762 = vst [vmem:[#allocation2 + $0x48] sm:$0xf] %v730
        %763 = vst [vmem:[#allocation2 + $0x4c] sm:$0xf] %v731
        %764 = vst [vmem:[#allocation2 + $0x50] sm:$0xf] %v732
        %765 = vst [vmem:[#allocation2 + $0x54] sm:$0xf] %v733
        %766 = vst [vmem:[#allocation2 + $0x58] sm:$0xf] %v734
        %767 = vst [vmem:[#allocation2 + $0x5c] sm:$0xf] %v735
        %768 = vst [vmem:[#allocation2 + $0x60] sm:$0xf] %v736
        %769 = vst [vmem:[#allocation2 + $0x64] sm:$0xf] %v737
        %770 = vst [vmem:[#allocation2 + $0x68] sm:$0xf] %v738
        %771 = vst [vmem:[#allocation2 + $0x6c] sm:$0xf] %v739
        %772 = vst [vmem:[#allocation2 + $0x70] sm:$0xf] %v740
        %773 = vst [vmem:[#allocation2 + $0x74] sm:$0xf] %v741
        %774 = vst [vmem:[#allocation2 + $0x78] sm:$0xf] %v742
        %775 = vst [vmem:[#allocation2 + $0x7c] sm:$0xf] %v743
        %776 = vst [vmem:[#allocation2 + $0x80] sm:$0xf] %v744
        %777 = vst [vmem:[#allocation2 + $0x84] sm:$0xf] %v745
        %778 = vst [vmem:[#allocation2 + $0x88] sm:$0xf] %v746
        %v779 = vld [vmem:[%s7] sm:$0xf]
        %v780 = vld [vmem:[%s7 + $0x4] sm:$0xf]
        %v781 = vld [vmem:[%s7 + $0x8] sm:$0xf]
        %v782 = vld [vmem:[%s7 + $0xc] sm:$0xf]
        %v783 = vld [vmem:[%s7 + $0x10] sm:$0xf]
        %v784 = vld [vmem:[%s7 + $0x14] sm:$0xf]
        %v785 = vld [vmem:[%s7 + $0x18] sm:$0xf]
        %v786 = vld [vmem:[%s7 + $0x1c] sm:$0xf]
        %v787 = vld [vmem:[%s7 + $0x20] sm:$0xf]
        %v788 = vld [vmem:[%s7 + $0x24] sm:$0xf]
        %v789 = vld [vmem:[%s7 + $0x28] sm:$0xf]
        %v790 = vld [vmem:[%s7 + $0x2c] sm:$0xf]
        %v791 = vld [vmem:[%s7 + $0x30] sm:$0xf]
        %v792 = vld [vmem:[%s7 + $0x34] sm:$0xf]
        %v793 = vld [vmem:[%s7 + $0x38] sm:$0xf]
        %v794 = vld [vmem:[%s7 + $0x3c] sm:$0xf]
        %v795 = vld [vmem:[%s7 + $0x40] sm:$0xf]
        %v796 = vld [vmem:[%s7 + $0x44] sm:$0xf]
        %v797 = vld [vmem:[%s7 + $0x48] sm:$0xf]
        %v798 = vld [vmem:[%s7 + $0x4c] sm:$0xf]
        %v799 = vld [vmem:[%s7 + $0x50] sm:$0xf]
        %v800 = vld [vmem:[%s7 + $0x54] sm:$0xf]
        %v801 = vld [vmem:[%s7 + $0x58] sm:$0xf]
        %v802 = vld [vmem:[%s7 + $0x5c] sm:$0xf]
        %v803 = vld [vmem:[%s7 + $0x60] sm:$0xf]
        %v804 = vld [vmem:[%s7 + $0x64] sm:$0xf]
        %v805 = vld [vmem:[%s7 + $0x68] sm:$0xf]
        %v806 = vld [vmem:[%s7 + $0x6c] sm:$0xf]
        %v807 = vld [vmem:[%s7 + $0x70] sm:$0xf]
        %v808 = vld [vmem:[%s7 + $0x74] sm:$0xf]
        %v809 = vld [vmem:[%s7 + $0x78] sm:$0xf]
        %v810 = vld [vmem:[%s7 + $0x7c] sm:$0xf]
        %s811 = scalar_lea.vmem %s7, 128
        %v812 = vld [vmem:[%s811] sm:$0xf]
        %v813 = vld [vmem:[%s811 + $0x4] sm:$0xf]
        %v814 = vld [vmem:[%s811 + $0x8] sm:$0xf]
        %v815 = vld [vmem:[%s811 + $0xc] sm:$0xf]
        %v816 = vld [vmem:[%s811 + $0x10] sm:$0xf]
        %v817 = vld [vmem:[%s811 + $0x14] sm:$0xf]
        %v818 = vld [vmem:[%s811 + $0x18] sm:$0xf]
        %v819 = vld [vmem:[%s811 + $0x1c] sm:$0xf]
        %v820 = vld [vmem:[%s811 + $0x20] sm:$0xf]
        %v821 = vld [vmem:[%s811 + $0x24] sm:$0xf]
        %v822 = vld [vmem:[%s811 + $0x28] sm:$0xf]
        %v823 = vld [vmem:[%s811 + $0x2c] sm:$0xf]
        %v824 = vld [vmem:[%s811 + $0x30] sm:$0xf]
        %v825 = vld [vmem:[%s811 + $0x34] sm:$0xf]
        %v826 = vld [vmem:[%s811 + $0x38] sm:$0xf]
        %v827 = vld [vmem:[%s811 + $0x3c] sm:$0xf]
        %v828 = vld [vmem:[%s811 + $0x40] sm:$0xf]
        %v829 = vld [vmem:[%s811 + $0x44] sm:$0xf]
        %v830 = vld [vmem:[%s811 + $0x48] sm:$0xf]
        %v831 = vld [vmem:[%s811 + $0x4c] sm:$0xf]
        %v832 = vld [vmem:[%s811 + $0x50] sm:$0xf]
        %v833 = vld [vmem:[%s811 + $0x54] sm:$0xf]
        %v834 = vld [vmem:[%s811 + $0x58] sm:$0xf]
        %v835 = vld [vmem:[%s811 + $0x5c] sm:$0xf]
        %v836 = vld [vmem:[%s811 + $0x60] sm:$0xf]
        %v837 = vld [vmem:[%s811 + $0x64] sm:$0xf]
        %v838 = vld [vmem:[%s811 + $0x68] sm:$0xf]
        %v839 = vld [vmem:[%s811 + $0x6c] sm:$0xf]
        %v840 = vld [vmem:[%s811 + $0x70] sm:$0xf]
        %v841 = vld [vmem:[%s811 + $0x74] sm:$0xf]
        %v842 = vld [vmem:[%s811 + $0x78] sm:$0xf]
        %v843 = vld [vmem:[%s811 + $0x7c] sm:$0xf]
        %v844 = vld [vmem:[#allocation2] sm:$0x8]
        %v845 = vld [vmem:[#allocation2 + $0x4] sm:$0xf]
        %v846 = vld [vmem:[#allocation2 + $0x8] sm:$0xf]
        %v847 = vld [vmem:[#allocation2 + $0xc] sm:$0xf]
        %v848 = vld [vmem:[#allocation2 + $0x10] sm:$0xf]
        %v849 = vld [vmem:[#allocation2 + $0x14] sm:$0xf]
        %v850 = vld [vmem:[#allocation2 + $0x18] sm:$0xf]
        %v851 = vld [vmem:[#allocation2 + $0x1c] sm:$0xf]
        %v852 = vld [vmem:[#allocation2 + $0x20] sm:$0xf]
        %v853 = vld [vmem:[#allocation2 + $0x24] sm:$0xf]
        %v854 = vld [vmem:[#allocation2 + $0x28] sm:$0xf]
        %v855 = vld [vmem:[#allocation2 + $0x2c] sm:$0xf]
        %v856 = vld [vmem:[#allocation2 + $0x30] sm:$0xf]
        %v857 = vld [vmem:[#allocation2 + $0x34] sm:$0xf]
        %v858 = vld [vmem:[#allocation2 + $0x38] sm:$0xf]
        %v859 = vld [vmem:[#allocation2 + $0x3c] sm:$0xf]
        %v860 = vld [vmem:[#allocation2 + $0x40] sm:$0xf]
        %v861 = vld [vmem:[#allocation2 + $0x44] sm:$0xf]
        %v862 = vld [vmem:[#allocation2 + $0x48] sm:$0xf]
        %v863 = vld [vmem:[#allocation2 + $0x4c] sm:$0xf]
        %v864 = vld [vmem:[#allocation2 + $0x50] sm:$0xf]
        %v865 = vld [vmem:[#allocation2 + $0x54] sm:$0xf]
        %v866 = vld [vmem:[#allocation2 + $0x58] sm:$0xf]
        %v867 = vld [vmem:[#allocation2 + $0x5c] sm:$0xf]
        %v868 = vld [vmem:[#allocation2 + $0x60] sm:$0xf]
        %v869 = vld [vmem:[#allocation2 + $0x64] sm:$0xf]
        %v870 = vld [vmem:[#allocation2 + $0x68] sm:$0xf]
        %v871 = vld [vmem:[#allocation2 + $0x6c] sm:$0xf]
        %v872 = vld [vmem:[#allocation2 + $0x70] sm:$0xf]
        %v873 = vld [vmem:[#allocation2 + $0x74] sm:$0xf]
        %v874 = vld [vmem:[#allocation2 + $0x78] sm:$0xf]
        %v875 = vld [vmem:[#allocation2 + $0x7c] sm:$0xf]
        %v876 = vld [vmem:[#allocation2 + $0x80] sm:$0xf]
        %878 = vset.pattern.permute.xlu0 0
        %879 = vperm.xlu0 %878, %v779
        %v880 = vpop.permute.xlu0 %879
        %v883 = vunpack.c.l.s4 839922192
        %v884 = vunpack.c.0.s8 %v883
        %v885 = vperm.slane %v880, %v884
        %887 = vset.pattern.permute.xlu0 0
        %888 = vperm.xlu0 %887, %v780
        %v889 = vpop.permute.xlu0 %888
        %v892 = vunpack.c.l.s4 839922192
        %v893 = vunpack.c.0.s8 %v892
        %v894 = vperm.slane %v889, %v893
        %896 = vset.pattern.permute.xlu0 0
        %897 = vperm.xlu0 %896, %v781
        %v898 = vpop.permute.xlu0 %897
        %v901 = vunpack.c.l.s4 839922192
        %v902 = vunpack.c.0.s8 %v901
        %v903 = vperm.slane %v898, %v902
        %905 = vset.pattern.permute.xlu0 0
        %906 = vperm.xlu0 %905, %v782
        %v907 = vpop.permute.xlu0 %906
        %v910 = vunpack.c.l.s4 839922192
        %v911 = vunpack.c.0.s8 %v910
        %v912 = vperm.slane %v907, %v911
        %914 = vset.pattern.permute.xlu0 0
        %915 = vperm.xlu0 %914, %v783
        %v916 = vpop.permute.xlu0 %915
        %v919 = vunpack.c.l.s4 839922192
        %v920 = vunpack.c.0.s8 %v919
        %v921 = vperm.slane %v916, %v920
        %923 = vset.pattern.permute.xlu0 0
        %924 = vperm.xlu0 %923, %v784
        %v925 = vpop.permute.xlu0 %924
        %v928 = vunpack.c.l.s4 839922192
        %v929 = vunpack.c.0.s8 %v928
        %v930 = vperm.slane %v925, %v929
        %932 = vset.pattern.permute.xlu0 0
        %933 = vperm.xlu0 %932, %v785
        %v934 = vpop.permute.xlu0 %933
        %v937 = vunpack.c.l.s4 839922192
        %v938 = vunpack.c.0.s8 %v937
        %v939 = vperm.slane %v934, %v938
        %941 = vset.pattern.permute.xlu0 0
        %942 = vperm.xlu0 %941, %v786
        %v943 = vpop.permute.xlu0 %942
        %v946 = vunpack.c.l.s4 839922192
        %v947 = vunpack.c.0.s8 %v946
        %v948 = vperm.slane %v943, %v947
        %950 = vset.pattern.permute.xlu0 0
        %951 = vperm.xlu0 %950, %v787
        %v952 = vpop.permute.xlu0 %951
        %v955 = vunpack.c.l.s4 839922192
        %v956 = vunpack.c.0.s8 %v955
        %v957 = vperm.slane %v952, %v956
        %959 = vset.pattern.permute.xlu0 0
        %960 = vperm.xlu0 %959, %v788
        %v961 = vpop.permute.xlu0 %960
        %v964 = vunpack.c.l.s4 839922192
        %v965 = vunpack.c.0.s8 %v964
        %v966 = vperm.slane %v961, %v965
        %968 = vset.pattern.permute.xlu0 0
        %969 = vperm.xlu0 %968, %v789
        %v970 = vpop.permute.xlu0 %969
        %v973 = vunpack.c.l.s4 839922192
        %v974 = vunpack.c.0.s8 %v973
        %v975 = vperm.slane %v970, %v974
        %977 = vset.pattern.permute.xlu0 0
        %978 = vperm.xlu0 %977, %v790
        %v979 = vpop.permute.xlu0 %978
        %v982 = vunpack.c.l.s4 839922192
        %v983 = vunpack.c.0.s8 %v982
        %v984 = vperm.slane %v979, %v983
        %986 = vset.pattern.permute.xlu0 0
        %987 = vperm.xlu0 %986, %v791
        %v988 = vpop.permute.xlu0 %987
        %v991 = vunpack.c.l.s4 839922192
        %v992 = vunpack.c.0.s8 %v991
        %v993 = vperm.slane %v988, %v992
        %995 = vset.pattern.permute.xlu0 0
        %996 = vperm.xlu0 %995, %v792
        %v997 = vpop.permute.xlu0 %996
        %v1000 = vunpack.c.l.s4 839922192
        %v1001 = vunpack.c.0.s8 %v1000
        %v1002 = vperm.slane %v997, %v1001
        %1004 = vset.pattern.permute.xlu0 0
        %1005 = vperm.xlu0 %1004, %v793
        %v1006 = vpop.permute.xlu0 %1005
        %v1009 = vunpack.c.l.s4 839922192
        %v1010 = vunpack.c.0.s8 %v1009
        %v1011 = vperm.slane %v1006, %v1010
        %1013 = vset.pattern.permute.xlu0 0
        %1014 = vperm.xlu0 %1013, %v794
        %v1015 = vpop.permute.xlu0 %1014
        %v1018 = vunpack.c.l.s4 839922192
        %v1019 = vunpack.c.0.s8 %v1018
        %v1020 = vperm.slane %v1015, %v1019
        %1022 = vset.pattern.permute.xlu0 0
        %1023 = vperm.xlu0 %1022, %v795
        %v1024 = vpop.permute.xlu0 %1023
        %v1027 = vunpack.c.l.s4 839922192
        %v1028 = vunpack.c.0.s8 %v1027
        %v1029 = vperm.slane %v1024, %v1028
        %1031 = vset.pattern.permute.xlu0 0
        %1032 = vperm.xlu0 %1031, %v796
        %v1033 = vpop.permute.xlu0 %1032
        %v1036 = vunpack.c.l.s4 839922192
        %v1037 = vunpack.c.0.s8 %v1036
        %v1038 = vperm.slane %v1033, %v1037
        %1040 = vset.pattern.permute.xlu0 0
        %1041 = vperm.xlu0 %1040, %v797
        %v1042 = vpop.permute.xlu0 %1041
        %v1045 = vunpack.c.l.s4 839922192
        %v1046 = vunpack.c.0.s8 %v1045
        %v1047 = vperm.slane %v1042, %v1046
        %1049 = vset.pattern.permute.xlu0 0
        %1050 = vperm.xlu0 %1049, %v798
        %v1051 = vpop.permute.xlu0 %1050
        %v1054 = vunpack.c.l.s4 839922192
        %v1055 = vunpack.c.0.s8 %v1054
        %v1056 = vperm.slane %v1051, %v1055
        %1058 = vset.pattern.permute.xlu0 0
        %1059 = vperm.xlu0 %1058, %v799
        %v1060 = vpop.permute.xlu0 %1059
        %v1063 = vunpack.c.l.s4 839922192
        %v1064 = vunpack.c.0.s8 %v1063
        %v1065 = vperm.slane %v1060, %v1064
        %1067 = vset.pattern.permute.xlu0 0
        %1068 = vperm.xlu0 %1067, %v800
        %v1069 = vpop.permute.xlu0 %1068
        %v1072 = vunpack.c.l.s4 839922192
        %v1073 = vunpack.c.0.s8 %v1072
        %v1074 = vperm.slane %v1069, %v1073
        %1076 = vset.pattern.permute.xlu0 0
        %1077 = vperm.xlu0 %1076, %v801
        %v1078 = vpop.permute.xlu0 %1077
        %v1081 = vunpack.c.l.s4 839922192
        %v1082 = vunpack.c.0.s8 %v1081
        %v1083 = vperm.slane %v1078, %v1082
        %1085 = vset.pattern.permute.xlu0 0
        %1086 = vperm.xlu0 %1085, %v802
        %v1087 = vpop.permute.xlu0 %1086
        %v1090 = vunpack.c.l.s4 839922192
        %v1091 = vunpack.c.0.s8 %v1090
        %v1092 = vperm.slane %v1087, %v1091
        %1094 = vset.pattern.permute.xlu0 0
        %1095 = vperm.xlu0 %1094, %v803
        %v1096 = vpop.permute.xlu0 %1095
        %v1099 = vunpack.c.l.s4 839922192
        %v1100 = vunpack.c.0.s8 %v1099
        %v1101 = vperm.slane %v1096, %v1100
        %1103 = vset.pattern.permute.xlu0 0
        %1104 = vperm.xlu0 %1103, %v804
        %v1105 = vpop.permute.xlu0 %1104
        %v1108 = vunpack.c.l.s4 839922192
        %v1109 = vunpack.c.0.s8 %v1108
        %v1110 = vperm.slane %v1105, %v1109
        %1112 = vset.pattern.permute.xlu0 0
        %1113 = vperm.xlu0 %1112, %v805
        %v1114 = vpop.permute.xlu0 %1113
        %v1117 = vunpack.c.l.s4 839922192
        %v1118 = vunpack.c.0.s8 %v1117
        %v1119 = vperm.slane %v1114, %v1118
        %1121 = vset.pattern.permute.xlu0 0
        %1122 = vperm.xlu0 %1121, %v806
        %v1123 = vpop.permute.xlu0 %1122
        %v1126 = vunpack.c.l.s4 839922192
        %v1127 = vunpack.c.0.s8 %v1126
        %v1128 = vperm.slane %v1123, %v1127
        %1130 = vset.pattern.permute.xlu0 0
        %1131 = vperm.xlu0 %1130, %v807
        %v1132 = vpop.permute.xlu0 %1131
        %v1135 = vunpack.c.l.s4 839922192
        %v1136 = vunpack.c.0.s8 %v1135
        %v1137 = vperm.slane %v1132, %v1136
        %1139 = vset.pattern.permute.xlu0 0
        %1140 = vperm.xlu0 %1139, %v808
        %v1141 = vpop.permute.xlu0 %1140
        %v1144 = vunpack.c.l.s4 839922192
        %v1145 = vunpack.c.0.s8 %v1144
        %v1146 = vperm.slane %v1141, %v1145
        %1148 = vset.pattern.permute.xlu0 0
        %1149 = vperm.xlu0 %1148, %v809
        %v1150 = vpop.permute.xlu0 %1149
        %v1153 = vunpack.c.l.s4 839922192
        %v1154 = vunpack.c.0.s8 %v1153
        %v1155 = vperm.slane %v1150, %v1154
        %1157 = vset.pattern.permute.xlu0 0
        %1158 = vperm.xlu0 %1157, %v810
        %v1159 = vpop.permute.xlu0 %1158
        %v1162 = vunpack.c.l.s4 839922192
        %v1163 = vunpack.c.0.s8 %v1162
        %v1164 = vperm.slane %v1159, %v1163
        %v1165 = vunpack.c.l.bf16 %v844
        %v1166 = vunpack.c.l.bf16 %v845
        %v1167 = vunpack.c.l.bf16 %v846
        %v1168 = vunpack.c.l.bf16 %v847
        %v1169 = vunpack.c.l.bf16 %v848
        %v1170 = vunpack.c.l.bf16 %v849
        %v1171 = vunpack.c.l.bf16 %v850
        %v1172 = vunpack.c.l.bf16 %v851
        %v1173 = vunpack.c.l.bf16 %v852
        %v1174 = vunpack.c.l.bf16 %v853
        %v1175 = vunpack.c.l.bf16 %v854
        %v1176 = vunpack.c.l.bf16 %v855
        %v1177 = vunpack.c.l.bf16 %v856
        %v1178 = vunpack.c.l.bf16 %v857
        %v1179 = vunpack.c.l.bf16 %v858
        %v1180 = vunpack.c.l.bf16 %v859
        %v1181 = vunpack.c.l.bf16 %v860
        %v1182 = vunpack.c.l.bf16 %v861
        %v1183 = vunpack.c.l.bf16 %v862
        %v1184 = vunpack.c.l.bf16 %v863
        %v1185 = vunpack.c.l.bf16 %v864
        %v1186 = vunpack.c.l.bf16 %v865
        %v1187 = vunpack.c.l.bf16 %v866
        %v1188 = vunpack.c.l.bf16 %v867
        %v1189 = vunpack.c.l.bf16 %v868
        %v1190 = vunpack.c.l.bf16 %v869
        %v1191 = vunpack.c.l.bf16 %v870
        %v1192 = vunpack.c.l.bf16 %v871
        %v1193 = vunpack.c.l.bf16 %v872
        %v1194 = vunpack.c.l.bf16 %v873
        %v1195 = vunpack.c.l.bf16 %v874
        %v1196 = vunpack.c.l.bf16 %v875
        %v1197 = vunpack.c.l.bf16 %v876
        %v1198 = vunpack.c.l.bf16 %v885
        %v1199 = vunpack.c.l.bf16 %v894
        %v1200 = vunpack.c.l.bf16 %v903
        %v1201 = vunpack.c.l.bf16 %v912
        %v1202 = vunpack.c.l.bf16 %v921
        %v1203 = vunpack.c.l.bf16 %v930
        %v1204 = vunpack.c.l.bf16 %v939
        %v1205 = vunpack.c.l.bf16 %v948
        %v1206 = vunpack.c.l.bf16 %v957
        %v1207 = vunpack.c.l.bf16 %v966
        %v1208 = vunpack.c.l.bf16 %v975
        %v1209 = vunpack.c.l.bf16 %v984
        %v1210 = vunpack.c.l.bf16 %v993
        %v1211 = vunpack.c.l.bf16 %v1002
        %v1212 = vunpack.c.l.bf16 %v1011
        %v1213 = vunpack.c.l.bf16 %v1020
        %v1214 = vunpack.c.l.bf16 %v1029
        %v1215 = vunpack.c.l.bf16 %v1038
        %v1216 = vunpack.c.l.bf16 %v1047
        %v1217 = vunpack.c.l.bf16 %v1056
        %v1218 = vunpack.c.l.bf16 %v1065
        %v1219 = vunpack.c.l.bf16 %v1074
        %v1220 = vunpack.c.l.bf16 %v1083
        %v1221 = vunpack.c.l.bf16 %v1092
        %v1222 = vunpack.c.l.bf16 %v1101
        %v1223 = vunpack.c.l.bf16 %v1110
        %v1224 = vunpack.c.l.bf16 %v1119
        %v1225 = vunpack.c.l.bf16 %v1128
        %v1226 = vunpack.c.l.bf16 %v1137
        %v1227 = vunpack.c.l.bf16 %v1146
        %v1228 = vunpack.c.l.bf16 %v1155
        %v1229 = vunpack.c.l.bf16 %v1164
        %vm1262 = vcmask 1046528
        %v1263 = vrot.slane %v1198, 1
        %v1264 = vrot.slane %v1199, 1
        %v1265 = vsel %vm1262, %v1263, %v1264
        %v1266 = vrot.slane %v1200, 1
        %v1267 = vsel %vm1262, %v1264, %v1266
        %v1268 = vrot.slane %v1201, 1
        %v1269 = vsel %vm1262, %v1266, %v1268
        %v1270 = vrot.slane %v1202, 1
        %v1271 = vsel %vm1262, %v1268, %v1270
        %v1272 = vrot.slane %v1203, 1
        %v1273 = vsel %vm1262, %v1270, %v1272
        %v1274 = vrot.slane %v1204, 1
        %v1275 = vsel %vm1262, %v1272, %v1274
        %v1276 = vrot.slane %v1205, 1
        %v1277 = vsel %vm1262, %v1274, %v1276
        %v1278 = vrot.slane %v1206, 1
        %v1279 = vsel %vm1262, %v1276, %v1278
        %v1280 = vrot.slane %v1207, 1
        %v1281 = vsel %vm1262, %v1278, %v1280
        %v1282 = vrot.slane %v1208, 1
        %v1283 = vsel %vm1262, %v1280, %v1282
        %v1284 = vrot.slane %v1209, 1
        %v1285 = vsel %vm1262, %v1282, %v1284
        %v1286 = vrot.slane %v1210, 1
        %v1287 = vsel %vm1262, %v1284, %v1286
        %v1288 = vrot.slane %v1211, 1
        %v1289 = vsel %vm1262, %v1286, %v1288
        %v1290 = vrot.slane %v1212, 1
        %v1291 = vsel %vm1262, %v1288, %v1290
        %v1292 = vrot.slane %v1213, 1
        %v1293 = vsel %vm1262, %v1290, %v1292
        %v1294 = vrot.slane %v1214, 1
        %v1295 = vsel %vm1262, %v1292, %v1294
        %v1296 = vrot.slane %v1215, 1
        %v1297 = vsel %vm1262, %v1294, %v1296
        %v1298 = vrot.slane %v1216, 1
        %v1299 = vsel %vm1262, %v1296, %v1298
        %v1300 = vrot.slane %v1217, 1
        %v1301 = vsel %vm1262, %v1298, %v1300
        %v1302 = vrot.slane %v1218, 1
        %v1303 = vsel %vm1262, %v1300, %v1302
        %v1304 = vrot.slane %v1219, 1
        %v1305 = vsel %vm1262, %v1302, %v1304
        %v1306 = vrot.slane %v1220, 1
        %v1307 = vsel %vm1262, %v1304, %v1306
        %v1308 = vrot.slane %v1221, 1
        %v1309 = vsel %vm1262, %v1306, %v1308
        %v1310 = vrot.slane %v1222, 1
        %v1311 = vsel %vm1262, %v1308, %v1310
        %v1312 = vrot.slane %v1223, 1
        %v1313 = vsel %vm1262, %v1310, %v1312
        %v1314 = vrot.slane %v1224, 1
        %v1315 = vsel %vm1262, %v1312, %v1314
        %v1316 = vrot.slane %v1225, 1
        %v1317 = vsel %vm1262, %v1314, %v1316
        %v1318 = vrot.slane %v1226, 1
        %v1319 = vsel %vm1262, %v1316, %v1318
        %v1320 = vrot.slane %v1227, 1
        %v1321 = vsel %vm1262, %v1318, %v1320
        %v1322 = vrot.slane %v1228, 1
        %v1323 = vsel %vm1262, %v1320, %v1322
        %v1324 = vrot.slane %v1229, 1
        %v1325 = vsel %vm1262, %v1322, %v1324
        %v1359 = vmul.f32 %v1165, %v1263
        %v1360 = vmul.f32 %v1166, %v1265
        %v1361 = vmul.f32 %v1167, %v1267
        %v1362 = vmul.f32 %v1168, %v1269
        %v1363 = vmul.f32 %v1169, %v1271
        %v1364 = vmul.f32 %v1170, %v1273
        %v1365 = vmul.f32 %v1171, %v1275
        %v1366 = vmul.f32 %v1172, %v1277
        %v1367 = vmul.f32 %v1173, %v1279
        %v1368 = vmul.f32 %v1174, %v1281
        %v1369 = vmul.f32 %v1175, %v1283
        %v1370 = vmul.f32 %v1176, %v1285
        %v1371 = vmul.f32 %v1177, %v1287
        %v1372 = vmul.f32 %v1178, %v1289
        %v1373 = vmul.f32 %v1179, %v1291
        %v1374 = vmul.f32 %v1180, %v1293
        %v1375 = vmul.f32 %v1181, %v1295
        %v1376 = vmul.f32 %v1182, %v1297
        %v1377 = vmul.f32 %v1183, %v1299
        %v1378 = vmul.f32 %v1184, %v1301
        %v1379 = vmul.f32 %v1185, %v1303
        %v1380 = vmul.f32 %v1186, %v1305
        %v1381 = vmul.f32 %v1187, %v1307
        %v1382 = vmul.f32 %v1188, %v1309
        %v1383 = vmul.f32 %v1189, %v1311
        %v1384 = vmul.f32 %v1190, %v1313
        %v1385 = vmul.f32 %v1191, %v1315
        %v1386 = vmul.f32 %v1192, %v1317
        %v1387 = vmul.f32 %v1193, %v1319
        %v1388 = vmul.f32 %v1194, %v1321
        %v1389 = vmul.f32 %v1195, %v1323
        %v1390 = vmul.f32 %v1196, %v1325
        %v1391 = vmul.f32 %v1197, %v1324
        %v1392 = vpack.c.bf16 %v1359, %v1359
        %v1393 = vpack.c.bf16 %v1360, %v1360
        %v1394 = vpack.c.bf16 %v1361, %v1361
        %v1395 = vpack.c.bf16 %v1362, %v1362
        %v1396 = vpack.c.bf16 %v1363, %v1363
        %v1397 = vpack.c.bf16 %v1364, %v1364
        %v1398 = vpack.c.bf16 %v1365, %v1365
        %v1399 = vpack.c.bf16 %v1366, %v1366
        %v1400 = vpack.c.bf16 %v1367, %v1367
        %v1401 = vpack.c.bf16 %v1368, %v1368
        %v1402 = vpack.c.bf16 %v1369, %v1369
        %v1403 = vpack.c.bf16 %v1370, %v1370
        %v1404 = vpack.c.bf16 %v1371, %v1371
        %v1405 = vpack.c.bf16 %v1372, %v1372
        %v1406 = vpack.c.bf16 %v1373, %v1373
        %v1407 = vpack.c.bf16 %v1374, %v1374
        %v1408 = vpack.c.bf16 %v1375, %v1375
        %v1409 = vpack.c.bf16 %v1376, %v1376
        %v1410 = vpack.c.bf16 %v1377, %v1377
        %v1411 = vpack.c.bf16 %v1378, %v1378
        %v1412 = vpack.c.bf16 %v1379, %v1379
        %v1413 = vpack.c.bf16 %v1380, %v1380
        %v1414 = vpack.c.bf16 %v1381, %v1381
        %v1415 = vpack.c.bf16 %v1382, %v1382
        %v1416 = vpack.c.bf16 %v1383, %v1383
        %v1417 = vpack.c.bf16 %v1384, %v1384
        %v1418 = vpack.c.bf16 %v1385, %v1385
        %v1419 = vpack.c.bf16 %v1386, %v1386
        %v1420 = vpack.c.bf16 %v1387, %v1387
        %v1421 = vpack.c.bf16 %v1388, %v1388
        %v1422 = vpack.c.bf16 %v1389, %v1389
        %v1423 = vpack.c.bf16 %v1390, %v1390
        %v1424 = vpack.c.bf16 %v1391, %v1391
        %v1425 = vld [vmem:[#allocation2 + $0x4] sm:$0xf]
        %v1426 = vld [vmem:[#allocation2 + $0x8] sm:$0xf]
        %v1427 = vld [vmem:[#allocation2 + $0xc] sm:$0xf]
        %v1428 = vld [vmem:[#allocation2 + $0x10] sm:$0xf]
        %v1429 = vld [vmem:[#allocation2 + $0x14] sm:$0xf]
        %v1430 = vld [vmem:[#allocation2 + $0x18] sm:$0xf]
        %v1431 = vld [vmem:[#allocation2 + $0x1c] sm:$0xf]
        %v1432 = vld [vmem:[#allocation2 + $0x20] sm:$0xf]
        %v1433 = vld [vmem:[#allocation2 + $0x24] sm:$0xf]
        %v1434 = vld [vmem:[#allocation2 + $0x28] sm:$0xf]
        %v1435 = vld [vmem:[#allocation2 + $0x2c] sm:$0xf]
        %v1436 = vld [vmem:[#allocation2 + $0x30] sm:$0xf]
        %v1437 = vld [vmem:[#allocation2 + $0x34] sm:$0xf]
        %v1438 = vld [vmem:[#allocation2 + $0x38] sm:$0xf]
        %v1439 = vld [vmem:[#allocation2 + $0x3c] sm:$0xf]
        %v1440 = vld [vmem:[#allocation2 + $0x40] sm:$0xf]
        %v1441 = vld [vmem:[#allocation2 + $0x44] sm:$0xf]
        %v1442 = vld [vmem:[#allocation2 + $0x48] sm:$0xf]
        %v1443 = vld [vmem:[#allocation2 + $0x4c] sm:$0xf]
        %v1444 = vld [vmem:[#allocation2 + $0x50] sm:$0xf]
        %v1445 = vld [vmem:[#allocation2 + $0x54] sm:$0xf]
        %v1446 = vld [vmem:[#allocation2 + $0x58] sm:$0xf]
        %v1447 = vld [vmem:[#allocation2 + $0x5c] sm:$0xf]
        %v1448 = vld [vmem:[#allocation2 + $0x60] sm:$0xf]
        %v1449 = vld [vmem:[#allocation2 + $0x64] sm:$0xf]
        %v1450 = vld [vmem:[#allocation2 + $0x68] sm:$0xf]
        %v1451 = vld [vmem:[#allocation2 + $0x6c] sm:$0xf]
        %v1452 = vld [vmem:[#allocation2 + $0x70] sm:$0xf]
        %v1453 = vld [vmem:[#allocation2 + $0x74] sm:$0xf]
        %v1454 = vld [vmem:[#allocation2 + $0x78] sm:$0xf]
        %v1455 = vld [vmem:[#allocation2 + $0x7c] sm:$0xf]
        %v1456 = vld [vmem:[#allocation2 + $0x80] sm:$0xf]
        %v1457 = vld [vmem:[#allocation2 + $0x84] sm:$0x1]
        %1459 = vset.pattern.permute.xlu0 0
        %1460 = vperm.xlu0 %1459, %v812
        %v1461 = vpop.permute.xlu0 %1460
        %v1464 = vunpack.c.l.s4 839922192
        %v1465 = vunpack.c.0.s8 %v1464
        %v1466 = vperm.slane %v1461, %v1465
        %1468 = vset.pattern.permute.xlu0 0
        %1469 = vperm.xlu0 %1468, %v813
        %v1470 = vpop.permute.xlu0 %1469
        %v1473 = vunpack.c.l.s4 839922192
        %v1474 = vunpack.c.0.s8 %v1473
        %v1475 = vperm.slane %v1470, %v1474
        %1477 = vset.pattern.permute.xlu0 0
        %1478 = vperm.xlu0 %1477, %v814
        %v1479 = vpop.permute.xlu0 %1478
        %v1482 = vunpack.c.l.s4 839922192
        %v1483 = vunpack.c.0.s8 %v1482
        %v1484 = vperm.slane %v1479, %v1483
        %1486 = vset.pattern.permute.xlu0 0
        %1487 = vperm.xlu0 %1486, %v815
        %v1488 = vpop.permute.xlu0 %1487
        %v1491 = vunpack.c.l.s4 839922192
        %v1492 = vunpack.c.0.s8 %v1491
        %v1493 = vperm.slane %v1488, %v1492
        %1495 = vset.pattern.permute.xlu0 0
        %1496 = vperm.xlu0 %1495, %v816
        %v1497 = vpop.permute.xlu0 %1496
        %v1500 = vunpack.c.l.s4 839922192
        %v1501 = vunpack.c.0.s8 %v1500
        %v1502 = vperm.slane %v1497, %v1501
        %1504 = vset.pattern.permute.xlu0 0
        %1505 = vperm.xlu0 %1504, %v817
        %v1506 = vpop.permute.xlu0 %1505
        %v1509 = vunpack.c.l.s4 839922192
        %v1510 = vunpack.c.0.s8 %v1509
        %v1511 = vperm.slane %v1506, %v1510
        %1513 = vset.pattern.permute.xlu0 0
        %1514 = vperm.xlu0 %1513, %v818
        %v1515 = vpop.permute.xlu0 %1514
        %v1518 = vunpack.c.l.s4 839922192
        %v1519 = vunpack.c.0.s8 %v1518
        %v1520 = vperm.slane %v1515, %v1519
        %1522 = vset.pattern.permute.xlu0 0
        %1523 = vperm.xlu0 %1522, %v819
        %v1524 = vpop.permute.xlu0 %1523
        %v1527 = vunpack.c.l.s4 839922192
        %v1528 = vunpack.c.0.s8 %v1527
        %v1529 = vperm.slane %v1524, %v1528
        %1531 = vset.pattern.permute.xlu0 0
        %1532 = vperm.xlu0 %1531, %v820
        %v1533 = vpop.permute.xlu0 %1532
        %v1536 = vunpack.c.l.s4 839922192
        %v1537 = vunpack.c.0.s8 %v1536
        %v1538 = vperm.slane %v1533, %v1537
        %1540 = vset.pattern.permute.xlu0 0
        %1541 = vperm.xlu0 %1540, %v821
        %v1542 = vpop.permute.xlu0 %1541
        %v1545 = vunpack.c.l.s4 839922192
        %v1546 = vunpack.c.0.s8 %v1545
        %v1547 = vperm.slane %v1542, %v1546
        %1549 = vset.pattern.permute.xlu0 0
        %1550 = vperm.xlu0 %1549, %v822
        %v1551 = vpop.permute.xlu0 %1550
        %v1554 = vunpack.c.l.s4 839922192
        %v1555 = vunpack.c.0.s8 %v1554
        %v1556 = vperm.slane %v1551, %v1555
        %1558 = vset.pattern.permute.xlu0 0
        %1559 = vperm.xlu0 %1558, %v823
        %v1560 = vpop.permute.xlu0 %1559
        %v1563 = vunpack.c.l.s4 839922192
        %v1564 = vunpack.c.0.s8 %v1563
        %v1565 = vperm.slane %v1560, %v1564
        %1567 = vset.pattern.permute.xlu0 0
        %1568 = vperm.xlu0 %1567, %v824
        %v1569 = vpop.permute.xlu0 %1568
        %v1572 = vunpack.c.l.s4 839922192
        %v1573 = vunpack.c.0.s8 %v1572
        %v1574 = vperm.slane %v1569, %v1573
        %1576 = vset.pattern.permute.xlu0 0
        %1577 = vperm.xlu0 %1576, %v825
        %v1578 = vpop.permute.xlu0 %1577
        %v1581 = vunpack.c.l.s4 839922192
        %v1582 = vunpack.c.0.s8 %v1581
        %v1583 = vperm.slane %v1578, %v1582
        %1585 = vset.pattern.permute.xlu0 0
        %1586 = vperm.xlu0 %1585, %v826
        %v1587 = vpop.permute.xlu0 %1586
        %v1590 = vunpack.c.l.s4 839922192
        %v1591 = vunpack.c.0.s8 %v1590
        %v1592 = vperm.slane %v1587, %v1591
        %1594 = vset.pattern.permute.xlu0 0
        %1595 = vperm.xlu0 %1594, %v827
        %v1596 = vpop.permute.xlu0 %1595
        %v1599 = vunpack.c.l.s4 839922192
        %v1600 = vunpack.c.0.s8 %v1599
        %v1601 = vperm.slane %v1596, %v1600
        %1603 = vset.pattern.permute.xlu0 0
        %1604 = vperm.xlu0 %1603, %v828
        %v1605 = vpop.permute.xlu0 %1604
        %v1608 = vunpack.c.l.s4 839922192
        %v1609 = vunpack.c.0.s8 %v1608
        %v1610 = vperm.slane %v1605, %v1609
        %1612 = vset.pattern.permute.xlu0 0
        %1613 = vperm.xlu0 %1612, %v829
        %v1614 = vpop.permute.xlu0 %1613
        %v1617 = vunpack.c.l.s4 839922192
        %v1618 = vunpack.c.0.s8 %v1617
        %v1619 = vperm.slane %v1614, %v1618
        %1621 = vset.pattern.permute.xlu0 0
        %1622 = vperm.xlu0 %1621, %v830
        %v1623 = vpop.permute.xlu0 %1622
        %v1626 = vunpack.c.l.s4 839922192
        %v1627 = vunpack.c.0.s8 %v1626
        %v1628 = vperm.slane %v1623, %v1627
        %1630 = vset.pattern.permute.xlu0 0
        %1631 = vperm.xlu0 %1630, %v831
        %v1632 = vpop.permute.xlu0 %1631
        %v1635 = vunpack.c.l.s4 839922192
        %v1636 = vunpack.c.0.s8 %v1635
        %v1637 = vperm.slane %v1632, %v1636
        %1639 = vset.pattern.permute.xlu0 0
        %1640 = vperm.xlu0 %1639, %v832
        %v1641 = vpop.permute.xlu0 %1640
        %v1644 = vunpack.c.l.s4 839922192
        %v1645 = vunpack.c.0.s8 %v1644
        %v1646 = vperm.slane %v1641, %v1645
        %1648 = vset.pattern.permute.xlu0 0
        %1649 = vperm.xlu0 %1648, %v833
        %v1650 = vpop.permute.xlu0 %1649
        %v1653 = vunpack.c.l.s4 839922192
        %v1654 = vunpack.c.0.s8 %v1653
        %v1655 = vperm.slane %v1650, %v1654
        %1657 = vset.pattern.permute.xlu0 0
        %1658 = vperm.xlu0 %1657, %v834
        %v1659 = vpop.permute.xlu0 %1658
        %v1662 = vunpack.c.l.s4 839922192
        %v1663 = vunpack.c.0.s8 %v1662
        %v1664 = vperm.slane %v1659, %v1663
        %1666 = vset.pattern.permute.xlu0 0
        %1667 = vperm.xlu0 %1666, %v835
        %v1668 = vpop.permute.xlu0 %1667
        %v1671 = vunpack.c.l.s4 839922192
        %v1672 = vunpack.c.0.s8 %v1671
        %v1673 = vperm.slane %v1668, %v1672
        %1675 = vset.pattern.permute.xlu0 0
        %1676 = vperm.xlu0 %1675, %v836
        %v1677 = vpop.permute.xlu0 %1676
        %v1680 = vunpack.c.l.s4 839922192
        %v1681 = vunpack.c.0.s8 %v1680
        %v1682 = vperm.slane %v1677, %v1681
        %1684 = vset.pattern.permute.xlu0 0
        %1685 = vperm.xlu0 %1684, %v837
        %v1686 = vpop.permute.xlu0 %1685
        %v1689 = vunpack.c.l.s4 839922192
        %v1690 = vunpack.c.0.s8 %v1689
        %v1691 = vperm.slane %v1686, %v1690
        %1693 = vset.pattern.permute.xlu0 0
        %1694 = vperm.xlu0 %1693, %v838
        %v1695 = vpop.permute.xlu0 %1694
        %v1698 = vunpack.c.l.s4 839922192
        %v1699 = vunpack.c.0.s8 %v1698
        %v1700 = vperm.slane %v1695, %v1699
        %1702 = vset.pattern.permute.xlu0 0
        %1703 = vperm.xlu0 %1702, %v839
        %v1704 = vpop.permute.xlu0 %1703
        %v1707 = vunpack.c.l.s4 839922192
        %v1708 = vunpack.c.0.s8 %v1707
        %v1709 = vperm.slane %v1704, %v1708
        %1711 = vset.pattern.permute.xlu0 0
        %1712 = vperm.xlu0 %1711, %v840
        %v1713 = vpop.permute.xlu0 %1712
        %v1716 = vunpack.c.l.s4 839922192
        %v1717 = vunpack.c.0.s8 %v1716
        %v1718 = vperm.slane %v1713, %v1717
        %1720 = vset.pattern.permute.xlu0 0
        %1721 = vperm.xlu0 %1720, %v841
        %v1722 = vpop.permute.xlu0 %1721
        %v1725 = vunpack.c.l.s4 839922192
        %v1726 = vunpack.c.0.s8 %v1725
        %v1727 = vperm.slane %v1722, %v1726
        %1729 = vset.pattern.permute.xlu0 0
        %1730 = vperm.xlu0 %1729, %v842
        %v1731 = vpop.permute.xlu0 %1730
        %v1734 = vunpack.c.l.s4 839922192
        %v1735 = vunpack.c.0.s8 %v1734
        %v1736 = vperm.slane %v1731, %v1735
        %1738 = vset.pattern.permute.xlu0 0
        %1739 = vperm.xlu0 %1738, %v843
        %v1740 = vpop.permute.xlu0 %1739
        %v1743 = vunpack.c.l.s4 839922192
        %v1744 = vunpack.c.0.s8 %v1743
        %v1745 = vperm.slane %v1740, %v1744
        %v1746 = vunpack.c.l.bf16 %v1425
        %v1747 = vunpack.c.l.bf16 %v1426
        %v1748 = vunpack.c.l.bf16 %v1427
        %v1749 = vunpack.c.l.bf16 %v1428
        %v1750 = vunpack.c.l.bf16 %v1429
        %v1751 = vunpack.c.l.bf16 %v1430
        %v1752 = vunpack.c.l.bf16 %v1431
        %v1753 = vunpack.c.l.bf16 %v1432
        %v1754 = vunpack.c.l.bf16 %v1433
        %v1755 = vunpack.c.l.bf16 %v1434
        %v1756 = vunpack.c.l.bf16 %v1435
        %v1757 = vunpack.c.l.bf16 %v1436
        %v1758 = vunpack.c.l.bf16 %v1437
        %v1759 = vunpack.c.l.bf16 %v1438
        %v1760 = vunpack.c.l.bf16 %v1439
        %v1761 = vunpack.c.l.bf16 %v1440
        %v1762 = vunpack.c.l.bf16 %v1441
        %v1763 = vunpack.c.l.bf16 %v1442
        %v1764 = vunpack.c.l.bf16 %v1443
        %v1765 = vunpack.c.l.bf16 %v1444
        %v1766 = vunpack.c.l.bf16 %v1445
        %v1767 = vunpack.c.l.bf16 %v1446
        %v1768 = vunpack.c.l.bf16 %v1447
        %v1769 = vunpack.c.l.bf16 %v1448
        %v1770 = vunpack.c.l.bf16 %v1449
        %v1771 = vunpack.c.l.bf16 %v1450
        %v1772 = vunpack.c.l.bf16 %v1451
        %v1773 = vunpack.c.l.bf16 %v1452
        %v1774 = vunpack.c.l.bf16 %v1453
        %v1775 = vunpack.c.l.bf16 %v1454
        %v1776 = vunpack.c.l.bf16 %v1455
        %v1777 = vunpack.c.l.bf16 %v1456
        %v1778 = vunpack.c.l.bf16 %v1457
        %v1779 = vunpack.c.l.bf16 %v1466
        %v1780 = vunpack.c.l.bf16 %v1475
        %v1781 = vunpack.c.l.bf16 %v1484
        %v1782 = vunpack.c.l.bf16 %v1493
        %v1783 = vunpack.c.l.bf16 %v1502
        %v1784 = vunpack.c.l.bf16 %v1511
        %v1785 = vunpack.c.l.bf16 %v1520
        %v1786 = vunpack.c.l.bf16 %v1529
        %v1787 = vunpack.c.l.bf16 %v1538
        %v1788 = vunpack.c.l.bf16 %v1547
        %v1789 = vunpack.c.l.bf16 %v1556
        %v1790 = vunpack.c.l.bf16 %v1565
        %v1791 = vunpack.c.l.bf16 %v1574
        %v1792 = vunpack.c.l.bf16 %v1583
        %v1793 = vunpack.c.l.bf16 %v1592
        %v1794 = vunpack.c.l.bf16 %v1601
        %v1795 = vunpack.c.l.bf16 %v1610
        %v1796 = vunpack.c.l.bf16 %v1619
        %v1797 = vunpack.c.l.bf16 %v1628
        %v1798 = vunpack.c.l.bf16 %v1637
        %v1799 = vunpack.c.l.bf16 %v1646
        %v1800 = vunpack.c.l.bf16 %v1655
        %v1801 = vunpack.c.l.bf16 %v1664
        %v1802 = vunpack.c.l.bf16 %v1673
        %v1803 = vunpack.c.l.bf16 %v1682
        %v1804 = vunpack.c.l.bf16 %v1691
        %v1805 = vunpack.c.l.bf16 %v1700
        %v1806 = vunpack.c.l.bf16 %v1709
        %v1807 = vunpack.c.l.bf16 %v1718
        %v1808 = vunpack.c.l.bf16 %v1727
        %v1809 = vunpack.c.l.bf16 %v1736
        %v1810 = vunpack.c.l.bf16 %v1745
        %vm1843 = vcmask 1040384
        %v1844 = vrot.slane %v1779, 7
        %v1845 = vrot.slane %v1780, 7
        %v1846 = vsel %vm1843, %v1844, %v1845
        %v1847 = vrot.slane %v1781, 7
        %v1848 = vsel %vm1843, %v1845, %v1847
        %v1849 = vrot.slane %v1782, 7
        %v1850 = vsel %vm1843, %v1847, %v1849
        %v1851 = vrot.slane %v1783, 7
        %v1852 = vsel %vm1843, %v1849, %v1851
        %v1853 = vrot.slane %v1784, 7
        %v1854 = vsel %vm1843, %v1851, %v1853
        %v1855 = vrot.slane %v1785, 7
        %v1856 = vsel %vm1843, %v1853, %v1855
        %v1857 = vrot.slane %v1786, 7
        %v1858 = vsel %vm1843, %v1855, %v1857
        %v1859 = vrot.slane %v1787, 7
        %v1860 = vsel %vm1843, %v1857, %v1859
        %v1861 = vrot.slane %v1788, 7
        %v1862 = vsel %vm1843, %v1859, %v1861
        %v1863 = vrot.slane %v1789, 7
        %v1864 = vsel %vm1843, %v1861, %v1863
        %v1865 = vrot.slane %v1790, 7
        %v1866 = vsel %vm1843, %v1863, %v1865
        %v1867 = vrot.slane %v1791, 7
        %v1868 = vsel %vm1843, %v1865, %v1867
        %v1869 = vrot.slane %v1792, 7
        %v1870 = vsel %vm1843, %v1867, %v1869
        %v1871 = vrot.slane %v1793, 7
        %v1872 = vsel %vm1843, %v1869, %v1871
        %v1873 = vrot.slane %v1794, 7
        %v1874 = vsel %vm1843, %v1871, %v1873
        %v1875 = vrot.slane %v1795, 7
        %v1876 = vsel %vm1843, %v1873, %v1875
        %v1877 = vrot.slane %v1796, 7
        %v1878 = vsel %vm1843, %v1875, %v1877
        %v1879 = vrot.slane %v1797, 7
        %v1880 = vsel %vm1843, %v1877, %v1879
        %v1881 = vrot.slane %v1798, 7
        %v1882 = vsel %vm1843, %v1879, %v1881
        %v1883 = vrot.slane %v1799, 7
        %v1884 = vsel %vm1843, %v1881, %v1883
        %v1885 = vrot.slane %v1800, 7
        %v1886 = vsel %vm1843, %v1883, %v1885
        %v1887 = vrot.slane %v1801, 7
        %v1888 = vsel %vm1843, %v1885, %v1887
        %v1889 = vrot.slane %v1802, 7
        %v1890 = vsel %vm1843, %v1887, %v1889
        %v1891 = vrot.slane %v1803, 7
        %v1892 = vsel %vm1843, %v1889, %v1891
        %v1893 = vrot.slane %v1804, 7
        %v1894 = vsel %vm1843, %v1891, %v1893
        %v1895 = vrot.slane %v1805, 7
        %v1896 = vsel %vm1843, %v1893, %v1895
        %v1897 = vrot.slane %v1806, 7
        %v1898 = vsel %vm1843, %v1895, %v1897
        %v1899 = vrot.slane %v1807, 7
        %v1900 = vsel %vm1843, %v1897, %v1899
        %v1901 = vrot.slane %v1808, 7
        %v1902 = vsel %vm1843, %v1899, %v1901
        %v1903 = vrot.slane %v1809, 7
        %v1904 = vsel %vm1843, %v1901, %v1903
        %v1905 = vrot.slane %v1810, 7
        %v1906 = vsel %vm1843, %v1903, %v1905
        %v1940 = vmul.f32 %v1746, %v1844
        %v1941 = vmul.f32 %v1747, %v1846
        %v1942 = vmul.f32 %v1748, %v1848
        %v1943 = vmul.f32 %v1749, %v1850
        %v1944 = vmul.f32 %v1750, %v1852
        %v1945 = vmul.f32 %v1751, %v1854
        %v1946 = vmul.f32 %v1752, %v1856
        %v1947 = vmul.f32 %v1753, %v1858
        %v1948 = vmul.f32 %v1754, %v1860
        %v1949 = vmul.f32 %v1755, %v1862
        %v1950 = vmul.f32 %v1756, %v1864
        %v1951 = vmul.f32 %v1757, %v1866
        %v1952 = vmul.f32 %v1758, %v1868
        %v1953 = vmul.f32 %v1759, %v1870
        %v1954 = vmul.f32 %v1760, %v1872
        %v1955 = vmul.f32 %v1761, %v1874
        %v1956 = vmul.f32 %v1762, %v1876
        %v1957 = vmul.f32 %v1763, %v1878
        %v1958 = vmul.f32 %v1764, %v1880
        %v1959 = vmul.f32 %v1765, %v1882
        %v1960 = vmul.f32 %v1766, %v1884
        %v1961 = vmul.f32 %v1767, %v1886
        %v1962 = vmul.f32 %v1768, %v1888
        %v1963 = vmul.f32 %v1769, %v1890
        %v1964 = vmul.f32 %v1770, %v1892
        %v1965 = vmul.f32 %v1771, %v1894
        %v1966 = vmul.f32 %v1772, %v1896
        %v1967 = vmul.f32 %v1773, %v1898
        %v1968 = vmul.f32 %v1774, %v1900
        %v1969 = vmul.f32 %v1775, %v1902
        %v1970 = vmul.f32 %v1776, %v1904
        %v1971 = vmul.f32 %v1777, %v1906
        %v1972 = vmul.f32 %v1778, %v1905
        %v1973 = vpack.c.bf16 %v1940, %v1940
        %v1974 = vpack.c.bf16 %v1941, %v1941
        %v1975 = vpack.c.bf16 %v1942, %v1942
        %v1976 = vpack.c.bf16 %v1943, %v1943
        %v1977 = vpack.c.bf16 %v1944, %v1944
        %v1978 = vpack.c.bf16 %v1945, %v1945
        %v1979 = vpack.c.bf16 %v1946, %v1946
        %v1980 = vpack.c.bf16 %v1947, %v1947
        %v1981 = vpack.c.bf16 %v1948, %v1948
        %v1982 = vpack.c.bf16 %v1949, %v1949
        %v1983 = vpack.c.bf16 %v1950, %v1950
        %v1984 = vpack.c.bf16 %v1951, %v1951
        %v1985 = vpack.c.bf16 %v1952, %v1952
        %v1986 = vpack.c.bf16 %v1953, %v1953
        %v1987 = vpack.c.bf16 %v1954, %v1954
        %v1988 = vpack.c.bf16 %v1955, %v1955
        %v1989 = vpack.c.bf16 %v1956, %v1956
        %v1990 = vpack.c.bf16 %v1957, %v1957
        %v1991 = vpack.c.bf16 %v1958, %v1958
        %v1992 = vpack.c.bf16 %v1959, %v1959
        %v1993 = vpack.c.bf16 %v1960, %v1960
        %v1994 = vpack.c.bf16 %v1961, %v1961
        %v1995 = vpack.c.bf16 %v1962, %v1962
        %v1996 = vpack.c.bf16 %v1963, %v1963
        %v1997 = vpack.c.bf16 %v1964, %v1964
        %v1998 = vpack.c.bf16 %v1965, %v1965
        %v1999 = vpack.c.bf16 %v1966, %v1966
        %v2000 = vpack.c.bf16 %v1967, %v1967
        %v2001 = vpack.c.bf16 %v1968, %v1968
        %v2002 = vpack.c.bf16 %v1969, %v1969
        %v2003 = vpack.c.bf16 %v1970, %v1970
        %v2004 = vpack.c.bf16 %v1971, %v1971
        %v2005 = vpack.c.bf16 %v1972, %v1972
        %v2006 = vld [vmem:[#allocation2 + $0x8] sm:$0x8]
        %v2007 = vld [vmem:[#allocation2 + $0xc] sm:$0xf]
        %v2008 = vld [vmem:[#allocation2 + $0x10] sm:$0xf]
        %v2009 = vld [vmem:[#allocation2 + $0x14] sm:$0xf]
        %v2010 = vld [vmem:[#allocation2 + $0x18] sm:$0xf]
        %v2011 = vld [vmem:[#allocation2 + $0x1c] sm:$0xf]
        %v2012 = vld [vmem:[#allocation2 + $0x20] sm:$0xf]
        %v2013 = vld [vmem:[#allocation2 + $0x24] sm:$0xf]
        %v2014 = vld [vmem:[#allocation2 + $0x28] sm:$0xf]
        %v2015 = vld [vmem:[#allocation2 + $0x2c] sm:$0xf]
        %v2016 = vld [vmem:[#allocation2 + $0x30] sm:$0xf]
        %v2017 = vld [vmem:[#allocation2 + $0x34] sm:$0xf]
        %v2018 = vld [vmem:[#allocation2 + $0x38] sm:$0xf]
        %v2019 = vld [vmem:[#allocation2 + $0x3c] sm:$0xf]
        %v2020 = vld [vmem:[#allocation2 + $0x40] sm:$0xf]
        %v2021 = vld [vmem:[#allocation2 + $0x44] sm:$0xf]
        %v2022 = vld [vmem:[#allocation2 + $0x48] sm:$0xf]
        %v2023 = vld [vmem:[#allocation2 + $0x4c] sm:$0xf]
        %v2024 = vld [vmem:[#allocation2 + $0x50] sm:$0xf]
        %v2025 = vld [vmem:[#allocation2 + $0x54] sm:$0xf]
        %v2026 = vld [vmem:[#allocation2 + $0x58] sm:$0xf]
        %v2027 = vld [vmem:[#allocation2 + $0x5c] sm:$0xf]
        %v2028 = vld [vmem:[#allocation2 + $0x60] sm:$0xf]
        %v2029 = vld [vmem:[#allocation2 + $0x64] sm:$0xf]
        %v2030 = vld [vmem:[#allocation2 + $0x68] sm:$0xf]
        %v2031 = vld [vmem:[#allocation2 + $0x6c] sm:$0xf]
        %v2032 = vld [vmem:[#allocation2 + $0x70] sm:$0xf]
        %v2033 = vld [vmem:[#allocation2 + $0x74] sm:$0xf]
        %v2034 = vld [vmem:[#allocation2 + $0x78] sm:$0xf]
        %v2035 = vld [vmem:[#allocation2 + $0x7c] sm:$0xf]
        %v2036 = vld [vmem:[#allocation2 + $0x80] sm:$0xf]
        %v2037 = vld [vmem:[#allocation2 + $0x84] sm:$0xf]
        %v2038 = vld [vmem:[#allocation2 + $0x88] sm:$0xf]
        %v2039 = vunpack.c.l.bf16 %v2006
        %v2040 = vunpack.c.l.bf16 %v2007
        %v2041 = vunpack.c.l.bf16 %v2008
        %v2042 = vunpack.c.l.bf16 %v2009
        %v2043 = vunpack.c.l.bf16 %v2010
        %v2044 = vunpack.c.l.bf16 %v2011
        %v2045 = vunpack.c.l.bf16 %v2012
        %v2046 = vunpack.c.l.bf16 %v2013
        %v2047 = vunpack.c.l.bf16 %v2014
        %v2048 = vunpack.c.l.bf16 %v2015
        %v2049 = vunpack.c.l.bf16 %v2016
        %v2050 = vunpack.c.l.bf16 %v2017
        %v2051 = vunpack.c.l.bf16 %v2018
        %v2052 = vunpack.c.l.bf16 %v2019
        %v2053 = vunpack.c.l.bf16 %v2020
        %v2054 = vunpack.c.l.bf16 %v2021
        %v2055 = vunpack.c.l.bf16 %v2022
        %v2056 = vunpack.c.l.bf16 %v2023
        %v2057 = vunpack.c.l.bf16 %v2024
        %v2058 = vunpack.c.l.bf16 %v2025
        %v2059 = vunpack.c.l.bf16 %v2026
        %v2060 = vunpack.c.l.bf16 %v2027
        %v2061 = vunpack.c.l.bf16 %v2028
        %v2062 = vunpack.c.l.bf16 %v2029
        %v2063 = vunpack.c.l.bf16 %v2030
        %v2064 = vunpack.c.l.bf16 %v2031
        %v2065 = vunpack.c.l.bf16 %v2032
        %v2066 = vunpack.c.l.bf16 %v2033
        %v2067 = vunpack.c.l.bf16 %v2034
        %v2068 = vunpack.c.l.bf16 %v2035
        %v2069 = vunpack.c.l.bf16 %v2036
        %v2070 = vunpack.c.l.bf16 %v2037
        %v2071 = vunpack.c.l.bf16 %v2038
        %v2072 = vmul.f32 %v2039, %v1263
        %v2073 = vmul.f32 %v2040, %v1265
        %v2074 = vmul.f32 %v2041, %v1267
        %v2075 = vmul.f32 %v2042, %v1269
        %v2076 = vmul.f32 %v2043, %v1271
        %v2077 = vmul.f32 %v2044, %v1273
        %v2078 = vmul.f32 %v2045, %v1275
        %v2079 = vmul.f32 %v2046, %v1277
        %v2080 = vmul.f32 %v2047, %v1279
        %v2081 = vmul.f32 %v2048, %v1281
        %v2082 = vmul.f32 %v2049, %v1283
        %v2083 = vmul.f32 %v2050, %v1285
        %v2084 = vmul.f32 %v2051, %v1287
        %v2085 = vmul.f32 %v2052, %v1289
        %v2086 = vmul.f32 %v2053, %v1291
        %v2087 = vmul.f32 %v2054, %v1293
        %v2088 = vmul.f32 %v2055, %v1295
        %v2089 = vmul.f32 %v2056, %v1297
        %v2090 = vmul.f32 %v2057, %v1299
        %v2091 = vmul.f32 %v2058, %v1301
        %v2092 = vmul.f32 %v2059, %v1303
        %v2093 = vmul.f32 %v2060, %v1305
        %v2094 = vmul.f32 %v2061, %v1307
        %v2095 = vmul.f32 %v2062, %v1309
        %v2096 = vmul.f32 %v2063, %v1311
        %v2097 = vmul.f32 %v2064, %v1313
        %v2098 = vmul.f32 %v2065, %v1315
        %v2099 = vmul.f32 %v2066, %v1317
        %v2100 = vmul.f32 %v2067, %v1319
        %v2101 = vmul.f32 %v2068, %v1321
        %v2102 = vmul.f32 %v2069, %v1323
        %v2103 = vmul.f32 %v2070, %v1325
        %v2104 = vmul.f32 %v2071, %v1324
        %v2105 = vpack.c.bf16 %v2072, %v2072
        %v2106 = vpack.c.bf16 %v2073, %v2073
        %v2107 = vpack.c.bf16 %v2074, %v2074
        %v2108 = vpack.c.bf16 %v2075, %v2075
        %v2109 = vpack.c.bf16 %v2076, %v2076
        %v2110 = vpack.c.bf16 %v2077, %v2077
        %v2111 = vpack.c.bf16 %v2078, %v2078
        %v2112 = vpack.c.bf16 %v2079, %v2079
        %v2113 = vpack.c.bf16 %v2080, %v2080
        %v2114 = vpack.c.bf16 %v2081, %v2081
        %v2115 = vpack.c.bf16 %v2082, %v2082
        %v2116 = vpack.c.bf16 %v2083, %v2083
        %v2117 = vpack.c.bf16 %v2084, %v2084
        %v2118 = vpack.c.bf16 %v2085, %v2085
        %v2119 = vpack.c.bf16 %v2086, %v2086
        %v2120 = vpack.c.bf16 %v2087, %v2087
        %v2121 = vpack.c.bf16 %v2088, %v2088
        %v2122 = vpack.c.bf16 %v2089, %v2089
        %v2123 = vpack.c.bf16 %v2090, %v2090
        %v2124 = vpack.c.bf16 %v2091, %v2091
        %v2125 = vpack.c.bf16 %v2092, %v2092
        %v2126 = vpack.c.bf16 %v2093, %v2093
        %v2127 = vpack.c.bf16 %v2094, %v2094
        %v2128 = vpack.c.bf16 %v2095, %v2095
        %v2129 = vpack.c.bf16 %v2096, %v2096
        %v2130 = vpack.c.bf16 %v2097, %v2097
        %v2131 = vpack.c.bf16 %v2098, %v2098
        %v2132 = vpack.c.bf16 %v2099, %v2099
        %v2133 = vpack.c.bf16 %v2100, %v2100
        %v2134 = vpack.c.bf16 %v2101, %v2101
        %v2135 = vpack.c.bf16 %v2102, %v2102
        %v2136 = vpack.c.bf16 %v2103, %v2103
        %v2137 = vpack.c.bf16 %v2104, %v2104
        %v2138 = vld [vmem:[#allocation2 + $0x8c] sm:$0x1]
        %v2139 = vunpack.c.l.bf16 %v2138
        %v2140 = vmul.f32 %v2040, %v1844
        %v2141 = vmul.f32 %v2041, %v1846
        %v2142 = vmul.f32 %v2042, %v1848
        %v2143 = vmul.f32 %v2043, %v1850
        %v2144 = vmul.f32 %v2044, %v1852
        %v2145 = vmul.f32 %v2045, %v1854
        %v2146 = vmul.f32 %v2046, %v1856
        %v2147 = vmul.f32 %v2047, %v1858
        %v2148 = vmul.f32 %v2048, %v1860
        %v2149 = vmul.f32 %v2049, %v1862
        %v2150 = vmul.f32 %v2050, %v1864
        %v2151 = vmul.f32 %v2051, %v1866
        %v2152 = vmul.f32 %v2052, %v1868
        %v2153 = vmul.f32 %v2053, %v1870
        %v2154 = vmul.f32 %v2054, %v1872
        %v2155 = vmul.f32 %v2055, %v1874
        %v2156 = vmul.f32 %v2056, %v1876
        %v2157 = vmul.f32 %v2057, %v1878
        %v2158 = vmul.f32 %v2058, %v1880
        %v2159 = vmul.f32 %v2059, %v1882
        %v2160 = vmul.f32 %v2060, %v1884
        %v2161 = vmul.f32 %v2061, %v1886
        %v2162 = vmul.f32 %v2062, %v1888
        %v2163 = vmul.f32 %v2063, %v1890
        %v2164 = vmul.f32 %v2064, %v1892
        %v2165 = vmul.f32 %v2065, %v1894
        %v2166 = vmul.f32 %v2066, %v1896
        %v2167 = vmul.f32 %v2067, %v1898
        %v2168 = vmul.f32 %v2068, %v1900
        %v2169 = vmul.f32 %v2069, %v1902
        %v2170 = vmul.f32 %v2070, %v1904
        %v2171 = vmul.f32 %v2071, %v1906
        %v2172 = vmul.f32 %v2139, %v1905
        %v2173 = vpack.c.bf16 %v2140, %v2140
        %v2174 = vpack.c.bf16 %v2141, %v2141
        %v2175 = vpack.c.bf16 %v2142, %v2142
        %v2176 = vpack.c.bf16 %v2143, %v2143
        %v2177 = vpack.c.bf16 %v2144, %v2144
        %v2178 = vpack.c.bf16 %v2145, %v2145
        %v2179 = vpack.c.bf16 %v2146, %v2146
        %v2180 = vpack.c.bf16 %v2147, %v2147
        %v2181 = vpack.c.bf16 %v2148, %v2148
        %v2182 = vpack.c.bf16 %v2149, %v2149
        %v2183 = vpack.c.bf16 %v2150, %v2150
        %v2184 = vpack.c.bf16 %v2151, %v2151
        %v2185 = vpack.c.bf16 %v2152, %v2152
        %v2186 = vpack.c.bf16 %v2153, %v2153
        %v2187 = vpack.c.bf16 %v2154, %v2154
        %v2188 = vpack.c.bf16 %v2155, %v2155
        %v2189 = vpack.c.bf16 %v2156, %v2156
        %v2190 = vpack.c.bf16 %v2157, %v2157
        %v2191 = vpack.c.bf16 %v2158, %v2158
        %v2192 = vpack.c.bf16 %v2159, %v2159
        %v2193 = vpack.c.bf16 %v2160, %v2160
        %v2194 = vpack.c.bf16 %v2161, %v2161
        %v2195 = vpack.c.bf16 %v2162, %v2162
        %v2196 = vpack.c.bf16 %v2163, %v2163
        %v2197 = vpack.c.bf16 %v2164, %v2164
        %v2198 = vpack.c.bf16 %v2165, %v2165
        %v2199 = vpack.c.bf16 %v2166, %v2166
        %v2200 = vpack.c.bf16 %v2167, %v2167
        %v2201 = vpack.c.bf16 %v2168, %v2168
        %v2202 = vpack.c.bf16 %v2169, %v2169
        %v2203 = vpack.c.bf16 %v2170, %v2170
        %v2204 = vpack.c.bf16 %v2171, %v2171
        %v2205 = vpack.c.bf16 %v2172, %v2172
        %v2206 = vld [vmem:[#allocation2 + $0x10] sm:$0x8]
        %v2207 = vld [vmem:[#allocation2 + $0x8c] sm:$0xf]
        %v2208 = vld [vmem:[#allocation2 + $0x90] sm:$0xf]
        %v2209 = vunpack.c.l.bf16 %v2206
        %v2210 = vunpack.c.l.bf16 %v2207
        %v2211 = vunpack.c.l.bf16 %v2208
        %v2212 = vmul.f32 %v2209, %v1263
        %v2213 = vmul.f32 %v2042, %v1265
        %v2214 = vmul.f32 %v2043, %v1267
        %v2215 = vmul.f32 %v2044, %v1269
        %v2216 = vmul.f32 %v2045, %v1271
        %v2217 = vmul.f32 %v2046, %v1273
        %v2218 = vmul.f32 %v2047, %v1275
        %v2219 = vmul.f32 %v2048, %v1277
        %v2220 = vmul.f32 %v2049, %v1279
        %v2221 = vmul.f32 %v2050, %v1281
        %v2222 = vmul.f32 %v2051, %v1283
        %v2223 = vmul.f32 %v2052, %v1285
        %v2224 = vmul.f32 %v2053, %v1287
        %v2225 = vmul.f32 %v2054, %v1289
        %v2226 = vmul.f32 %v2055, %v1291
        %v2227 = vmul.f32 %v2056, %v1293
        %v2228 = vmul.f32 %v2057, %v1295
        %v2229 = vmul.f32 %v2058, %v1297
        %v2230 = vmul.f32 %v2059, %v1299
        %v2231 = vmul.f32 %v2060, %v1301
        %v2232 = vmul.f32 %v2061, %v1303
        %v2233 = vmul.f32 %v2062, %v1305
        %v2234 = vmul.f32 %v2063, %v1307
        %v2235 = vmul.f32 %v2064, %v1309
        %v2236 = vmul.f32 %v2065, %v1311
        %v2237 = vmul.f32 %v2066, %v1313
        %v2238 = vmul.f32 %v2067, %v1315
        %v2239 = vmul.f32 %v2068, %v1317
        %v2240 = vmul.f32 %v2069, %v1319
        %v2241 = vmul.f32 %v2070, %v1321
        %v2242 = vmul.f32 %v2071, %v1323
        %v2243 = vmul.f32 %v2210, %v1325
        %v2244 = vmul.f32 %v2211, %v1324
        %v2245 = vpack.c.bf16 %v2212, %v2212
        %v2246 = vpack.c.bf16 %v2213, %v2213
        %v2247 = vpack.c.bf16 %v2214, %v2214
        %v2248 = vpack.c.bf16 %v2215, %v2215
        %v2249 = vpack.c.bf16 %v2216, %v2216
        %v2250 = vpack.c.bf16 %v2217, %v2217
        %v2251 = vpack.c.bf16 %v2218, %v2218
        %v2252 = vpack.c.bf16 %v2219, %v2219
        %v2253 = vpack.c.bf16 %v2220, %v2220
        %v2254 = vpack.c.bf16 %v2221, %v2221
        %v2255 = vpack.c.bf16 %v2222, %v2222
        %v2256 = vpack.c.bf16 %v2223, %v2223
        %v2257 = vpack.c.bf16 %v2224, %v2224
        %v2258 = vpack.c.bf16 %v2225, %v2225
        %v2259 = vpack.c.bf16 %v2226, %v2226
        %v2260 = vpack.c.bf16 %v2227, %v2227
        %v2261 = vpack.c.bf16 %v2228, %v2228
        %v2262 = vpack.c.bf16 %v2229, %v2229
        %v2263 = vpack.c.bf16 %v2230, %v2230
        %v2264 = vpack.c.bf16 %v2231, %v2231
        %v2265 = vpack.c.bf16 %v2232, %v2232
        %v2266 = vpack.c.bf16 %v2233, %v2233
        %v2267 = vpack.c.bf16 %v2234, %v2234
        %v2268 = vpack.c.bf16 %v2235, %v2235
        %v2269 = vpack.c.bf16 %v2236, %v2236
        %v2270 = vpack.c.bf16 %v2237, %v2237
        %v2271 = vpack.c.bf16 %v2238, %v2238
        %v2272 = vpack.c.bf16 %v2239, %v2239
        %v2273 = vpack.c.bf16 %v2240, %v2240
        %v2274 = vpack.c.bf16 %v2241, %v2241
        %v2275 = vpack.c.bf16 %v2242, %v2242
        %v2276 = vpack.c.bf16 %v2243, %v2243
        %v2277 = vpack.c.bf16 %v2244, %v2244
        %v2278 = vld [vmem:[#allocation2 + $0x14] sm:$0xf]
        %v2279 = vld [vmem:[#allocation2 + $0x18] sm:$0xf]
        %v2280 = vld [vmem:[#allocation2 + $0x1c] sm:$0xf]
        %v2281 = vld [vmem:[#allocation2 + $0x20] sm:$0xf]
        %v2282 = vld [vmem:[#allocation2 + $0x24] sm:$0xf]
        %v2283 = vld [vmem:[#allocation2 + $0x28] sm:$0xf]
        %v2284 = vld [vmem:[#allocation2 + $0x2c] sm:$0xf]
        %v2285 = vld [vmem:[#allocation2 + $0x30] sm:$0xf]
        %v2286 = vld [vmem:[#allocation2 + $0x34] sm:$0xf]
        %v2287 = vld [vmem:[#allocation2 + $0x38] sm:$0xf]
        %v2288 = vld [vmem:[#allocation2 + $0x3c] sm:$0xf]
        %v2289 = vld [vmem:[#allocation2 + $0x40] sm:$0xf]
        %v2290 = vld [vmem:[#allocation2 + $0x44] sm:$0xf]
        %v2291 = vld [vmem:[#allocation2 + $0x48] sm:$0xf]
        %v2292 = vld [vmem:[#allocation2 + $0x4c] sm:$0xf]
        %v2293 = vld [vmem:[#allocation2 + $0x50] sm:$0xf]
        %v2294 = vld [vmem:[#allocation2 + $0x54] sm:$0xf]
        %v2295 = vld [vmem:[#allocation2 + $0x58] sm:$0xf]
        %v2296 = vld [vmem:[#allocation2 + $0x5c] sm:$0xf]
        %v2297 = vld [vmem:[#allocation2 + $0x60] sm:$0xf]
        %v2298 = vld [vmem:[#allocation2 + $0x64] sm:$0xf]
        %v2299 = vld [vmem:[#allocation2 + $0x68] sm:$0xf]
        %v2300 = vld [vmem:[#allocation2 + $0x6c] sm:$0xf]
        %v2301 = vld [vmem:[#allocation2 + $0x70] sm:$0xf]
        %v2302 = vld [vmem:[#allocation2 + $0x74] sm:$0xf]
        %v2303 = vld [vmem:[#allocation2 + $0x78] sm:$0xf]
        %v2304 = vld [vmem:[#allocation2 + $0x7c] sm:$0xf]
        %v2305 = vld [vmem:[#allocation2 + $0x80] sm:$0xf]
        %v2306 = vld [vmem:[#allocation2 + $0x84] sm:$0xf]
        %v2307 = vld [vmem:[#allocation2 + $0x88] sm:$0xf]
        %v2308 = vld [vmem:[#allocation2 + $0x8c] sm:$0xf]
        %v2309 = vld [vmem:[#allocation2 + $0x90] sm:$0xf]
        %v2310 = vld [vmem:[#allocation2 + $0x94] sm:$0x1]
        %v2311 = vunpack.c.l.bf16 %v2278
        %v2312 = vunpack.c.l.bf16 %v2279
        %v2313 = vunpack.c.l.bf16 %v2280
        %v2314 = vunpack.c.l.bf16 %v2281
        %v2315 = vunpack.c.l.bf16 %v2282
        %v2316 = vunpack.c.l.bf16 %v2283
        %v2317 = vunpack.c.l.bf16 %v2284
        %v2318 = vunpack.c.l.bf16 %v2285
        %v2319 = vunpack.c.l.bf16 %v2286
        %v2320 = vunpack.c.l.bf16 %v2287
        %v2321 = vunpack.c.l.bf16 %v2288
        %v2322 = vunpack.c.l.bf16 %v2289
        %v2323 = vunpack.c.l.bf16 %v2290
        %v2324 = vunpack.c.l.bf16 %v2291
        %v2325 = vunpack.c.l.bf16 %v2292
        %v2326 = vunpack.c.l.bf16 %v2293
        %v2327 = vunpack.c.l.bf16 %v2294
        %v2328 = vunpack.c.l.bf16 %v2295
        %v2329 = vunpack.c.l.bf16 %v2296
        %v2330 = vunpack.c.l.bf16 %v2297
        %v2331 = vunpack.c.l.bf16 %v2298
        %v2332 = vunpack.c.l.bf16 %v2299
        %v2333 = vunpack.c.l.bf16 %v2300
        %v2334 = vunpack.c.l.bf16 %v2301
        %v2335 = vunpack.c.l.bf16 %v2302
        %v2336 = vunpack.c.l.bf16 %v2303
        %v2337 = vunpack.c.l.bf16 %v2304
        %v2338 = vunpack.c.l.bf16 %v2305
        %v2339 = vunpack.c.l.bf16 %v2306
        %v2340 = vunpack.c.l.bf16 %v2307
        %v2341 = vunpack.c.l.bf16 %v2308
        %v2342 = vunpack.c.l.bf16 %v2309
        %v2343 = vunpack.c.l.bf16 %v2310
        %v2344 = vmul.f32 %v2311, %v1844
        %v2345 = vmul.f32 %v2312, %v1846
        %v2346 = vmul.f32 %v2313, %v1848
        %v2347 = vmul.f32 %v2314, %v1850
        %v2348 = vmul.f32 %v2315, %v1852
        %v2349 = vmul.f32 %v2316, %v1854
        %v2350 = vmul.f32 %v2317, %v1856
        %v2351 = vmul.f32 %v2318, %v1858
        %v2352 = vmul.f32 %v2319, %v1860
        %v2353 = vmul.f32 %v2320, %v1862
        %v2354 = vmul.f32 %v2321, %v1864
        %v2355 = vmul.f32 %v2322, %v1866
        %v2356 = vmul.f32 %v2323, %v1868
        %v2357 = vmul.f32 %v2324, %v1870
        %v2358 = vmul.f32 %v2325, %v1872
        %v2359 = vmul.f32 %v2326, %v1874
        %v2360 = vmul.f32 %v2327, %v1876
        %v2361 = vmul.f32 %v2328, %v1878
        %v2362 = vmul.f32 %v2329, %v1880
        %v2363 = vmul.f32 %v2330, %v1882
        %v2364 = vmul.f32 %v2331, %v1884
        %v2365 = vmul.f32 %v2332, %v1886
        %v2366 = vmul.f32 %v2333, %v1888
        %v2367 = vmul.f32 %v2334, %v1890
        %v2368 = vmul.f32 %v2335, %v1892
        %v2369 = vmul.f32 %v2336, %v1894
        %v2370 = vmul.f32 %v2337, %v1896
        %v2371 = vmul.f32 %v2338, %v1898
        %v2372 = vmul.f32 %v2339, %v1900
        %v2373 = vmul.f32 %v2340, %v1902
        %v2374 = vmul.f32 %v2341, %v1904
        %v2375 = vmul.f32 %v2342, %v1906
        %v2376 = vmul.f32 %v2343, %v1905
        %v2377 = vpack.c.bf16 %v2344, %v2344
        %v2378 = vpack.c.bf16 %v2345, %v2345
        %v2379 = vpack.c.bf16 %v2346, %v2346
        %v2380 = vpack.c.bf16 %v2347, %v2347
        %v2381 = vpack.c.bf16 %v2348, %v2348
        %v2382 = vpack.c.bf16 %v2349, %v2349
        %v2383 = vpack.c.bf16 %v2350, %v2350
        %v2384 = vpack.c.bf16 %v2351, %v2351
        %v2385 = vpack.c.bf16 %v2352, %v2352
        %v2386 = vpack.c.bf16 %v2353, %v2353
        %v2387 = vpack.c.bf16 %v2354, %v2354
        %v2388 = vpack.c.bf16 %v2355, %v2355
        %v2389 = vpack.c.bf16 %v2356, %v2356
        %v2390 = vpack.c.bf16 %v2357, %v2357
        %v2391 = vpack.c.bf16 %v2358, %v2358
        %v2392 = vpack.c.bf16 %v2359, %v2359
        %v2393 = vpack.c.bf16 %v2360, %v2360
        %v2394 = vpack.c.bf16 %v2361, %v2361
        %v2395 = vpack.c.bf16 %v2362, %v2362
        %v2396 = vpack.c.bf16 %v2363, %v2363
        %v2397 = vpack.c.bf16 %v2364, %v2364
        %v2398 = vpack.c.bf16 %v2365, %v2365
        %v2399 = vpack.c.bf16 %v2366, %v2366
        %v2400 = vpack.c.bf16 %v2367, %v2367
        %v2401 = vpack.c.bf16 %v2368, %v2368
        %v2402 = vpack.c.bf16 %v2369, %v2369
        %v2403 = vpack.c.bf16 %v2370, %v2370
        %v2404 = vpack.c.bf16 %v2371, %v2371
        %v2405 = vpack.c.bf16 %v2372, %v2372
        %v2406 = vpack.c.bf16 %v2373, %v2373
        %v2407 = vpack.c.bf16 %v2374, %v2374
        %v2408 = vpack.c.bf16 %v2375, %v2375
        %v2409 = vpack.c.bf16 %v2376, %v2376
        %v2443 = vunpack.c.l.b16 %v1392
        %v2444 = vunpack.c.l.b16 %v1393
        %v2445 = vunpack.c.l.b16 %v1394
        %v2446 = vunpack.c.l.b16 %v1395
        %v2447 = vunpack.c.l.b16 %v1396
        %v2448 = vunpack.c.l.b16 %v1397
        %v2449 = vunpack.c.l.b16 %v1398
        %v2450 = vunpack.c.l.b16 %v1399
        %v2451 = vunpack.c.l.b16 %v1400
        %v2452 = vunpack.c.l.b16 %v1401
        %v2453 = vunpack.c.l.b16 %v1402
        %v2454 = vunpack.c.l.b16 %v1403
        %v2455 = vunpack.c.l.b16 %v1404
        %v2456 = vunpack.c.l.b16 %v1405
        %v2457 = vunpack.c.l.b16 %v1406
        %v2458 = vunpack.c.l.b16 %v1407
        %v2459 = vunpack.c.l.b16 %v1408
        %v2460 = vunpack.c.l.b16 %v1409
        %v2461 = vunpack.c.l.b16 %v1410
        %v2462 = vunpack.c.l.b16 %v1411
        %v2463 = vunpack.c.l.b16 %v1412
        %v2464 = vunpack.c.l.b16 %v1413
        %v2465 = vunpack.c.l.b16 %v1414
        %v2466 = vunpack.c.l.b16 %v1415
        %v2467 = vunpack.c.l.b16 %v1416
        %v2468 = vunpack.c.l.b16 %v1417
        %v2469 = vunpack.c.l.b16 %v1418
        %v2470 = vunpack.c.l.b16 %v1419
        %v2471 = vunpack.c.l.b16 %v1420
        %v2472 = vunpack.c.l.b16 %v1421
        %v2473 = vunpack.c.l.b16 %v1422
        %v2474 = vunpack.c.l.b16 %v1423
        %v2475 = vunpack.c.l.b16 %v1424
        %v2476 = vpack.c.b16 %v2444, %v2443
        %v2477 = vpack.c.b16 %v2446, %v2445
        %v2478 = vpack.c.b16 %v2448, %v2447
        %v2479 = vpack.c.b16 %v2450, %v2449
        %v2480 = vpack.c.b16 %v2452, %v2451
        %v2481 = vpack.c.b16 %v2454, %v2453
        %v2482 = vpack.c.b16 %v2456, %v2455
        %v2483 = vpack.c.b16 %v2458, %v2457
        %v2484 = vpack.c.b16 %v2460, %v2459
        %v2485 = vpack.c.b16 %v2462, %v2461
        %v2486 = vpack.c.b16 %v2464, %v2463
        %v2487 = vpack.c.b16 %v2466, %v2465
        %v2488 = vpack.c.b16 %v2468, %v2467
        %v2489 = vpack.c.b16 %v2470, %v2469
        %v2490 = vpack.c.b16 %v2472, %v2471
        %v2491 = vpack.c.b16 %v2474, %v2473
        %v2492 = vpack.c.b16 %v2475, %v2475
        %v2525 = vunpack.c.l.b16 %v845
        %v2526 = vunpack.c.l.b16 %v846
        %v2527 = vunpack.c.l.b16 %v847
        %v2528 = vunpack.c.l.b16 %v848
        %v2529 = vunpack.c.l.b16 %v849
        %v2530 = vunpack.c.l.b16 %v850
        %v2531 = vunpack.c.l.b16 %v851
        %v2532 = vunpack.c.l.b16 %v852
        %v2533 = vunpack.c.l.b16 %v853
        %v2534 = vunpack.c.l.b16 %v854
        %v2535 = vunpack.c.l.b16 %v855
        %v2536 = vunpack.c.l.b16 %v856
        %v2537 = vunpack.c.l.b16 %v857
        %v2538 = vunpack.c.l.b16 %v858
        %v2539 = vunpack.c.l.b16 %v859
        %v2540 = vunpack.c.l.b16 %v860
        %v2541 = vunpack.c.l.b16 %v861
        %v2542 = vunpack.c.l.b16 %v862
        %v2543 = vunpack.c.l.b16 %v863
        %v2544 = vunpack.c.l.b16 %v864
        %v2545 = vunpack.c.l.b16 %v865
        %v2546 = vunpack.c.l.b16 %v866
        %v2547 = vunpack.c.l.b16 %v867
        %v2548 = vunpack.c.l.b16 %v868
        %v2549 = vunpack.c.l.b16 %v869
        %v2550 = vunpack.c.l.b16 %v870
        %v2551 = vunpack.c.l.b16 %v871
        %v2552 = vunpack.c.l.b16 %v872
        %v2553 = vunpack.c.l.b16 %v873
        %v2554 = vunpack.c.l.b16 %v874
        %v2555 = vunpack.c.l.b16 %v875
        %v2556 = vunpack.c.l.b16 %v876
        %v2557 = vpack.c.b16 %v2526, %v2525
        %v2558 = vpack.c.b16 %v2528, %v2527
        %v2559 = vpack.c.b16 %v2530, %v2529
        %v2560 = vpack.c.b16 %v2532, %v2531
        %v2561 = vpack.c.b16 %v2534, %v2533
        %v2562 = vpack.c.b16 %v2536, %v2535
        %v2563 = vpack.c.b16 %v2538, %v2537
        %v2564 = vpack.c.b16 %v2540, %v2539
        %v2565 = vpack.c.b16 %v2542, %v2541
        %v2566 = vpack.c.b16 %v2544, %v2543
        %v2567 = vpack.c.b16 %v2546, %v2545
        %v2568 = vpack.c.b16 %v2548, %v2547
        %v2569 = vpack.c.b16 %v2550, %v2549
        %v2570 = vpack.c.b16 %v2552, %v2551
        %v2571 = vpack.c.b16 %v2554, %v2553
        %v2572 = vpack.c.b16 %v2556, %v2555
        %vm2573 = vsmask.f32 3328
        %v2575 = vshrl.u32 %v2557, 16
        %v2577 = vrot.slane %v2575, 4
        %v2578 = vshll.u32 %v2557, 16
        %v2580 = vrot.slane %v2578, 5
        %v2581 = vor.u32 %v2577, %v2580
        %v2583 = vshrl.u32 %v2558, 16
        %v2585 = vrot.slane %v2583, 4
        %v2586 = vshll.u32 %v2558, 16
        %v2588 = vrot.slane %v2586, 5
        %v2589 = vor.u32 %v2585, %v2588
        %v2590 = vsel %vm2573, %v2581, %v2589
        %v2592 = vshrl.u32 %v2559, 16
        %v2594 = vrot.slane %v2592, 4
        %v2595 = vshll.u32 %v2559, 16
        %v2597 = vrot.slane %v2595, 5
        %v2598 = vor.u32 %v2594, %v2597
        %v2599 = vsel %vm2573, %v2589, %v2598
        %v2601 = vshrl.u32 %v2560, 16
        %v2603 = vrot.slane %v2601, 4
        %v2604 = vshll.u32 %v2560, 16
        %v2606 = vrot.slane %v2604, 5
        %v2607 = vor.u32 %v2603, %v2606
        %v2608 = vsel %vm2573, %v2598, %v2607
        %v2610 = vshrl.u32 %v2561, 16
        %v2612 = vrot.slane %v2610, 4
        %v2613 = vshll.u32 %v2561, 16
        %v2615 = vrot.slane %v2613, 5
        %v2616 = vor.u32 %v2612, %v2615
        %v2617 = vsel %vm2573, %v2607, %v2616
        %v2619 = vshrl.u32 %v2562, 16
        %v2621 = vrot.slane %v2619, 4
        %v2622 = vshll.u32 %v2562, 16
        %v2624 = vrot.slane %v2622, 5
        %v2625 = vor.u32 %v2621, %v2624
        %v2626 = vsel %vm2573, %v2616, %v2625
        %v2628 = vshrl.u32 %v2563, 16
        %v2630 = vrot.slane %v2628, 4
        %v2631 = vshll.u32 %v2563, 16
        %v2633 = vrot.slane %v2631, 5
        %v2634 = vor.u32 %v2630, %v2633
        %v2635 = vsel %vm2573, %v2625, %v2634
        %v2637 = vshrl.u32 %v2564, 16
        %v2639 = vrot.slane %v2637, 4
        %v2640 = vshll.u32 %v2564, 16
        %v2642 = vrot.slane %v2640, 5
        %v2643 = vor.u32 %v2639, %v2642
        %v2644 = vsel %vm2573, %v2634, %v2643
        %v2646 = vshrl.u32 %v2565, 16
        %v2648 = vrot.slane %v2646, 4
        %v2649 = vshll.u32 %v2565, 16
        %v2651 = vrot.slane %v2649, 5
        %v2652 = vor.u32 %v2648, %v2651
        %v2653 = vsel %vm2573, %v2643, %v2652
        %v2655 = vshrl.u32 %v2566, 16
        %v2657 = vrot.slane %v2655, 4
        %v2658 = vshll.u32 %v2566, 16
        %v2660 = vrot.slane %v2658, 5
        %v2661 = vor.u32 %v2657, %v2660
        %v2662 = vsel %vm2573, %v2652, %v2661
        %v2664 = vshrl.u32 %v2567, 16
        %v2666 = vrot.slane %v2664, 4
        %v2667 = vshll.u32 %v2567, 16
        %v2669 = vrot.slane %v2667, 5
        %v2670 = vor.u32 %v2666, %v2669
        %v2671 = vsel %vm2573, %v2661, %v2670
        %v2673 = vshrl.u32 %v2568, 16
        %v2675 = vrot.slane %v2673, 4
        %v2676 = vshll.u32 %v2568, 16
        %v2678 = vrot.slane %v2676, 5
        %v2679 = vor.u32 %v2675, %v2678
        %v2680 = vsel %vm2573, %v2670, %v2679
        %v2682 = vshrl.u32 %v2569, 16
        %v2684 = vrot.slane %v2682, 4
        %v2685 = vshll.u32 %v2569, 16
        %v2687 = vrot.slane %v2685, 5
        %v2688 = vor.u32 %v2684, %v2687
        %v2689 = vsel %vm2573, %v2679, %v2688
        %v2691 = vshrl.u32 %v2570, 16
        %v2693 = vrot.slane %v2691, 4
        %v2694 = vshll.u32 %v2570, 16
        %v2696 = vrot.slane %v2694, 5
        %v2697 = vor.u32 %v2693, %v2696
        %v2698 = vsel %vm2573, %v2688, %v2697
        %v2700 = vshrl.u32 %v2571, 16
        %v2702 = vrot.slane %v2700, 4
        %v2703 = vshll.u32 %v2571, 16
        %v2705 = vrot.slane %v2703, 5
        %v2706 = vor.u32 %v2702, %v2705
        %v2707 = vsel %vm2573, %v2697, %v2706
        %v2709 = vshrl.u32 %v2572, 16
        %v2711 = vrot.slane %v2709, 4
        %v2712 = vshll.u32 %v2572, 16
        %v2714 = vrot.slane %v2712, 5
        %v2715 = vor.u32 %v2711, %v2714
        %v2716 = vsel %vm2573, %v2706, %v2715
        %v2750 = vunpack.c.l.b16 %v1973
        %v2751 = vunpack.c.l.b16 %v1974
        %v2752 = vunpack.c.l.b16 %v1975
        %v2753 = vunpack.c.l.b16 %v1976
        %v2754 = vunpack.c.l.b16 %v1977
        %v2755 = vunpack.c.l.b16 %v1978
        %v2756 = vunpack.c.l.b16 %v1979
        %v2757 = vunpack.c.l.b16 %v1980
        %v2758 = vunpack.c.l.b16 %v1981
        %v2759 = vunpack.c.l.b16 %v1982
        %v2760 = vunpack.c.l.b16 %v1983
        %v2761 = vunpack.c.l.b16 %v1984
        %v2762 = vunpack.c.l.b16 %v1985
        %v2763 = vunpack.c.l.b16 %v1986
        %v2764 = vunpack.c.l.b16 %v1987
        %v2765 = vunpack.c.l.b16 %v1988
        %v2766 = vunpack.c.l.b16 %v1989
        %v2767 = vunpack.c.l.b16 %v1990
        %v2768 = vunpack.c.l.b16 %v1991
        %v2769 = vunpack.c.l.b16 %v1992
        %v2770 = vunpack.c.l.b16 %v1993
        %v2771 = vunpack.c.l.b16 %v1994
        %v2772 = vunpack.c.l.b16 %v1995
        %v2773 = vunpack.c.l.b16 %v1996
        %v2774 = vunpack.c.l.b16 %v1997
        %v2775 = vunpack.c.l.b16 %v1998
        %v2776 = vunpack.c.l.b16 %v1999
        %v2777 = vunpack.c.l.b16 %v2000
        %v2778 = vunpack.c.l.b16 %v2001
        %v2779 = vunpack.c.l.b16 %v2002
        %v2780 = vunpack.c.l.b16 %v2003
        %v2781 = vunpack.c.l.b16 %v2004
        %v2782 = vunpack.c.l.b16 %v2005
        %v2783 = vpack.c.b16 %v2751, %v2750
        %v2784 = vpack.c.b16 %v2753, %v2752
        %v2785 = vpack.c.b16 %v2755, %v2754
        %v2786 = vpack.c.b16 %v2757, %v2756
        %v2787 = vpack.c.b16 %v2759, %v2758
        %v2788 = vpack.c.b16 %v2761, %v2760
        %v2789 = vpack.c.b16 %v2763, %v2762
        %v2790 = vpack.c.b16 %v2765, %v2764
        %v2791 = vpack.c.b16 %v2767, %v2766
        %v2792 = vpack.c.b16 %v2769, %v2768
        %v2793 = vpack.c.b16 %v2771, %v2770
        %v2794 = vpack.c.b16 %v2773, %v2772
        %v2795 = vpack.c.b16 %v2775, %v2774
        %v2796 = vpack.c.b16 %v2777, %v2776
        %v2797 = vpack.c.b16 %v2779, %v2778
        %v2798 = vpack.c.b16 %v2781, %v2780
        %v2799 = vpack.c.b16 %v2782, %v2782
        %vm2800 = vcmask 1042432
        %v2801 = vrot.slane %v2783, 5
        %v2802 = vrot.slane %v2784, 5
        %v2803 = vsel %vm2800, %v2801, %v2802
        %v2804 = vrot.slane %v2785, 5
        %v2805 = vsel %vm2800, %v2802, %v2804
        %v2806 = vrot.slane %v2786, 5
        %v2807 = vsel %vm2800, %v2804, %v2806
        %v2808 = vrot.slane %v2787, 5
        %v2809 = vsel %vm2800, %v2806, %v2808
        %v2810 = vrot.slane %v2788, 5
        %v2811 = vsel %vm2800, %v2808, %v2810
        %v2812 = vrot.slane %v2789, 5
        %v2813 = vsel %vm2800, %v2810, %v2812
        %v2814 = vrot.slane %v2790, 5
        %v2815 = vsel %vm2800, %v2812, %v2814
        %v2816 = vrot.slane %v2791, 5
        %v2817 = vsel %vm2800, %v2814, %v2816
        %v2818 = vrot.slane %v2792, 5
        %v2819 = vsel %vm2800, %v2816, %v2818
        %v2820 = vrot.slane %v2793, 5
        %v2821 = vsel %vm2800, %v2818, %v2820
        %v2822 = vrot.slane %v2794, 5
        %v2823 = vsel %vm2800, %v2820, %v2822
        %v2824 = vrot.slane %v2795, 5
        %v2825 = vsel %vm2800, %v2822, %v2824
        %v2826 = vrot.slane %v2796, 5
        %v2827 = vsel %vm2800, %v2824, %v2826
        %v2828 = vrot.slane %v2797, 5
        %v2829 = vsel %vm2800, %v2826, %v2828
        %v2830 = vrot.slane %v2798, 5
        %v2831 = vsel %vm2800, %v2828, %v2830
        %v2832 = vrot.slane %v2799, 5
        %v2833 = vsel %vm2800, %v2830, %v2832
        %v2867 = vunpack.c.l.b16 %v2105
        %v2868 = vunpack.c.l.b16 %v2106
        %v2869 = vunpack.c.l.b16 %v2107
        %v2870 = vunpack.c.l.b16 %v2108
        %v2871 = vunpack.c.l.b16 %v2109
        %v2872 = vunpack.c.l.b16 %v2110
        %v2873 = vunpack.c.l.b16 %v2111
        %v2874 = vunpack.c.l.b16 %v2112
        %v2875 = vunpack.c.l.b16 %v2113
        %v2876 = vunpack.c.l.b16 %v2114
        %v2877 = vunpack.c.l.b16 %v2115
        %v2878 = vunpack.c.l.b16 %v2116
        %v2879 = vunpack.c.l.b16 %v2117
        %v2880 = vunpack.c.l.b16 %v2118
        %v2881 = vunpack.c.l.b16 %v2119
        %v2882 = vunpack.c.l.b16 %v2120
        %v2883 = vunpack.c.l.b16 %v2121
        %v2884 = vunpack.c.l.b16 %v2122
        %v2885 = vunpack.c.l.b16 %v2123
        %v2886 = vunpack.c.l.b16 %v2124
        %v2887 = vunpack.c.l.b16 %v2125
        %v2888 = vunpack.c.l.b16 %v2126
        %v2889 = vunpack.c.l.b16 %v2127
        %v2890 = vunpack.c.l.b16 %v2128
        %v2891 = vunpack.c.l.b16 %v2129
        %v2892 = vunpack.c.l.b16 %v2130
        %v2893 = vunpack.c.l.b16 %v2131
        %v2894 = vunpack.c.l.b16 %v2132
        %v2895 = vunpack.c.l.b16 %v2133
        %v2896 = vunpack.c.l.b16 %v2134
        %v2897 = vunpack.c.l.b16 %v2135
        %v2898 = vunpack.c.l.b16 %v2136
        %v2899 = vunpack.c.l.b16 %v2137
        %v2900 = vpack.c.b16 %v2868, %v2867
        %v2901 = vpack.c.b16 %v2870, %v2869
        %v2902 = vpack.c.b16 %v2872, %v2871
        %v2903 = vpack.c.b16 %v2874, %v2873
        %v2904 = vpack.c.b16 %v2876, %v2875
        %v2905 = vpack.c.b16 %v2878, %v2877
        %v2906 = vpack.c.b16 %v2880, %v2879
        %v2907 = vpack.c.b16 %v2882, %v2881
        %v2908 = vpack.c.b16 %v2884, %v2883
        %v2909 = vpack.c.b16 %v2886, %v2885
        %v2910 = vpack.c.b16 %v2888, %v2887
        %v2911 = vpack.c.b16 %v2890, %v2889
        %v2912 = vpack.c.b16 %v2892, %v2891
        %v2913 = vpack.c.b16 %v2894, %v2893
        %v2914 = vpack.c.b16 %v2896, %v2895
        %v2915 = vpack.c.b16 %v2898, %v2897
        %v2916 = vpack.c.b16 %v2899, %v2899
        %v2949 = vunpack.c.l.b16 %v2007
        %v2950 = vunpack.c.l.b16 %v2008
        %v2951 = vunpack.c.l.b16 %v2009
        %v2952 = vunpack.c.l.b16 %v2010
        %v2953 = vunpack.c.l.b16 %v2011
        %v2954 = vunpack.c.l.b16 %v2012
        %v2955 = vunpack.c.l.b16 %v2013
        %v2956 = vunpack.c.l.b16 %v2014
        %v2957 = vunpack.c.l.b16 %v2015
        %v2958 = vunpack.c.l.b16 %v2016
        %v2959 = vunpack.c.l.b16 %v2017
        %v2960 = vunpack.c.l.b16 %v2018
        %v2961 = vunpack.c.l.b16 %v2019
        %v2962 = vunpack.c.l.b16 %v2020
        %v2963 = vunpack.c.l.b16 %v2021
        %v2964 = vunpack.c.l.b16 %v2022
        %v2965 = vunpack.c.l.b16 %v2023
        %v2966 = vunpack.c.l.b16 %v2024
        %v2967 = vunpack.c.l.b16 %v2025
        %v2968 = vunpack.c.l.b16 %v2026
        %v2969 = vunpack.c.l.b16 %v2027
        %v2970 = vunpack.c.l.b16 %v2028
        %v2971 = vunpack.c.l.b16 %v2029
        %v2972 = vunpack.c.l.b16 %v2030
        %v2973 = vunpack.c.l.b16 %v2031
        %v2974 = vunpack.c.l.b16 %v2032
        %v2975 = vunpack.c.l.b16 %v2033
        %v2976 = vunpack.c.l.b16 %v2034
        %v2977 = vunpack.c.l.b16 %v2035
        %v2978 = vunpack.c.l.b16 %v2036
        %v2979 = vunpack.c.l.b16 %v2037
        %v2980 = vunpack.c.l.b16 %v2038
        %v2981 = vpack.c.b16 %v2950, %v2949
        %v2982 = vpack.c.b16 %v2952, %v2951
        %v2983 = vpack.c.b16 %v2954, %v2953
        %v2984 = vpack.c.b16 %v2956, %v2955
        %v2985 = vpack.c.b16 %v2958, %v2957
        %v2986 = vpack.c.b16 %v2960, %v2959
        %v2987 = vpack.c.b16 %v2962, %v2961
        %v2988 = vpack.c.b16 %v2964, %v2963
        %v2989 = vpack.c.b16 %v2966, %v2965
        %v2990 = vpack.c.b16 %v2968, %v2967
        %v2991 = vpack.c.b16 %v2970, %v2969
        %v2992 = vpack.c.b16 %v2972, %v2971
        %v2993 = vpack.c.b16 %v2974, %v2973
        %v2994 = vpack.c.b16 %v2976, %v2975
        %v2995 = vpack.c.b16 %v2978, %v2977
        %v2996 = vpack.c.b16 %v2980, %v2979
        %v2998 = vshrl.u32 %v2981, 16
        %v3000 = vrot.slane %v2998, 4
        %v3001 = vshll.u32 %v2981, 16
        %v3003 = vrot.slane %v3001, 5
        %v3004 = vor.u32 %v3000, %v3003
        %v3006 = vshrl.u32 %v2982, 16
        %v3008 = vrot.slane %v3006, 4
        %v3009 = vshll.u32 %v2982, 16
        %v3011 = vrot.slane %v3009, 5
        %v3012 = vor.u32 %v3008, %v3011
        %v3013 = vsel %vm2573, %v3004, %v3012
        %v3015 = vshrl.u32 %v2983, 16
        %v3017 = vrot.slane %v3015, 4
        %v3018 = vshll.u32 %v2983, 16
        %v3020 = vrot.slane %v3018, 5
        %v3021 = vor.u32 %v3017, %v3020
        %v3022 = vsel %vm2573, %v3012, %v3021
        %v3024 = vshrl.u32 %v2984, 16
        %v3026 = vrot.slane %v3024, 4
        %v3027 = vshll.u32 %v2984, 16
        %v3029 = vrot.slane %v3027, 5
        %v3030 = vor.u32 %v3026, %v3029
        %v3031 = vsel %vm2573, %v3021, %v3030
        %v3033 = vshrl.u32 %v2985, 16
        %v3035 = vrot.slane %v3033, 4
        %v3036 = vshll.u32 %v2985, 16
        %v3038 = vrot.slane %v3036, 5
        %v3039 = vor.u32 %v3035, %v3038
        %v3040 = vsel %vm2573, %v3030, %v3039
        %v3042 = vshrl.u32 %v2986, 16
        %v3044 = vrot.slane %v3042, 4
        %v3045 = vshll.u32 %v2986, 16
        %v3047 = vrot.slane %v3045, 5
        %v3048 = vor.u32 %v3044, %v3047
        %v3049 = vsel %vm2573, %v3039, %v3048
        %v3051 = vshrl.u32 %v2987, 16
        %v3053 = vrot.slane %v3051, 4
        %v3054 = vshll.u32 %v2987, 16
        %v3056 = vrot.slane %v3054, 5
        %v3057 = vor.u32 %v3053, %v3056
        %v3058 = vsel %vm2573, %v3048, %v3057
        %v3060 = vshrl.u32 %v2988, 16
        %v3062 = vrot.slane %v3060, 4
        %v3063 = vshll.u32 %v2988, 16
        %v3065 = vrot.slane %v3063, 5
        %v3066 = vor.u32 %v3062, %v3065
        %v3067 = vsel %vm2573, %v3057, %v3066
        %v3069 = vshrl.u32 %v2989, 16
        %v3071 = vrot.slane %v3069, 4
        %v3072 = vshll.u32 %v2989, 16
        %v3074 = vrot.slane %v3072, 5
        %v3075 = vor.u32 %v3071, %v3074
        %v3076 = vsel %vm2573, %v3066, %v3075
        %v3078 = vshrl.u32 %v2990, 16
        %v3080 = vrot.slane %v3078, 4
        %v3081 = vshll.u32 %v2990, 16
        %v3083 = vrot.slane %v3081, 5
        %v3084 = vor.u32 %v3080, %v3083
        %v3085 = vsel %vm2573, %v3075, %v3084
        %v3087 = vshrl.u32 %v2991, 16
        %v3089 = vrot.slane %v3087, 4
        %v3090 = vshll.u32 %v2991, 16
        %v3092 = vrot.slane %v3090, 5
        %v3093 = vor.u32 %v3089, %v3092
        %v3094 = vsel %vm2573, %v3084, %v3093
        %v3096 = vshrl.u32 %v2992, 16
        %v3098 = vrot.slane %v3096, 4
        %v3099 = vshll.u32 %v2992, 16
        %v3101 = vrot.slane %v3099, 5
        %v3102 = vor.u32 %v3098, %v3101
        %v3103 = vsel %vm2573, %v3093, %v3102
        %v3105 = vshrl.u32 %v2993, 16
        %v3107 = vrot.slane %v3105, 4
        %v3108 = vshll.u32 %v2993, 16
        %v3110 = vrot.slane %v3108, 5
        %v3111 = vor.u32 %v3107, %v3110
        %v3112 = vsel %vm2573, %v3102, %v3111
        %v3114 = vshrl.u32 %v2994, 16
        %v3116 = vrot.slane %v3114, 4
        %v3117 = vshll.u32 %v2994, 16
        %v3119 = vrot.slane %v3117, 5
        %v3120 = vor.u32 %v3116, %v3119
        %v3121 = vsel %vm2573, %v3111, %v3120
        %v3123 = vshrl.u32 %v2995, 16
        %v3125 = vrot.slane %v3123, 4
        %v3126 = vshll.u32 %v2995, 16
        %v3128 = vrot.slane %v3126, 5
        %v3129 = vor.u32 %v3125, %v3128
        %v3130 = vsel %vm2573, %v3120, %v3129
        %v3132 = vshrl.u32 %v2996, 16
        %v3134 = vrot.slane %v3132, 4
        %v3135 = vshll.u32 %v2996, 16
        %v3137 = vrot.slane %v3135, 5
        %v3138 = vor.u32 %v3134, %v3137
        %v3139 = vsel %vm2573, %v3129, %v3138
        %v3173 = vunpack.c.l.b16 %v2173
        %v3174 = vunpack.c.l.b16 %v2174
        %v3175 = vunpack.c.l.b16 %v2175
        %v3176 = vunpack.c.l.b16 %v2176
        %v3177 = vunpack.c.l.b16 %v2177
        %v3178 = vunpack.c.l.b16 %v2178
        %v3179 = vunpack.c.l.b16 %v2179
        %v3180 = vunpack.c.l.b16 %v2180
        %v3181 = vunpack.c.l.b16 %v2181
        %v3182 = vunpack.c.l.b16 %v2182
        %v3183 = vunpack.c.l.b16 %v2183
        %v3184 = vunpack.c.l.b16 %v2184
        %v3185 = vunpack.c.l.b16 %v2185
        %v3186 = vunpack.c.l.b16 %v2186
        %v3187 = vunpack.c.l.b16 %v2187
        %v3188 = vunpack.c.l.b16 %v2188
        %v3189 = vunpack.c.l.b16 %v2189
        %v3190 = vunpack.c.l.b16 %v2190
        %v3191 = vunpack.c.l.b16 %v2191
        %v3192 = vunpack.c.l.b16 %v2192
        %v3193 = vunpack.c.l.b16 %v2193
        %v3194 = vunpack.c.l.b16 %v2194
        %v3195 = vunpack.c.l.b16 %v2195
        %v3196 = vunpack.c.l.b16 %v2196
        %v3197 = vunpack.c.l.b16 %v2197
        %v3198 = vunpack.c.l.b16 %v2198
        %v3199 = vunpack.c.l.b16 %v2199
        %v3200 = vunpack.c.l.b16 %v2200
        %v3201 = vunpack.c.l.b16 %v2201
        %v3202 = vunpack.c.l.b16 %v2202
        %v3203 = vunpack.c.l.b16 %v2203
        %v3204 = vunpack.c.l.b16 %v2204
        %v3205 = vunpack.c.l.b16 %v2205
        %v3206 = vpack.c.b16 %v3174, %v3173
        %v3207 = vpack.c.b16 %v3176, %v3175
        %v3208 = vpack.c.b16 %v3178, %v3177
        %v3209 = vpack.c.b16 %v3180, %v3179
        %v3210 = vpack.c.b16 %v3182, %v3181
        %v3211 = vpack.c.b16 %v3184, %v3183
        %v3212 = vpack.c.b16 %v3186, %v3185
        %v3213 = vpack.c.b16 %v3188, %v3187
        %v3214 = vpack.c.b16 %v3190, %v3189
        %v3215 = vpack.c.b16 %v3192, %v3191
        %v3216 = vpack.c.b16 %v3194, %v3193
        %v3217 = vpack.c.b16 %v3196, %v3195
        %v3218 = vpack.c.b16 %v3198, %v3197
        %v3219 = vpack.c.b16 %v3200, %v3199
        %v3220 = vpack.c.b16 %v3202, %v3201
        %v3221 = vpack.c.b16 %v3204, %v3203
        %v3222 = vpack.c.b16 %v3205, %v3205
        %v3223 = vrot.slane %v3206, 5
        %v3224 = vrot.slane %v3207, 5
        %v3225 = vsel %vm2800, %v3223, %v3224
        %v3226 = vrot.slane %v3208, 5
        %v3227 = vsel %vm2800, %v3224, %v3226
        %v3228 = vrot.slane %v3209, 5
        %v3229 = vsel %vm2800, %v3226, %v3228
        %v3230 = vrot.slane %v3210, 5
        %v3231 = vsel %vm2800, %v3228, %v3230
        %v3232 = vrot.slane %v3211, 5
        %v3233 = vsel %vm2800, %v3230, %v3232
        %v3234 = vrot.slane %v3212, 5
        %v3235 = vsel %vm2800, %v3232, %v3234
        %v3236 = vrot.slane %v3213, 5
        %v3237 = vsel %vm2800, %v3234, %v3236
        %v3238 = vrot.slane %v3214, 5
        %v3239 = vsel %vm2800, %v3236, %v3238
        %v3240 = vrot.slane %v3215, 5
        %v3241 = vsel %vm2800, %v3238, %v3240
        %v3242 = vrot.slane %v3216, 5
        %v3243 = vsel %vm2800, %v3240, %v3242
        %v3244 = vrot.slane %v3217, 5
        %v3245 = vsel %vm2800, %v3242, %v3244
        %v3246 = vrot.slane %v3218, 5
        %v3247 = vsel %vm2800, %v3244, %v3246
        %v3248 = vrot.slane %v3219, 5
        %v3249 = vsel %vm2800, %v3246, %v3248
        %v3250 = vrot.slane %v3220, 5
        %v3251 = vsel %vm2800, %v3248, %v3250
        %v3252 = vrot.slane %v3221, 5
        %v3253 = vsel %vm2800, %v3250, %v3252
        %v3254 = vrot.slane %v3222, 5
        %v3255 = vsel %vm2800, %v3252, %v3254
        %v3289 = vunpack.c.l.b16 %v2245
        %v3290 = vunpack.c.l.b16 %v2246
        %v3291 = vunpack.c.l.b16 %v2247
        %v3292 = vunpack.c.l.b16 %v2248
        %v3293 = vunpack.c.l.b16 %v2249
        %v3294 = vunpack.c.l.b16 %v2250
        %v3295 = vunpack.c.l.b16 %v2251
        %v3296 = vunpack.c.l.b16 %v2252
        %v3297 = vunpack.c.l.b16 %v2253
        %v3298 = vunpack.c.l.b16 %v2254
        %v3299 = vunpack.c.l.b16 %v2255
        %v3300 = vunpack.c.l.b16 %v2256
        %v3301 = vunpack.c.l.b16 %v2257
        %v3302 = vunpack.c.l.b16 %v2258
        %v3303 = vunpack.c.l.b16 %v2259
        %v3304 = vunpack.c.l.b16 %v2260
        %v3305 = vunpack.c.l.b16 %v2261
        %v3306 = vunpack.c.l.b16 %v2262
        %v3307 = vunpack.c.l.b16 %v2263
        %v3308 = vunpack.c.l.b16 %v2264
        %v3309 = vunpack.c.l.b16 %v2265
        %v3310 = vunpack.c.l.b16 %v2266
        %v3311 = vunpack.c.l.b16 %v2267
        %v3312 = vunpack.c.l.b16 %v2268
        %v3313 = vunpack.c.l.b16 %v2269
        %v3314 = vunpack.c.l.b16 %v2270
        %v3315 = vunpack.c.l.b16 %v2271
        %v3316 = vunpack.c.l.b16 %v2272
        %v3317 = vunpack.c.l.b16 %v2273
        %v3318 = vunpack.c.l.b16 %v2274
        %v3319 = vunpack.c.l.b16 %v2275
        %v3320 = vunpack.c.l.b16 %v2276
        %v3321 = vunpack.c.l.b16 %v2277
        %v3322 = vpack.c.b16 %v3290, %v3289
        %v3323 = vpack.c.b16 %v3292, %v3291
        %v3324 = vpack.c.b16 %v3294, %v3293
        %v3325 = vpack.c.b16 %v3296, %v3295
        %v3326 = vpack.c.b16 %v3298, %v3297
        %v3327 = vpack.c.b16 %v3300, %v3299
        %v3328 = vpack.c.b16 %v3302, %v3301
        %v3329 = vpack.c.b16 %v3304, %v3303
        %v3330 = vpack.c.b16 %v3306, %v3305
        %v3331 = vpack.c.b16 %v3308, %v3307
        %v3332 = vpack.c.b16 %v3310, %v3309
        %v3333 = vpack.c.b16 %v3312, %v3311
        %v3334 = vpack.c.b16 %v3314, %v3313
        %v3335 = vpack.c.b16 %v3316, %v3315
        %v3336 = vpack.c.b16 %v3318, %v3317
        %v3337 = vpack.c.b16 %v3320, %v3319
        %v3338 = vpack.c.b16 %v3321, %v3321
        %v3341 = vunpack.c.l.b16 %v2207
        %v3342 = vunpack.c.l.b16 %v2208
        %v3343 = vpack.c.b16 %v3342, %v3341
        %v3345 = vshrl.u32 %v3343, 16
        %v3347 = vrot.slane %v3345, 4
        %v3348 = vshll.u32 %v3343, 16
        %v3350 = vrot.slane %v3348, 5
        %v3351 = vor.u32 %v3347, %v3350
        %v3352 = vsel %vm2573, %v3138, %v3351
        %v3386 = vunpack.c.l.b16 %v2377
        %v3387 = vunpack.c.l.b16 %v2378
        %v3388 = vunpack.c.l.b16 %v2379
        %v3389 = vunpack.c.l.b16 %v2380
        %v3390 = vunpack.c.l.b16 %v2381
        %v3391 = vunpack.c.l.b16 %v2382
        %v3392 = vunpack.c.l.b16 %v2383
        %v3393 = vunpack.c.l.b16 %v2384
        %v3394 = vunpack.c.l.b16 %v2385
        %v3395 = vunpack.c.l.b16 %v2386
        %v3396 = vunpack.c.l.b16 %v2387
        %v3397 = vunpack.c.l.b16 %v2388
        %v3398 = vunpack.c.l.b16 %v2389
        %v3399 = vunpack.c.l.b16 %v2390
        %v3400 = vunpack.c.l.b16 %v2391
        %v3401 = vunpack.c.l.b16 %v2392
        %v3402 = vunpack.c.l.b16 %v2393
        %v3403 = vunpack.c.l.b16 %v2394
        %v3404 = vunpack.c.l.b16 %v2395
        %v3405 = vunpack.c.l.b16 %v2396
        %v3406 = vunpack.c.l.b16 %v2397
        %v3407 = vunpack.c.l.b16 %v2398
        %v3408 = vunpack.c.l.b16 %v2399
        %v3409 = vunpack.c.l.b16 %v2400
        %v3410 = vunpack.c.l.b16 %v2401
        %v3411 = vunpack.c.l.b16 %v2402
        %v3412 = vunpack.c.l.b16 %v2403
        %v3413 = vunpack.c.l.b16 %v2404
        %v3414 = vunpack.c.l.b16 %v2405
        %v3415 = vunpack.c.l.b16 %v2406
        %v3416 = vunpack.c.l.b16 %v2407
        %v3417 = vunpack.c.l.b16 %v2408
        %v3418 = vunpack.c.l.b16 %v2409
        %v3419 = vpack.c.b16 %v3387, %v3386
        %v3420 = vpack.c.b16 %v3389, %v3388
        %v3421 = vpack.c.b16 %v3391, %v3390
        %v3422 = vpack.c.b16 %v3393, %v3392
        %v3423 = vpack.c.b16 %v3395, %v3394
        %v3424 = vpack.c.b16 %v3397, %v3396
        %v3425 = vpack.c.b16 %v3399, %v3398
        %v3426 = vpack.c.b16 %v3401, %v3400
        %v3427 = vpack.c.b16 %v3403, %v3402
        %v3428 = vpack.c.b16 %v3405, %v3404
        %v3429 = vpack.c.b16 %v3407, %v3406
        %v3430 = vpack.c.b16 %v3409, %v3408
        %v3431 = vpack.c.b16 %v3411, %v3410
        %v3432 = vpack.c.b16 %v3413, %v3412
        %v3433 = vpack.c.b16 %v3415, %v3414
        %v3434 = vpack.c.b16 %v3417, %v3416
        %v3435 = vpack.c.b16 %v3418, %v3418
        %v3436 = vrot.slane %v3419, 5
        %v3437 = vrot.slane %v3420, 5
        %v3438 = vsel %vm2800, %v3436, %v3437
        %v3439 = vrot.slane %v3421, 5
        %v3440 = vsel %vm2800, %v3437, %v3439
        %v3441 = vrot.slane %v3422, 5
        %v3442 = vsel %vm2800, %v3439, %v3441
        %v3443 = vrot.slane %v3423, 5
        %v3444 = vsel %vm2800, %v3441, %v3443
        %v3445 = vrot.slane %v3424, 5
        %v3446 = vsel %vm2800, %v3443, %v3445
        %v3447 = vrot.slane %v3425, 5
        %v3448 = vsel %vm2800, %v3445, %v3447
        %v3449 = vrot.slane %v3426, 5
        %v3450 = vsel %vm2800, %v3447, %v3449
        %v3451 = vrot.slane %v3427, 5
        %v3452 = vsel %vm2800, %v3449, %v3451
        %v3453 = vrot.slane %v3428, 5
        %v3454 = vsel %vm2800, %v3451, %v3453
        %v3455 = vrot.slane %v3429, 5
        %v3456 = vsel %vm2800, %v3453, %v3455
        %v3457 = vrot.slane %v3430, 5
        %v3458 = vsel %vm2800, %v3455, %v3457
        %v3459 = vrot.slane %v3431, 5
        %v3460 = vsel %vm2800, %v3457, %v3459
        %v3461 = vrot.slane %v3432, 5
        %v3462 = vsel %vm2800, %v3459, %v3461
        %v3463 = vrot.slane %v3433, 5
        %v3464 = vsel %vm2800, %v3461, %v3463
        %v3465 = vrot.slane %v3434, 5
        %v3466 = vsel %vm2800, %v3463, %v3465
        %v3467 = vrot.slane %v3435, 5
        %v3468 = vsel %vm2800, %v3465, %v3467
        %v3469 = vld [vmem:[#allocation3] sm:$0xf]
        %v3470 = vld [vmem:[#allocation3 + $0x4] sm:$0xf]
        %v3471 = vld [vmem:[#allocation3 + $0x8] sm:$0xf]
        %v3472 = vld [vmem:[#allocation3 + $0xc] sm:$0xf]
        %v3473 = vld [vmem:[#allocation3 + $0x10] sm:$0xf]
        %v3474 = vld [vmem:[#allocation3 + $0x14] sm:$0xf]
        %v3475 = vld [vmem:[#allocation3 + $0x18] sm:$0xf]
        %v3476 = vld [vmem:[#allocation3 + $0x1c] sm:$0xf]
        %v3477 = vld [vmem:[#allocation3 + $0x20] sm:$0xf]
        %v3478 = vld [vmem:[#allocation3 + $0x24] sm:$0xf]
        %v3479 = vld [vmem:[#allocation3 + $0x28] sm:$0xf]
        %v3480 = vld [vmem:[#allocation3 + $0x2c] sm:$0xf]
        %v3481 = vld [vmem:[#allocation3 + $0x30] sm:$0xf]
        %v3482 = vld [vmem:[#allocation3 + $0x34] sm:$0xf]
        %v3483 = vld [vmem:[#allocation3 + $0x38] sm:$0xf]
        %v3484 = vld [vmem:[#allocation3 + $0x3c] sm:$0xf]
        %v3485 = vld [vmem:[#allocation3 + $0x40] sm:$0xf]
        %v3486 = vld [vmem:[#allocation3 + $0x44] sm:$0xf]
        %v3487 = vld [vmem:[#allocation3 + $0x48] sm:$0xf]
        %v3488 = vld [vmem:[#allocation3 + $0x4c] sm:$0xf]
        %v3489 = vld [vmem:[#allocation3 + $0x50] sm:$0xf]
        %v3490 = vld [vmem:[#allocation3 + $0x54] sm:$0xf]
        %v3491 = vld [vmem:[#allocation3 + $0x58] sm:$0xf]
        %v3492 = vld [vmem:[#allocation3 + $0x5c] sm:$0xf]
        %v3493 = vld [vmem:[#allocation3 + $0x60] sm:$0xf]
        %v3494 = vld [vmem:[#allocation3 + $0x64] sm:$0xf]
        %v3495 = vld [vmem:[#allocation3 + $0x68] sm:$0xf]
        %v3496 = vld [vmem:[#allocation3 + $0x6c] sm:$0xf]
        %v3497 = vld [vmem:[#allocation3 + $0x70] sm:$0xf]
        %v3498 = vld [vmem:[#allocation3 + $0x74] sm:$0xf]
        %v3499 = vld [vmem:[#allocation3 + $0x78] sm:$0xf]
        %v3500 = vld [vmem:[#allocation3 + $0x7c] sm:$0xf]
        %v3501 = vld [vmem:[#allocation3 + $0x80] sm:$0xf]
        %v3502 = vld [vmem:[#allocation3 + $0x84] sm:$0xf]
        %v3503 = vld [vmem:[#allocation3 + $0x88] sm:$0xf]
        %v3504 = vld [vmem:[#allocation3 + $0x8c] sm:$0xf]
        %v3505 = vld [vmem:[#allocation3 + $0x90] sm:$0xf]
        %v3506 = vld [vmem:[#allocation3 + $0x94] sm:$0xf]
        %v3507 = vld [vmem:[#allocation3 + $0x98] sm:$0xf]
        %v3508 = vld [vmem:[#allocation3 + $0x9c] sm:$0xf]
        %v3509 = vld [vmem:[#allocation3 + $0xa0] sm:$0xf]
        %v3510 = vld [vmem:[#allocation3 + $0xa4] sm:$0xf]
        %v3511 = vld [vmem:[#allocation3 + $0xa8] sm:$0xf]
        %v3512 = vld [vmem:[#allocation3 + $0xac] sm:$0xf]
        %v3513 = vld [vmem:[#allocation3 + $0xb0] sm:$0xf]
        %v3514 = vld [vmem:[#allocation3 + $0xb4] sm:$0xf]
        %v3515 = vld [vmem:[#allocation3 + $0xb8] sm:$0xf]
        %v3516 = vld [vmem:[#allocation3 + $0xbc] sm:$0xf]
        %v3517 = vld [vmem:[#allocation3 + $0xc0] sm:$0xf]
        %v3518 = vld [vmem:[#allocation3 + $0xc4] sm:$0xf]
        %v3519 = vld [vmem:[#allocation3 + $0xc8] sm:$0xf]
        %v3520 = vld [vmem:[#allocation3 + $0xcc] sm:$0xf]
        %v3521 = vld [vmem:[#allocation3 + $0xd0] sm:$0xf]
        %v3522 = vld [vmem:[#allocation3 + $0xd4] sm:$0xf]
        %v3523 = vld [vmem:[#allocation3 + $0xd8] sm:$0xf]
        %v3524 = vld [vmem:[#allocation3 + $0xdc] sm:$0xf]
        %v3525 = vld [vmem:[#allocation3 + $0xe0] sm:$0xf]
        %v3526 = vld [vmem:[#allocation3 + $0xe4] sm:$0xf]
        %v3527 = vld [vmem:[#allocation3 + $0xe8] sm:$0xf]
        %v3528 = vld [vmem:[#allocation3 + $0xec] sm:$0xf]
        %v3529 = vld [vmem:[#allocation3 + $0xf0] sm:$0xf]
        %v3530 = vld [vmem:[#allocation3 + $0xf4] sm:$0xf]
        %v3531 = vld [vmem:[#allocation3 + $0xf8] sm:$0xf]
        %v3532 = vld [vmem:[#allocation3 + $0xfc] sm:$0xf]
        %v3533 = vld [vmem:[#allocation3 + $0x100] sm:$0xf]
        %v3534 = vld [vmem:[#allocation3 + $0x104] sm:$0xf]
        %v3535 = vld [vmem:[#allocation3 + $0x108] sm:$0xf]
        %v3536 = vld [vmem:[#allocation3 + $0x10c] sm:$0xf]
        %v3537 = vld [vmem:[#allocation3 + $0x110] sm:$0xf]
        %v3538 = vld [vmem:[#allocation3 + $0x114] sm:$0xf]
        %v3539 = vld [vmem:[#allocation3 + $0x118] sm:$0xf]
        %v3540 = vld [vmem:[#allocation3 + $0x11c] sm:$0xf]
        %v3541 = vld [vmem:[#allocation3 + $0x120] sm:$0xf]
        %v3542 = vld [vmem:[#allocation3 + $0x124] sm:$0xf]
        %v3543 = vld [vmem:[#allocation3 + $0x128] sm:$0xf]
        %v3544 = vld [vmem:[#allocation3 + $0x12c] sm:$0xf]
        %v3545 = vld [vmem:[#allocation3 + $0x130] sm:$0xf]
        %v3546 = vld [vmem:[#allocation3 + $0x134] sm:$0xf]
        %v3547 = vld [vmem:[#allocation3 + $0x138] sm:$0xf]
        %v3548 = vld [vmem:[#allocation3 + $0x13c] sm:$0xf]
        %v3549 = vld [vmem:[#allocation3 + $0x140] sm:$0xf]
        %v3550 = vld [vmem:[#allocation3 + $0x144] sm:$0xf]
        %v3551 = vld [vmem:[#allocation3 + $0x148] sm:$0xf]
        %v3552 = vld [vmem:[#allocation3 + $0x14c] sm:$0xf]
        %v3553 = vld [vmem:[#allocation3 + $0x150] sm:$0xf]
        %v3554 = vld [vmem:[#allocation3 + $0x154] sm:$0xf]
        %v3555 = vld [vmem:[#allocation3 + $0x158] sm:$0xf]
        %v3556 = vld [vmem:[#allocation3 + $0x15c] sm:$0xf]
        %v3557 = vld [vmem:[#allocation3 + $0x160] sm:$0xf]
        %v3558 = vld [vmem:[#allocation3 + $0x164] sm:$0xf]
        %v3559 = vld [vmem:[#allocation3 + $0x168] sm:$0xf]
        %v3560 = vld [vmem:[#allocation3 + $0x16c] sm:$0xf]
        %v3561 = vld [vmem:[#allocation3 + $0x170] sm:$0xf]
        %v3562 = vld [vmem:[#allocation3 + $0x174] sm:$0xf]
        %v3563 = vld [vmem:[#allocation3 + $0x178] sm:$0xf]
        %v3564 = vld [vmem:[#allocation3 + $0x17c] sm:$0xf]
        %v3565 = vld [vmem:[#allocation3 + $0x180] sm:$0xf]
        %v3566 = vld [vmem:[#allocation3 + $0x184] sm:$0xf]
        %v3567 = vld [vmem:[#allocation3 + $0x188] sm:$0xf]
        %v3568 = vld [vmem:[#allocation3 + $0x18c] sm:$0xf]
        %v3569 = vld [vmem:[#allocation3 + $0x190] sm:$0xf]
        %v3570 = vld [vmem:[#allocation3 + $0x194] sm:$0xf]
        %v3571 = vld [vmem:[#allocation3 + $0x198] sm:$0xf]
        %v3572 = vld [vmem:[#allocation3 + $0x19c] sm:$0xf]
        %v3573 = vld [vmem:[#allocation3 + $0x1a0] sm:$0xf]
        %v3574 = vld [vmem:[#allocation3 + $0x1a4] sm:$0xf]
        %v3575 = vld [vmem:[#allocation3 + $0x1a8] sm:$0xf]
        %v3576 = vld [vmem:[#allocation3 + $0x1ac] sm:$0xf]
        %v3577 = vld [vmem:[#allocation3 + $0x1b0] sm:$0xf]
        %v3578 = vld [vmem:[#allocation3 + $0x1b4] sm:$0xf]
        %v3579 = vld [vmem:[#allocation3 + $0x1b8] sm:$0xf]
        %v3580 = vld [vmem:[#allocation3 + $0x1bc] sm:$0xf]
        %v3581 = vld [vmem:[#allocation3 + $0x1c0] sm:$0xf]
        %v3582 = vld [vmem:[#allocation3 + $0x1c4] sm:$0xf]
        %v3583 = vld [vmem:[#allocation3 + $0x1c8] sm:$0xf]
        %v3584 = vld [vmem:[#allocation3 + $0x1cc] sm:$0xf]
        %v3585 = vld [vmem:[#allocation3 + $0x1d0] sm:$0xf]
        %v3586 = vld [vmem:[#allocation3 + $0x1d4] sm:$0xf]
        %v3587 = vld [vmem:[#allocation3 + $0x1d8] sm:$0xf]
        %v3588 = vld [vmem:[#allocation3 + $0x1dc] sm:$0xf]
        %v3589 = vld [vmem:[#allocation3 + $0x1e0] sm:$0xf]
        %v3590 = vld [vmem:[#allocation3 + $0x1e4] sm:$0xf]
        %v3591 = vld [vmem:[#allocation3 + $0x1e8] sm:$0xf]
        %v3592 = vld [vmem:[#allocation3 + $0x1ec] sm:$0xf]
        %v3593 = vld [vmem:[#allocation3 + $0x1f0] sm:$0xf]
        %v3594 = vld [vmem:[#allocation3 + $0x1f4] sm:$0xf]
        %v3595 = vld [vmem:[#allocation3 + $0x1f8] sm:$0xf]
        %v3596 = vld [vmem:[#allocation3 + $0x1fc] sm:$0xf]
        %v3597 = vld [vmem:[#allocation3 + $0x200] sm:$0xf]
        %v3598 = vld [vmem:[#allocation3 + $0x204] sm:$0xf]
        %v3599 = vld [vmem:[#allocation3 + $0x208] sm:$0xf]
        %v3600 = vld [vmem:[#allocation3 + $0x20c] sm:$0xf]
        %v3601 = vld [vmem:[#allocation3 + $0x210] sm:$0xf]
        %v3602 = vld [vmem:[#allocation3 + $0x214] sm:$0xf]
        %v3603 = vld [vmem:[#allocation3 + $0x218] sm:$0xf]
        %v3604 = vld [vmem:[#allocation3 + $0x21c] sm:$0xf]
        %v3605 = vld [vmem:[#allocation3 + $0x220] sm:$0xf]
        %v3606 = vld [vmem:[#allocation3 + $0x224] sm:$0xf]
        %v3607 = vld [vmem:[#allocation3 + $0x228] sm:$0xf]
        %v3608 = vld [vmem:[#allocation3 + $0x22c] sm:$0xf]
        %v3609 = vld [vmem:[#allocation3 + $0x230] sm:$0xf]
        %v3610 = vld [vmem:[#allocation3 + $0x234] sm:$0xf]
        %v3611 = vld [vmem:[#allocation3 + $0x238] sm:$0xf]
        %v3612 = vld [vmem:[#allocation3 + $0x23c] sm:$0xf]
        %v3613 = vld [vmem:[%s4] sm:$0x1]
        %v3615 = vperm.slane %v3613, 0
        %vm3617 = vsmask.f32 4352
        %v3619 = vshrl.u32 %v2476, 16
        %v3621 = vrot.slane %v3619, 3
        %v3622 = vshll.u32 %v2476, 16
        %v3624 = vrot.slane %v3622, 4
        %v3625 = vor.u32 %v3621, %v3624
        %v3627 = vshrl.u32 %v2477, 16
        %v3629 = vrot.slane %v3627, 3
        %v3630 = vshll.u32 %v2477, 16
        %v3632 = vrot.slane %v3630, 4
        %v3633 = vor.u32 %v3629, %v3632
        %v3634 = vsel %vm3617, %v3625, %v3633
        %v3636 = vshrl.u32 %v2581, 16
        %v3638 = vrot.slane %v3636, 3
        %v3639 = vshll.u32 %v2581, 16
        %v3641 = vrot.slane %v3639, 4
        %v3642 = vor.u32 %v3638, %v3641
        %v3644 = vshrl.u32 %v2590, 16
        %v3646 = vrot.slane %v3644, 3
        %v3647 = vshll.u32 %v2590, 16
        %v3649 = vrot.slane %v3647, 4
        %v3650 = vor.u32 %v3646, %v3649
        %v3651 = vsel %vm3617, %v3642, %v3650
        %v3653 = vshrl.u32 %v2801, 16
        %v3655 = vrot.slane %v3653, 3
        %v3656 = vshll.u32 %v2801, 16
        %v3658 = vrot.slane %v3656, 4
        %v3659 = vor.u32 %v3655, %v3658
        %v3661 = vshrl.u32 %v2803, 16
        %v3663 = vrot.slane %v3661, 3
        %v3664 = vshll.u32 %v2803, 16
        %v3666 = vrot.slane %v3664, 4
        %v3667 = vor.u32 %v3663, %v3666
        %v3668 = vsel %vm3617, %v3659, %v3667
        %v3670 = vshrl.u32 %v2900, 16
        %v3672 = vrot.slane %v3670, 3
        %v3673 = vshll.u32 %v2900, 16
        %v3675 = vrot.slane %v3673, 4
        %v3676 = vor.u32 %v3672, %v3675
        %v3678 = vshrl.u32 %v2901, 16
        %v3680 = vrot.slane %v3678, 3
        %v3681 = vshll.u32 %v2901, 16
        %v3683 = vrot.slane %v3681, 4
        %v3684 = vor.u32 %v3680, %v3683
        %v3685 = vsel %vm3617, %v3676, %v3684
        %v3687 = vshrl.u32 %v3004, 16
        %v3689 = vrot.slane %v3687, 3
        %v3690 = vshll.u32 %v3004, 16
        %v3692 = vrot.slane %v3690, 4
        %v3693 = vor.u32 %v3689, %v3692
        %v3695 = vshrl.u32 %v3013, 16
        %v3697 = vrot.slane %v3695, 3
        %v3698 = vshll.u32 %v3013, 16
        %v3700 = vrot.slane %v3698, 4
        %v3701 = vor.u32 %v3697, %v3700
        %v3702 = vsel %vm3617, %v3693, %v3701
        %v3704 = vshrl.u32 %v3223, 16
        %v3706 = vrot.slane %v3704, 3
        %v3707 = vshll.u32 %v3223, 16
        %v3709 = vrot.slane %v3707, 4
        %v3710 = vor.u32 %v3706, %v3709
        %v3712 = vshrl.u32 %v3225, 16
        %v3714 = vrot.slane %v3712, 3
        %v3715 = vshll.u32 %v3225, 16
        %v3717 = vrot.slane %v3715, 4
        %v3718 = vor.u32 %v3714, %v3717
        %v3719 = vsel %vm3617, %v3710, %v3718
        %v3721 = vshrl.u32 %v3322, 16
        %v3723 = vrot.slane %v3721, 3
        %v3724 = vshll.u32 %v3322, 16
        %v3726 = vrot.slane %v3724, 4
        %v3727 = vor.u32 %v3723, %v3726
        %v3729 = vshrl.u32 %v3323, 16
        %v3731 = vrot.slane %v3729, 3
        %v3732 = vshll.u32 %v3323, 16
        %v3734 = vrot.slane %v3732, 4
        %v3735 = vor.u32 %v3731, %v3734
        %v3736 = vsel %vm3617, %v3727, %v3735
        %v3738 = vshrl.u32 %v3012, 16
        %v3740 = vrot.slane %v3738, 3
        %v3741 = vshll.u32 %v3012, 16
        %v3743 = vrot.slane %v3741, 4
        %v3744 = vor.u32 %v3740, %v3743
        %v3746 = vshrl.u32 %v3022, 16
        %v3748 = vrot.slane %v3746, 3
        %v3749 = vshll.u32 %v3022, 16
        %v3751 = vrot.slane %v3749, 4
        %v3752 = vor.u32 %v3748, %v3751
        %v3753 = vsel %vm3617, %v3744, %v3752
        %v3755 = vshrl.u32 %v3436, 16
        %v3757 = vrot.slane %v3755, 3
        %v3758 = vshll.u32 %v3436, 16
        %v3760 = vrot.slane %v3758, 4
        %v3761 = vor.u32 %v3757, %v3760
        %v3763 = vshrl.u32 %v3438, 16
        %v3765 = vrot.slane %v3763, 3
        %v3766 = vshll.u32 %v3438, 16
        %v3768 = vrot.slane %v3766, 4
        %v3769 = vor.u32 %v3765, %v3768
        %v3770 = vsel %vm3617, %v3761, %v3769
        %v3772 = vshrl.u32 %v2478, 16
        %v3774 = vrot.slane %v3772, 3
        %v3775 = vshll.u32 %v2478, 16
        %v3777 = vrot.slane %v3775, 4
        %v3778 = vor.u32 %v3774, %v3777
        %v3779 = vsel %vm3617, %v3633, %v3778
        %v3781 = vshrl.u32 %v2599, 16
        %v3783 = vrot.slane %v3781, 3
        %v3784 = vshll.u32 %v2599, 16
        %v3786 = vrot.slane %v3784, 4
        %v3787 = vor.u32 %v3783, %v3786
        %v3788 = vsel %vm3617, %v3650, %v3787
        %v3790 = vshrl.u32 %v2805, 16
        %v3792 = vrot.slane %v3790, 3
        %v3793 = vshll.u32 %v2805, 16
        %v3795 = vrot.slane %v3793, 4
        %v3796 = vor.u32 %v3792, %v3795
        %v3797 = vsel %vm3617, %v3667, %v3796
        %v3799 = vshrl.u32 %v2902, 16
        %v3801 = vrot.slane %v3799, 3
        %v3802 = vshll.u32 %v2902, 16
        %v3804 = vrot.slane %v3802, 4
        %v3805 = vor.u32 %v3801, %v3804
        %v3806 = vsel %vm3617, %v3684, %v3805
        %v3807 = vsel %vm3617, %v3701, %v3752
        %v3809 = vshrl.u32 %v3227, 16
        %v3811 = vrot.slane %v3809, 3
        %v3812 = vshll.u32 %v3227, 16
        %v3814 = vrot.slane %v3812, 4
        %v3815 = vor.u32 %v3811, %v3814
        %v3816 = vsel %vm3617, %v3718, %v3815
        %v3818 = vshrl.u32 %v3324, 16
        %v3820 = vrot.slane %v3818, 3
        %v3821 = vshll.u32 %v3324, 16
        %v3823 = vrot.slane %v3821, 4
        %v3824 = vor.u32 %v3820, %v3823
        %v3825 = vsel %vm3617, %v3735, %v3824
        %v3827 = vshrl.u32 %v3031, 16
        %v3829 = vrot.slane %v3827, 3
        %v3830 = vshll.u32 %v3031, 16
        %v3832 = vrot.slane %v3830, 4
        %v3833 = vor.u32 %v3829, %v3832
        %v3834 = vsel %vm3617, %v3752, %v3833
        %v3836 = vshrl.u32 %v3440, 16
        %v3838 = vrot.slane %v3836, 3
        %v3839 = vshll.u32 %v3440, 16
        %v3841 = vrot.slane %v3839, 4
        %v3842 = vor.u32 %v3838, %v3841
        %v3843 = vsel %vm3617, %v3769, %v3842
        %v3845 = vshrl.u32 %v2479, 16
        %v3847 = vrot.slane %v3845, 3
        %v3848 = vshll.u32 %v2479, 16
        %v3850 = vrot.slane %v3848, 4
        %v3851 = vor.u32 %v3847, %v3850
        %v3852 = vsel %vm3617, %v3778, %v3851
        %v3854 = vshrl.u32 %v2608, 16
        %v3856 = vrot.slane %v3854, 3
        %v3857 = vshll.u32 %v2608, 16
        %v3859 = vrot.slane %v3857, 4
        %v3860 = vor.u32 %v3856, %v3859
        %v3861 = vsel %vm3617, %v3787, %v3860
        %v3863 = vshrl.u32 %v2807, 16
        %v3865 = vrot.slane %v3863, 3
        %v3866 = vshll.u32 %v2807, 16
        %v3868 = vrot.slane %v3866, 4
        %v3869 = vor.u32 %v3865, %v3868
        %v3870 = vsel %vm3617, %v3796, %v3869
        %v3872 = vshrl.u32 %v2903, 16
        %v3874 = vrot.slane %v3872, 3
        %v3875 = vshll.u32 %v2903, 16
        %v3877 = vrot.slane %v3875, 4
        %v3878 = vor.u32 %v3874, %v3877
        %v3879 = vsel %vm3617, %v3805, %v3878
        %v3881 = vshrl.u32 %v3229, 16
        %v3883 = vrot.slane %v3881, 3
        %v3884 = vshll.u32 %v3229, 16
        %v3886 = vrot.slane %v3884, 4
        %v3887 = vor.u32 %v3883, %v3886
        %v3888 = vsel %vm3617, %v3815, %v3887
        %v3890 = vshrl.u32 %v3325, 16
        %v3892 = vrot.slane %v3890, 3
        %v3893 = vshll.u32 %v3325, 16
        %v3895 = vrot.slane %v3893, 4
        %v3896 = vor.u32 %v3892, %v3895
        %v3897 = vsel %vm3617, %v3824, %v3896
        %v3899 = vshrl.u32 %v3040, 16
        %v3901 = vrot.slane %v3899, 3
        %v3902 = vshll.u32 %v3040, 16
        %v3904 = vrot.slane %v3902, 4
        %v3905 = vor.u32 %v3901, %v3904
        %v3906 = vsel %vm3617, %v3833, %v3905
        %v3908 = vshrl.u32 %v3442, 16
        %v3910 = vrot.slane %v3908, 3
        %v3911 = vshll.u32 %v3442, 16
        %v3913 = vrot.slane %v3911, 4
        %v3914 = vor.u32 %v3910, %v3913
        %v3915 = vsel %vm3617, %v3842, %v3914
        %v3917 = vshrl.u32 %v2480, 16
        %v3919 = vrot.slane %v3917, 3
        %v3920 = vshll.u32 %v2480, 16
        %v3922 = vrot.slane %v3920, 4
        %v3923 = vor.u32 %v3919, %v3922
        %v3924 = vsel %vm3617, %v3851, %v3923
        %v3926 = vshrl.u32 %v2617, 16
        %v3928 = vrot.slane %v3926, 3
        %v3929 = vshll.u32 %v2617, 16
        %v3931 = vrot.slane %v3929, 4
        %v3932 = vor.u32 %v3928, %v3931
        %v3933 = vsel %vm3617, %v3860, %v3932
        %v3935 = vshrl.u32 %v2809, 16
        %v3937 = vrot.slane %v3935, 3
        %v3938 = vshll.u32 %v2809, 16
        %v3940 = vrot.slane %v3938, 4
        %v3941 = vor.u32 %v3937, %v3940
        %v3942 = vsel %vm3617, %v3869, %v3941
        %v3944 = vshrl.u32 %v2904, 16
        %v3946 = vrot.slane %v3944, 3
        %v3947 = vshll.u32 %v2904, 16
        %v3949 = vrot.slane %v3947, 4
        %v3950 = vor.u32 %v3946, %v3949
        %v3951 = vsel %vm3617, %v3878, %v3950
        %v3953 = vshrl.u32 %v3231, 16
        %v3955 = vrot.slane %v3953, 3
        %v3956 = vshll.u32 %v3231, 16
        %v3958 = vrot.slane %v3956, 4
        %v3959 = vor.u32 %v3955, %v3958
        %v3960 = vsel %vm3617, %v3887, %v3959
        %v3962 = vshrl.u32 %v3326, 16
        %v3964 = vrot.slane %v3962, 3
        %v3965 = vshll.u32 %v3326, 16
        %v3967 = vrot.slane %v3965, 4
        %v3968 = vor.u32 %v3964, %v3967
        %v3969 = vsel %vm3617, %v3896, %v3968
        %v3971 = vshrl.u32 %v3049, 16
        %v3973 = vrot.slane %v3971, 3
        %v3974 = vshll.u32 %v3049, 16
        %v3976 = vrot.slane %v3974, 4
        %v3977 = vor.u32 %v3973, %v3976
        %v3978 = vsel %vm3617, %v3905, %v3977
        %v3980 = vshrl.u32 %v3444, 16
        %v3982 = vrot.slane %v3980, 3
        %v3983 = vshll.u32 %v3444, 16
        %v3985 = vrot.slane %v3983, 4
        %v3986 = vor.u32 %v3982, %v3985
        %v3987 = vsel %vm3617, %v3914, %v3986
        %v3989 = vshrl.u32 %v2481, 16
        %v3991 = vrot.slane %v3989, 3
        %v3992 = vshll.u32 %v2481, 16
        %v3994 = vrot.slane %v3992, 4
        %v3995 = vor.u32 %v3991, %v3994
        %v3996 = vsel %vm3617, %v3923, %v3995
        %v3998 = vshrl.u32 %v2626, 16
        %v4000 = vrot.slane %v3998, 3
        %v4001 = vshll.u32 %v2626, 16
        %v4003 = vrot.slane %v4001, 4
        %v4004 = vor.u32 %v4000, %v4003
        %v4005 = vsel %vm3617, %v3932, %v4004
        %v4007 = vshrl.u32 %v2811, 16
        %v4009 = vrot.slane %v4007, 3
        %v4010 = vshll.u32 %v2811, 16
        %v4012 = vrot.slane %v4010, 4
        %v4013 = vor.u32 %v4009, %v4012
        %v4014 = vsel %vm3617, %v3941, %v4013
        %v4016 = vshrl.u32 %v2905, 16
        %v4018 = vrot.slane %v4016, 3
        %v4019 = vshll.u32 %v2905, 16
        %v4021 = vrot.slane %v4019, 4
        %v4022 = vor.u32 %v4018, %v4021
        %v4023 = vsel %vm3617, %v3950, %v4022
        %v4025 = vshrl.u32 %v3233, 16
        %v4027 = vrot.slane %v4025, 3
        %v4028 = vshll.u32 %v3233, 16
        %v4030 = vrot.slane %v4028, 4
        %v4031 = vor.u32 %v4027, %v4030
        %v4032 = vsel %vm3617, %v3959, %v4031
        %v4034 = vshrl.u32 %v3327, 16
        %v4036 = vrot.slane %v4034, 3
        %v4037 = vshll.u32 %v3327, 16
        %v4039 = vrot.slane %v4037, 4
        %v4040 = vor.u32 %v4036, %v4039
        %v4041 = vsel %vm3617, %v3968, %v4040
        %v4043 = vshrl.u32 %v3058, 16
        %v4045 = vrot.slane %v4043, 3
        %v4046 = vshll.u32 %v3058, 16
        %v4048 = vrot.slane %v4046, 4
        %v4049 = vor.u32 %v4045, %v4048
        %v4050 = vsel %vm3617, %v3977, %v4049
        %v4052 = vshrl.u32 %v3446, 16
        %v4054 = vrot.slane %v4052, 3
        %v4055 = vshll.u32 %v3446, 16
        %v4057 = vrot.slane %v4055, 4
        %v4058 = vor.u32 %v4054, %v4057
        %v4059 = vsel %vm3617, %v3986, %v4058
        %v4061 = vshrl.u32 %v2482, 16
        %v4063 = vrot.slane %v4061, 3
        %v4064 = vshll.u32 %v2482, 16
        %v4066 = vrot.slane %v4064, 4
        %v4067 = vor.u32 %v4063, %v4066
        %v4068 = vsel %vm3617, %v3995, %v4067
        %v4070 = vshrl.u32 %v2635, 16
        %v4072 = vrot.slane %v4070, 3
        %v4073 = vshll.u32 %v2635, 16
        %v4075 = vrot.slane %v4073, 4
        %v4076 = vor.u32 %v4072, %v4075
        %v4077 = vsel %vm3617, %v4004, %v4076
        %v4079 = vshrl.u32 %v2813, 16
        %v4081 = vrot.slane %v4079, 3
        %v4082 = vshll.u32 %v2813, 16
        %v4084 = vrot.slane %v4082, 4
        %v4085 = vor.u32 %v4081, %v4084
        %v4086 = vsel %vm3617, %v4013, %v4085
        %v4088 = vshrl.u32 %v2906, 16
        %v4090 = vrot.slane %v4088, 3
        %v4091 = vshll.u32 %v2906, 16
        %v4093 = vrot.slane %v4091, 4
        %v4094 = vor.u32 %v4090, %v4093
        %v4095 = vsel %vm3617, %v4022, %v4094
        %v4097 = vshrl.u32 %v3235, 16
        %v4099 = vrot.slane %v4097, 3
        %v4100 = vshll.u32 %v3235, 16
        %v4102 = vrot.slane %v4100, 4
        %v4103 = vor.u32 %v4099, %v4102
        %v4104 = vsel %vm3617, %v4031, %v4103
        %v4106 = vshrl.u32 %v3328, 16
        %v4108 = vrot.slane %v4106, 3
        %v4109 = vshll.u32 %v3328, 16
        %v4111 = vrot.slane %v4109, 4
        %v4112 = vor.u32 %v4108, %v4111
        %v4113 = vsel %vm3617, %v4040, %v4112
        %v4115 = vshrl.u32 %v3067, 16
        %v4117 = vrot.slane %v4115, 3
        %v4118 = vshll.u32 %v3067, 16
        %v4120 = vrot.slane %v4118, 4
        %v4121 = vor.u32 %v4117, %v4120
        %v4122 = vsel %vm3617, %v4049, %v4121
        %v4124 = vshrl.u32 %v3448, 16
        %v4126 = vrot.slane %v4124, 3
        %v4127 = vshll.u32 %v3448, 16
        %v4129 = vrot.slane %v4127, 4
        %v4130 = vor.u32 %v4126, %v4129
        %v4131 = vsel %vm3617, %v4058, %v4130
        %v4133 = vshrl.u32 %v2483, 16
        %v4135 = vrot.slane %v4133, 3
        %v4136 = vshll.u32 %v2483, 16
        %v4138 = vrot.slane %v4136, 4
        %v4139 = vor.u32 %v4135, %v4138
        %v4140 = vsel %vm3617, %v4067, %v4139
        %v4142 = vshrl.u32 %v2644, 16
        %v4144 = vrot.slane %v4142, 3
        %v4145 = vshll.u32 %v2644, 16
        %v4147 = vrot.slane %v4145, 4
        %v4148 = vor.u32 %v4144, %v4147
        %v4149 = vsel %vm3617, %v4076, %v4148
        %v4151 = vshrl.u32 %v2815, 16
        %v4153 = vrot.slane %v4151, 3
        %v4154 = vshll.u32 %v2815, 16
        %v4156 = vrot.slane %v4154, 4
        %v4157 = vor.u32 %v4153, %v4156
        %v4158 = vsel %vm3617, %v4085, %v4157
        %v4160 = vshrl.u32 %v2907, 16
        %v4162 = vrot.slane %v4160, 3
        %v4163 = vshll.u32 %v2907, 16
        %v4165 = vrot.slane %v4163, 4
        %v4166 = vor.u32 %v4162, %v4165
        %v4167 = vsel %vm3617, %v4094, %v4166
        %v4169 = vshrl.u32 %v3237, 16
        %v4171 = vrot.slane %v4169, 3
        %v4172 = vshll.u32 %v3237, 16
        %v4174 = vrot.slane %v4172, 4
        %v4175 = vor.u32 %v4171, %v4174
        %v4176 = vsel %vm3617, %v4103, %v4175
        %v4178 = vshrl.u32 %v3329, 16
        %v4180 = vrot.slane %v4178, 3
        %v4181 = vshll.u32 %v3329, 16
        %v4183 = vrot.slane %v4181, 4
        %v4184 = vor.u32 %v4180, %v4183
        %v4185 = vsel %vm3617, %v4112, %v4184
        %v4187 = vshrl.u32 %v3076, 16
        %v4189 = vrot.slane %v4187, 3
        %v4190 = vshll.u32 %v3076, 16
        %v4192 = vrot.slane %v4190, 4
        %v4193 = vor.u32 %v4189, %v4192
        %v4194 = vsel %vm3617, %v4121, %v4193
        %v4196 = vshrl.u32 %v3450, 16
        %v4198 = vrot.slane %v4196, 3
        %v4199 = vshll.u32 %v3450, 16
        %v4201 = vrot.slane %v4199, 4
        %v4202 = vor.u32 %v4198, %v4201
        %v4203 = vsel %vm3617, %v4130, %v4202
        %v4205 = vshrl.u32 %v2484, 16
        %v4207 = vrot.slane %v4205, 3
        %v4208 = vshll.u32 %v2484, 16
        %v4210 = vrot.slane %v4208, 4
        %v4211 = vor.u32 %v4207, %v4210
        %v4212 = vsel %vm3617, %v4139, %v4211
        %v4214 = vshrl.u32 %v2653, 16
        %v4216 = vrot.slane %v4214, 3
        %v4217 = vshll.u32 %v2653, 16
        %v4219 = vrot.slane %v4217, 4
        %v4220 = vor.u32 %v4216, %v4219
        %v4221 = vsel %vm3617, %v4148, %v4220
        %v4223 = vshrl.u32 %v2817, 16
        %v4225 = vrot.slane %v4223, 3
        %v4226 = vshll.u32 %v2817, 16
        %v4228 = vrot.slane %v4226, 4
        %v4229 = vor.u32 %v4225, %v4228
        %v4230 = vsel %vm3617, %v4157, %v4229
        %v4232 = vshrl.u32 %v2908, 16
        %v4234 = vrot.slane %v4232, 3
        %v4235 = vshll.u32 %v2908, 16
        %v4237 = vrot.slane %v4235, 4
        %v4238 = vor.u32 %v4234, %v4237
        %v4239 = vsel %vm3617, %v4166, %v4238
        %v4241 = vshrl.u32 %v3239, 16
        %v4243 = vrot.slane %v4241, 3
        %v4244 = vshll.u32 %v3239, 16
        %v4246 = vrot.slane %v4244, 4
        %v4247 = vor.u32 %v4243, %v4246
        %v4248 = vsel %vm3617, %v4175, %v4247
        %v4250 = vshrl.u32 %v3330, 16
        %v4252 = vrot.slane %v4250, 3
        %v4253 = vshll.u32 %v3330, 16
        %v4255 = vrot.slane %v4253, 4
        %v4256 = vor.u32 %v4252, %v4255
        %v4257 = vsel %vm3617, %v4184, %v4256
        %v4259 = vshrl.u32 %v3085, 16
        %v4261 = vrot.slane %v4259, 3
        %v4262 = vshll.u32 %v3085, 16
        %v4264 = vrot.slane %v4262, 4
        %v4265 = vor.u32 %v4261, %v4264
        %v4266 = vsel %vm3617, %v4193, %v4265
        %v4268 = vshrl.u32 %v3452, 16
        %v4270 = vrot.slane %v4268, 3
        %v4271 = vshll.u32 %v3452, 16
        %v4273 = vrot.slane %v4271, 4
        %v4274 = vor.u32 %v4270, %v4273
        %v4275 = vsel %vm3617, %v4202, %v4274
        %v4277 = vshrl.u32 %v2485, 16
        %v4279 = vrot.slane %v4277, 3
        %v4280 = vshll.u32 %v2485, 16
        %v4282 = vrot.slane %v4280, 4
        %v4283 = vor.u32 %v4279, %v4282
        %v4284 = vsel %vm3617, %v4211, %v4283
        %v4286 = vshrl.u32 %v2662, 16
        %v4288 = vrot.slane %v4286, 3
        %v4289 = vshll.u32 %v2662, 16
        %v4291 = vrot.slane %v4289, 4
        %v4292 = vor.u32 %v4288, %v4291
        %v4293 = vsel %vm3617, %v4220, %v4292
        %v4295 = vshrl.u32 %v2819, 16
        %v4297 = vrot.slane %v4295, 3
        %v4298 = vshll.u32 %v2819, 16
        %v4300 = vrot.slane %v4298, 4
        %v4301 = vor.u32 %v4297, %v4300
        %v4302 = vsel %vm3617, %v4229, %v4301
        %v4304 = vshrl.u32 %v2909, 16
        %v4306 = vrot.slane %v4304, 3
        %v4307 = vshll.u32 %v2909, 16
        %v4309 = vrot.slane %v4307, 4
        %v4310 = vor.u32 %v4306, %v4309
        %v4311 = vsel %vm3617, %v4238, %v4310
        %v4313 = vshrl.u32 %v3241, 16
        %v4315 = vrot.slane %v4313, 3
        %v4316 = vshll.u32 %v3241, 16
        %v4318 = vrot.slane %v4316, 4
        %v4319 = vor.u32 %v4315, %v4318
        %v4320 = vsel %vm3617, %v4247, %v4319
        %v4322 = vshrl.u32 %v3331, 16
        %v4324 = vrot.slane %v4322, 3
        %v4325 = vshll.u32 %v3331, 16
        %v4327 = vrot.slane %v4325, 4
        %v4328 = vor.u32 %v4324, %v4327
        %v4329 = vsel %vm3617, %v4256, %v4328
        %v4331 = vshrl.u32 %v3094, 16
        %v4333 = vrot.slane %v4331, 3
        %v4334 = vshll.u32 %v3094, 16
        %v4336 = vrot.slane %v4334, 4
        %v4337 = vor.u32 %v4333, %v4336
        %v4338 = vsel %vm3617, %v4265, %v4337
        %v4340 = vshrl.u32 %v3454, 16
        %v4342 = vrot.slane %v4340, 3
        %v4343 = vshll.u32 %v3454, 16
        %v4345 = vrot.slane %v4343, 4
        %v4346 = vor.u32 %v4342, %v4345
        %v4347 = vsel %vm3617, %v4274, %v4346
        %v4349 = vshrl.u32 %v2486, 16
        %v4351 = vrot.slane %v4349, 3
        %v4352 = vshll.u32 %v2486, 16
        %v4354 = vrot.slane %v4352, 4
        %v4355 = vor.u32 %v4351, %v4354
        %v4356 = vsel %vm3617, %v4283, %v4355
        %v4358 = vshrl.u32 %v2671, 16
        %v4360 = vrot.slane %v4358, 3
        %v4361 = vshll.u32 %v2671, 16
        %v4363 = vrot.slane %v4361, 4
        %v4364 = vor.u32 %v4360, %v4363
        %v4365 = vsel %vm3617, %v4292, %v4364
        %v4367 = vshrl.u32 %v2821, 16
        %v4369 = vrot.slane %v4367, 3
        %v4370 = vshll.u32 %v2821, 16
        %v4372 = vrot.slane %v4370, 4
        %v4373 = vor.u32 %v4369, %v4372
        %v4374 = vsel %vm3617, %v4301, %v4373
        %v4376 = vshrl.u32 %v2910, 16
        %v4378 = vrot.slane %v4376, 3
        %v4379 = vshll.u32 %v2910, 16
        %v4381 = vrot.slane %v4379, 4
        %v4382 = vor.u32 %v4378, %v4381
        %v4383 = vsel %vm3617, %v4310, %v4382
        %v4385 = vshrl.u32 %v3243, 16
        %v4387 = vrot.slane %v4385, 3
        %v4388 = vshll.u32 %v3243, 16
        %v4390 = vrot.slane %v4388, 4
        %v4391 = vor.u32 %v4387, %v4390
        %v4392 = vsel %vm3617, %v4319, %v4391
        %v4394 = vshrl.u32 %v3332, 16
        %v4396 = vrot.slane %v4394, 3
        %v4397 = vshll.u32 %v3332, 16
        %v4399 = vrot.slane %v4397, 4
        %v4400 = vor.u32 %v4396, %v4399
        %v4401 = vsel %vm3617, %v4328, %v4400
        %v4403 = vshrl.u32 %v3103, 16
        %v4405 = vrot.slane %v4403, 3
        %v4406 = vshll.u32 %v3103, 16
        %v4408 = vrot.slane %v4406, 4
        %v4409 = vor.u32 %v4405, %v4408
        %v4410 = vsel %vm3617, %v4337, %v4409
        %v4412 = vshrl.u32 %v3456, 16
        %v4414 = vrot.slane %v4412, 3
        %v4415 = vshll.u32 %v3456, 16
        %v4417 = vrot.slane %v4415, 4
        %v4418 = vor.u32 %v4414, %v4417
        %v4419 = vsel %vm3617, %v4346, %v4418
        %v4421 = vshrl.u32 %v2487, 16
        %v4423 = vrot.slane %v4421, 3
        %v4424 = vshll.u32 %v2487, 16
        %v4426 = vrot.slane %v4424, 4
        %v4427 = vor.u32 %v4423, %v4426
        %v4428 = vsel %vm3617, %v4355, %v4427
        %v4430 = vshrl.u32 %v2680, 16
        %v4432 = vrot.slane %v4430, 3
        %v4433 = vshll.u32 %v2680, 16
        %v4435 = vrot.slane %v4433, 4
        %v4436 = vor.u32 %v4432, %v4435
        %v4437 = vsel %vm3617, %v4364, %v4436
        %v4439 = vshrl.u32 %v2823, 16
        %v4441 = vrot.slane %v4439, 3
        %v4442 = vshll.u32 %v2823, 16
        %v4444 = vrot.slane %v4442, 4
        %v4445 = vor.u32 %v4441, %v4444
        %v4446 = vsel %vm3617, %v4373, %v4445
        %v4448 = vshrl.u32 %v2911, 16
        %v4450 = vrot.slane %v4448, 3
        %v4451 = vshll.u32 %v2911, 16
        %v4453 = vrot.slane %v4451, 4
        %v4454 = vor.u32 %v4450, %v4453
        %v4455 = vsel %vm3617, %v4382, %v4454
        %v4457 = vshrl.u32 %v3245, 16
        %v4459 = vrot.slane %v4457, 3
        %v4460 = vshll.u32 %v3245, 16
        %v4462 = vrot.slane %v4460, 4
        %v4463 = vor.u32 %v4459, %v4462
        %v4464 = vsel %vm3617, %v4391, %v4463
        %v4466 = vshrl.u32 %v3333, 16
        %v4468 = vrot.slane %v4466, 3
        %v4469 = vshll.u32 %v3333, 16
        %v4471 = vrot.slane %v4469, 4
        %v4472 = vor.u32 %v4468, %v4471
        %v4473 = vsel %vm3617, %v4400, %v4472
        %v4475 = vshrl.u32 %v3112, 16
        %v4477 = vrot.slane %v4475, 3
        %v4478 = vshll.u32 %v3112, 16
        %v4480 = vrot.slane %v4478, 4
        %v4481 = vor.u32 %v4477, %v4480
        %v4482 = vsel %vm3617, %v4409, %v4481
        %v4484 = vshrl.u32 %v3458, 16
        %v4486 = vrot.slane %v4484, 3
        %v4487 = vshll.u32 %v3458, 16
        %v4489 = vrot.slane %v4487, 4
        %v4490 = vor.u32 %v4486, %v4489
        %v4491 = vsel %vm3617, %v4418, %v4490
        %v4493 = vshrl.u32 %v2488, 16
        %v4495 = vrot.slane %v4493, 3
        %v4496 = vshll.u32 %v2488, 16
        %v4498 = vrot.slane %v4496, 4
        %v4499 = vor.u32 %v4495, %v4498
        %v4500 = vsel %vm3617, %v4427, %v4499
        %v4502 = vshrl.u32 %v2689, 16
        %v4504 = vrot.slane %v4502, 3
        %v4505 = vshll.u32 %v2689, 16
        %v4507 = vrot.slane %v4505, 4
        %v4508 = vor.u32 %v4504, %v4507
        %v4509 = vsel %vm3617, %v4436, %v4508
        %v4511 = vshrl.u32 %v2825, 16
        %v4513 = vrot.slane %v4511, 3
        %v4514 = vshll.u32 %v2825, 16
        %v4516 = vrot.slane %v4514, 4
        %v4517 = vor.u32 %v4513, %v4516
        %v4518 = vsel %vm3617, %v4445, %v4517
        %v4520 = vshrl.u32 %v2912, 16
        %v4522 = vrot.slane %v4520, 3
        %v4523 = vshll.u32 %v2912, 16
        %v4525 = vrot.slane %v4523, 4
        %v4526 = vor.u32 %v4522, %v4525
        %v4527 = vsel %vm3617, %v4454, %v4526
        %v4529 = vshrl.u32 %v3247, 16
        %v4531 = vrot.slane %v4529, 3
        %v4532 = vshll.u32 %v3247, 16
        %v4534 = vrot.slane %v4532, 4
        %v4535 = vor.u32 %v4531, %v4534
        %v4536 = vsel %vm3617, %v4463, %v4535
        %v4538 = vshrl.u32 %v3334, 16
        %v4540 = vrot.slane %v4538, 3
        %v4541 = vshll.u32 %v3334, 16
        %v4543 = vrot.slane %v4541, 4
        %v4544 = vor.u32 %v4540, %v4543
        %v4545 = vsel %vm3617, %v4472, %v4544
        %v4547 = vshrl.u32 %v3121, 16
        %v4549 = vrot.slane %v4547, 3
        %v4550 = vshll.u32 %v3121, 16
        %v4552 = vrot.slane %v4550, 4
        %v4553 = vor.u32 %v4549, %v4552
        %v4554 = vsel %vm3617, %v4481, %v4553
        %v4556 = vshrl.u32 %v3460, 16
        %v4558 = vrot.slane %v4556, 3
        %v4559 = vshll.u32 %v3460, 16
        %v4561 = vrot.slane %v4559, 4
        %v4562 = vor.u32 %v4558, %v4561
        %v4563 = vsel %vm3617, %v4490, %v4562
        %v4565 = vshrl.u32 %v2489, 16
        %v4567 = vrot.slane %v4565, 3
        %v4568 = vshll.u32 %v2489, 16
        %v4570 = vrot.slane %v4568, 4
        %v4571 = vor.u32 %v4567, %v4570
        %v4572 = vsel %vm3617, %v4499, %v4571
        %v4574 = vshrl.u32 %v2698, 16
        %v4576 = vrot.slane %v4574, 3
        %v4577 = vshll.u32 %v2698, 16
        %v4579 = vrot.slane %v4577, 4
        %v4580 = vor.u32 %v4576, %v4579
        %v4581 = vsel %vm3617, %v4508, %v4580
        %v4583 = vshrl.u32 %v2827, 16
        %v4585 = vrot.slane %v4583, 3
        %v4586 = vshll.u32 %v2827, 16
        %v4588 = vrot.slane %v4586, 4
        %v4589 = vor.u32 %v4585, %v4588
        %v4590 = vsel %vm3617, %v4517, %v4589
        %v4592 = vshrl.u32 %v2913, 16
        %v4594 = vrot.slane %v4592, 3
        %v4595 = vshll.u32 %v2913, 16
        %v4597 = vrot.slane %v4595, 4
        %v4598 = vor.u32 %v4594, %v4597
        %v4599 = vsel %vm3617, %v4526, %v4598
        %v4601 = vshrl.u32 %v3249, 16
        %v4603 = vrot.slane %v4601, 3
        %v4604 = vshll.u32 %v3249, 16
        %v4606 = vrot.slane %v4604, 4
        %v4607 = vor.u32 %v4603, %v4606
        %v4608 = vsel %vm3617, %v4535, %v4607
        %v4610 = vshrl.u32 %v3335, 16
        %v4612 = vrot.slane %v4610, 3
        %v4613 = vshll.u32 %v3335, 16
        %v4615 = vrot.slane %v4613, 4
        %v4616 = vor.u32 %v4612, %v4615
        %v4617 = vsel %vm3617, %v4544, %v4616
        %v4619 = vshrl.u32 %v3130, 16
        %v4621 = vrot.slane %v4619, 3
        %v4622 = vshll.u32 %v3130, 16
        %v4624 = vrot.slane %v4622, 4
        %v4625 = vor.u32 %v4621, %v4624
        %v4626 = vsel %vm3617, %v4553, %v4625
        %v4628 = vshrl.u32 %v3462, 16
        %v4630 = vrot.slane %v4628, 3
        %v4631 = vshll.u32 %v3462, 16
        %v4633 = vrot.slane %v4631, 4
        %v4634 = vor.u32 %v4630, %v4633
        %v4635 = vsel %vm3617, %v4562, %v4634
        %v4637 = vshrl.u32 %v2490, 16
        %v4639 = vrot.slane %v4637, 3
        %v4640 = vshll.u32 %v2490, 16
        %v4642 = vrot.slane %v4640, 4
        %v4643 = vor.u32 %v4639, %v4642
        %v4644 = vsel %vm3617, %v4571, %v4643
        %v4646 = vshrl.u32 %v2707, 16
        %v4648 = vrot.slane %v4646, 3
        %v4649 = vshll.u32 %v2707, 16
        %v4651 = vrot.slane %v4649, 4
        %v4652 = vor.u32 %v4648, %v4651
        %v4653 = vsel %vm3617, %v4580, %v4652
        %v4655 = vshrl.u32 %v2829, 16
        %v4657 = vrot.slane %v4655, 3
        %v4658 = vshll.u32 %v2829, 16
        %v4660 = vrot.slane %v4658, 4
        %v4661 = vor.u32 %v4657, %v4660
        %v4662 = vsel %vm3617, %v4589, %v4661
        %v4664 = vshrl.u32 %v2914, 16
        %v4666 = vrot.slane %v4664, 3
        %v4667 = vshll.u32 %v2914, 16
        %v4669 = vrot.slane %v4667, 4
        %v4670 = vor.u32 %v4666, %v4669
        %v4671 = vsel %vm3617, %v4598, %v4670
        %v4673 = vshrl.u32 %v3251, 16
        %v4675 = vrot.slane %v4673, 3
        %v4676 = vshll.u32 %v3251, 16
        %v4678 = vrot.slane %v4676, 4
        %v4679 = vor.u32 %v4675, %v4678
        %v4680 = vsel %vm3617, %v4607, %v4679
        %v4682 = vshrl.u32 %v3336, 16
        %v4684 = vrot.slane %v4682, 3
        %v4685 = vshll.u32 %v3336, 16
        %v4687 = vrot.slane %v4685, 4
        %v4688 = vor.u32 %v4684, %v4687
        %v4689 = vsel %vm3617, %v4616, %v4688
        %v4691 = vshrl.u32 %v3139, 16
        %v4693 = vrot.slane %v4691, 3
        %v4694 = vshll.u32 %v3139, 16
        %v4696 = vrot.slane %v4694, 4
        %v4697 = vor.u32 %v4693, %v4696
        %v4698 = vsel %vm3617, %v4625, %v4697
        %v4700 = vshrl.u32 %v3464, 16
        %v4702 = vrot.slane %v4700, 3
        %v4703 = vshll.u32 %v3464, 16
        %v4705 = vrot.slane %v4703, 4
        %v4706 = vor.u32 %v4702, %v4705
        %v4707 = vsel %vm3617, %v4634, %v4706
        %v4709 = vshrl.u32 %v2491, 16
        %v4711 = vrot.slane %v4709, 3
        %v4712 = vshll.u32 %v2491, 16
        %v4714 = vrot.slane %v4712, 4
        %v4715 = vor.u32 %v4711, %v4714
        %v4716 = vsel %vm3617, %v4643, %v4715
        %v4718 = vshrl.u32 %v2716, 16
        %v4720 = vrot.slane %v4718, 3
        %v4721 = vshll.u32 %v2716, 16
        %v4723 = vrot.slane %v4721, 4
        %v4724 = vor.u32 %v4720, %v4723
        %v4725 = vsel %vm3617, %v4652, %v4724
        %v4727 = vshrl.u32 %v2831, 16
        %v4729 = vrot.slane %v4727, 3
        %v4730 = vshll.u32 %v2831, 16
        %v4732 = vrot.slane %v4730, 4
        %v4733 = vor.u32 %v4729, %v4732
        %v4734 = vsel %vm3617, %v4661, %v4733
        %v4736 = vshrl.u32 %v2915, 16
        %v4738 = vrot.slane %v4736, 3
        %v4739 = vshll.u32 %v2915, 16
        %v4741 = vrot.slane %v4739, 4
        %v4742 = vor.u32 %v4738, %v4741
        %v4743 = vsel %vm3617, %v4670, %v4742
        %v4745 = vshrl.u32 %v3253, 16
        %v4747 = vrot.slane %v4745, 3
        %v4748 = vshll.u32 %v3253, 16
        %v4750 = vrot.slane %v4748, 4
        %v4751 = vor.u32 %v4747, %v4750
        %v4752 = vsel %vm3617, %v4679, %v4751
        %v4754 = vshrl.u32 %v3337, 16
        %v4756 = vrot.slane %v4754, 3
        %v4757 = vshll.u32 %v3337, 16
        %v4759 = vrot.slane %v4757, 4
        %v4760 = vor.u32 %v4756, %v4759
        %v4761 = vsel %vm3617, %v4688, %v4760
        %v4763 = vshrl.u32 %v3352, 16
        %v4765 = vrot.slane %v4763, 3
        %v4766 = vshll.u32 %v3352, 16
        %v4768 = vrot.slane %v4766, 4
        %v4769 = vor.u32 %v4765, %v4768
        %v4770 = vsel %vm3617, %v4697, %v4769
        %v4772 = vshrl.u32 %v3466, 16
        %v4774 = vrot.slane %v4772, 3
        %v4775 = vshll.u32 %v3466, 16
        %v4777 = vrot.slane %v4775, 4
        %v4778 = vor.u32 %v4774, %v4777
        %v4779 = vsel %vm3617, %v4706, %v4778
        %v4781 = vshrl.u32 %v2492, 16
        %v4783 = vrot.slane %v4781, 3
        %v4784 = vshll.u32 %v2492, 16
        %v4786 = vrot.slane %v4784, 4
        %v4787 = vor.u32 %v4783, %v4786
        %v4788 = vsel %vm3617, %v4715, %v4787
        %v4790 = vshrl.u32 %v2715, 16
        %v4792 = vrot.slane %v4790, 3
        %v4793 = vshll.u32 %v2715, 16
        %v4795 = vrot.slane %v4793, 4
        %v4796 = vor.u32 %v4792, %v4795
        %v4797 = vsel %vm3617, %v4724, %v4796
        %v4799 = vshrl.u32 %v2833, 16
        %v4801 = vrot.slane %v4799, 3
        %v4802 = vshll.u32 %v2833, 16
        %v4804 = vrot.slane %v4802, 4
        %v4805 = vor.u32 %v4801, %v4804
        %v4806 = vsel %vm3617, %v4733, %v4805
        %v4808 = vshrl.u32 %v2916, 16
        %v4810 = vrot.slane %v4808, 3
        %v4811 = vshll.u32 %v2916, 16
        %v4813 = vrot.slane %v4811, 4
        %v4814 = vor.u32 %v4810, %v4813
        %v4815 = vsel %vm3617, %v4742, %v4814
        %v4817 = vshrl.u32 %v3138, 16
        %v4819 = vrot.slane %v4817, 3
        %v4820 = vshll.u32 %v3138, 16
        %v4822 = vrot.slane %v4820, 4
        %v4823 = vor.u32 %v4819, %v4822
        %v4824 = vsel %vm3617, %v4697, %v4823
        %v4826 = vshrl.u32 %v3255, 16
        %v4828 = vrot.slane %v4826, 3
        %v4829 = vshll.u32 %v3255, 16
        %v4831 = vrot.slane %v4829, 4
        %v4832 = vor.u32 %v4828, %v4831
        %v4833 = vsel %vm3617, %v4751, %v4832
        %v4835 = vshrl.u32 %v3338, 16
        %v4837 = vrot.slane %v4835, 3
        %v4838 = vshll.u32 %v3338, 16
        %v4840 = vrot.slane %v4838, 4
        %v4841 = vor.u32 %v4837, %v4840
        %v4842 = vsel %vm3617, %v4760, %v4841
        %v4844 = vshrl.u32 %v3351, 16
        %v4846 = vrot.slane %v4844, 3
        %v4847 = vshll.u32 %v3351, 16
        %v4849 = vrot.slane %v4847, 4
        %v4850 = vor.u32 %v4846, %v4849
        %v4851 = vsel %vm3617, %v4769, %v4850
        %v4853 = vshrl.u32 %v3468, 16
        %v4855 = vrot.slane %v4853, 3
        %v4856 = vshll.u32 %v3468, 16
        %v4858 = vrot.slane %v4856, 4
        %v4859 = vor.u32 %v4855, %v4858
        %v4860 = vsel %vm3617, %v4778, %v4859
        %v5136 = vunpack.c.l.b16 %v3469
        %v5137 = vunpack.c.l.b16 %v3470
        %v5138 = vunpack.c.l.b16 %v3471
        %v5139 = vunpack.c.l.b16 %v3472
        %v5140 = vunpack.c.l.b16 %v3473
        %v5141 = vunpack.c.l.b16 %v3474
        %v5142 = vunpack.c.l.b16 %v3475
        %v5143 = vunpack.c.l.b16 %v3476
        %v5144 = vunpack.c.l.b16 %v3477
        %v5145 = vunpack.c.l.b16 %v3478
        %v5146 = vunpack.c.l.b16 %v3479
        %v5147 = vunpack.c.l.b16 %v3480
        %v5148 = vunpack.c.l.b16 %v3481
        %v5149 = vunpack.c.l.b16 %v3482
        %v5150 = vunpack.c.l.b16 %v3483
        %v5151 = vunpack.c.l.b16 %v3484
        %v5152 = vunpack.c.l.b16 %v3485
        %v5153 = vunpack.c.l.b16 %v3486
        %v5154 = vunpack.c.l.b16 %v3487
        %v5155 = vunpack.c.l.b16 %v3488
        %v5156 = vunpack.c.l.b16 %v3489
        %v5157 = vunpack.c.l.b16 %v3490
        %v5158 = vunpack.c.l.b16 %v3491
        %v5159 = vunpack.c.l.b16 %v3492
        %v5160 = vunpack.c.l.b16 %v3493
        %v5161 = vunpack.c.l.b16 %v3494
        %v5162 = vunpack.c.l.b16 %v3495
        %v5163 = vunpack.c.l.b16 %v3496
        %v5164 = vunpack.c.l.b16 %v3497
        %v5165 = vunpack.c.l.b16 %v3498
        %v5166 = vunpack.c.l.b16 %v3499
        %v5167 = vunpack.c.l.b16 %v3500
        %v5168 = vunpack.c.l.b16 %v3501
        %v5169 = vunpack.c.l.b16 %v3502
        %v5170 = vunpack.c.l.b16 %v3503
        %v5171 = vunpack.c.l.b16 %v3504
        %v5172 = vunpack.c.l.b16 %v3505
        %v5173 = vunpack.c.l.b16 %v3506
        %v5174 = vunpack.c.l.b16 %v3507
        %v5175 = vunpack.c.l.b16 %v3508
        %v5176 = vunpack.c.l.b16 %v3509
        %v5177 = vunpack.c.l.b16 %v3510
        %v5178 = vunpack.c.l.b16 %v3511
        %v5179 = vunpack.c.l.b16 %v3512
        %v5180 = vunpack.c.l.b16 %v3513
        %v5181 = vunpack.c.l.b16 %v3514
        %v5182 = vunpack.c.l.b16 %v3515
        %v5183 = vunpack.c.l.b16 %v3516
        %v5184 = vunpack.c.l.b16 %v3517
        %v5185 = vunpack.c.l.b16 %v3518
        %v5186 = vunpack.c.l.b16 %v3519
        %v5187 = vunpack.c.l.b16 %v3520
        %v5188 = vunpack.c.l.b16 %v3521
        %v5189 = vunpack.c.l.b16 %v3522
        %v5190 = vunpack.c.l.b16 %v3523
        %v5191 = vunpack.c.l.b16 %v3524
        %v5192 = vunpack.c.l.b16 %v3525
        %v5193 = vunpack.c.l.b16 %v3526
        %v5194 = vunpack.c.l.b16 %v3527
        %v5195 = vunpack.c.l.b16 %v3528
        %v5196 = vunpack.c.l.b16 %v3529
        %v5197 = vunpack.c.l.b16 %v3530
        %v5198 = vunpack.c.l.b16 %v3531
        %v5199 = vunpack.c.l.b16 %v3532
        %v5200 = vunpack.c.l.b16 %v3533
        %v5201 = vunpack.c.l.b16 %v3534
        %v5202 = vunpack.c.l.b16 %v3535
        %v5203 = vunpack.c.l.b16 %v3536
        %v5204 = vunpack.c.l.b16 %v3537
        %v5205 = vunpack.c.l.b16 %v3538
        %v5206 = vunpack.c.l.b16 %v3539
        %v5207 = vunpack.c.l.b16 %v3540
        %v5208 = vunpack.c.l.b16 %v3541
        %v5209 = vunpack.c.l.b16 %v3542
        %v5210 = vunpack.c.l.b16 %v3543
        %v5211 = vunpack.c.l.b16 %v3544
        %v5212 = vunpack.c.l.b16 %v3545
        %v5213 = vunpack.c.l.b16 %v3546
        %v5214 = vunpack.c.l.b16 %v3547
        %v5215 = vunpack.c.l.b16 %v3548
        %v5216 = vunpack.c.l.b16 %v3549
        %v5217 = vunpack.c.l.b16 %v3550
        %v5218 = vunpack.c.l.b16 %v3551
        %v5219 = vunpack.c.l.b16 %v3552
        %v5220 = vunpack.c.l.b16 %v3553
        %v5221 = vunpack.c.l.b16 %v3554
        %v5222 = vunpack.c.l.b16 %v3555
        %v5223 = vunpack.c.l.b16 %v3556
        %v5224 = vunpack.c.l.b16 %v3557
        %v5225 = vunpack.c.l.b16 %v3558
        %v5226 = vunpack.c.l.b16 %v3559
        %v5227 = vunpack.c.l.b16 %v3560
        %v5228 = vunpack.c.l.b16 %v3561
        %v5229 = vunpack.c.l.b16 %v3562
        %v5230 = vunpack.c.l.b16 %v3563
        %v5231 = vunpack.c.l.b16 %v3564
        %v5232 = vunpack.c.l.b16 %v3565
        %v5233 = vunpack.c.l.b16 %v3566
        %v5234 = vunpack.c.l.b16 %v3567
        %v5235 = vunpack.c.l.b16 %v3568
        %v5236 = vunpack.c.l.b16 %v3569
        %v5237 = vunpack.c.l.b16 %v3570
        %v5238 = vunpack.c.l.b16 %v3571
        %v5239 = vunpack.c.l.b16 %v3572
        %v5240 = vunpack.c.l.b16 %v3573
        %v5241 = vunpack.c.l.b16 %v3574
        %v5242 = vunpack.c.l.b16 %v3575
        %v5243 = vunpack.c.l.b16 %v3576
        %v5244 = vunpack.c.l.b16 %v3577
        %v5245 = vunpack.c.l.b16 %v3578
        %v5246 = vunpack.c.l.b16 %v3579
        %v5247 = vunpack.c.l.b16 %v3580
        %v5248 = vunpack.c.l.b16 %v3581
        %v5249 = vunpack.c.l.b16 %v3582
        %v5250 = vunpack.c.l.b16 %v3583
        %v5251 = vunpack.c.l.b16 %v3584
        %v5252 = vunpack.c.l.b16 %v3585
        %v5253 = vunpack.c.l.b16 %v3586
        %v5254 = vunpack.c.l.b16 %v3587
        %v5255 = vunpack.c.l.b16 %v3588
        %v5256 = vunpack.c.l.b16 %v3589
        %v5257 = vunpack.c.l.b16 %v3590
        %v5258 = vunpack.c.l.b16 %v3591
        %v5259 = vunpack.c.l.b16 %v3592
        %v5260 = vunpack.c.l.b16 %v3593
        %v5261 = vunpack.c.l.b16 %v3594
        %v5262 = vunpack.c.l.b16 %v3595
        %v5263 = vunpack.c.l.b16 %v3596
        %v5264 = vunpack.c.l.b16 %v3597
        %v5265 = vunpack.c.l.b16 %v3598
        %v5266 = vunpack.c.l.b16 %v3599
        %v5267 = vunpack.c.l.b16 %v3600
        %v5268 = vunpack.c.l.b16 %v3601
        %v5269 = vunpack.c.l.b16 %v3602
        %v5270 = vunpack.c.l.b16 %v3603
        %v5271 = vunpack.c.l.b16 %v3604
        %v5272 = vunpack.c.l.b16 %v3605
        %v5273 = vunpack.c.l.b16 %v3606
        %v5274 = vunpack.c.l.b16 %v3607
        %v5275 = vunpack.c.l.b16 %v3608
        %v5276 = vunpack.c.l.b16 %v3609
        %v5277 = vunpack.c.l.b16 %v3610
        %v5278 = vunpack.c.l.b16 %v3611
        %v5279 = vunpack.c.l.b16 %v3612
        %v5280 = vpack.c.b16 %v5137, %v5136
        %v5281 = vpack.c.b16 %v5139, %v5138
        %v5282 = vpack.c.b16 %v5141, %v5140
        %v5283 = vpack.c.b16 %v5143, %v5142
        %v5284 = vpack.c.b16 %v5145, %v5144
        %v5285 = vpack.c.b16 %v5147, %v5146
        %v5286 = vpack.c.b16 %v5149, %v5148
        %v5287 = vpack.c.b16 %v5151, %v5150
        %v5288 = vpack.c.b16 %v5153, %v5152
        %v5289 = vpack.c.b16 %v5155, %v5154
        %v5290 = vpack.c.b16 %v5157, %v5156
        %v5291 = vpack.c.b16 %v5159, %v5158
        %v5292 = vpack.c.b16 %v5161, %v5160
        %v5293 = vpack.c.b16 %v5163, %v5162
        %v5294 = vpack.c.b16 %v5165, %v5164
        %v5295 = vpack.c.b16 %v5167, %v5166
        %v5296 = vpack.c.b16 %v5169, %v5168
        %v5297 = vpack.c.b16 %v5171, %v5170
        %v5298 = vpack.c.b16 %v5173, %v5172
        %v5299 = vpack.c.b16 %v5175, %v5174
        %v5300 = vpack.c.b16 %v5177, %v5176
        %v5301 = vpack.c.b16 %v5179, %v5178
        %v5302 = vpack.c.b16 %v5181, %v5180
        %v5303 = vpack.c.b16 %v5183, %v5182
        %v5304 = vpack.c.b16 %v5185, %v5184
        %v5305 = vpack.c.b16 %v5187, %v5186
        %v5306 = vpack.c.b16 %v5189, %v5188
        %v5307 = vpack.c.b16 %v5191, %v5190
        %v5308 = vpack.c.b16 %v5193, %v5192
        %v5309 = vpack.c.b16 %v5195, %v5194
        %v5310 = vpack.c.b16 %v5197, %v5196
        %v5311 = vpack.c.b16 %v5199, %v5198
        %v5312 = vpack.c.b16 %v5201, %v5200
        %v5313 = vpack.c.b16 %v5203, %v5202
        %v5314 = vpack.c.b16 %v5205, %v5204
        %v5315 = vpack.c.b16 %v5207, %v5206
        %v5316 = vpack.c.b16 %v5209, %v5208
        %v5317 = vpack.c.b16 %v5211, %v5210
        %v5318 = vpack.c.b16 %v5213, %v5212
        %v5319 = vpack.c.b16 %v5215, %v5214
        %v5320 = vpack.c.b16 %v5217, %v5216
        %v5321 = vpack.c.b16 %v5219, %v5218
        %v5322 = vpack.c.b16 %v5221, %v5220
        %v5323 = vpack.c.b16 %v5223, %v5222
        %v5324 = vpack.c.b16 %v5225, %v5224
        %v5325 = vpack.c.b16 %v5227, %v5226
        %v5326 = vpack.c.b16 %v5229, %v5228
        %v5327 = vpack.c.b16 %v5231, %v5230
        %v5328 = vpack.c.b16 %v5233, %v5232
        %v5329 = vpack.c.b16 %v5235, %v5234
        %v5330 = vpack.c.b16 %v5237, %v5236
        %v5331 = vpack.c.b16 %v5239, %v5238
        %v5332 = vpack.c.b16 %v5241, %v5240
        %v5333 = vpack.c.b16 %v5243, %v5242
        %v5334 = vpack.c.b16 %v5245, %v5244
        %v5335 = vpack.c.b16 %v5247, %v5246
        %v5336 = vpack.c.b16 %v5249, %v5248
        %v5337 = vpack.c.b16 %v5251, %v5250
        %v5338 = vpack.c.b16 %v5253, %v5252
        %v5339 = vpack.c.b16 %v5255, %v5254
        %v5340 = vpack.c.b16 %v5257, %v5256
        %v5341 = vpack.c.b16 %v5259, %v5258
        %v5342 = vpack.c.b16 %v5261, %v5260
        %v5343 = vpack.c.b16 %v5263, %v5262
        %v5344 = vpack.c.b16 %v5265, %v5264
        %v5345 = vpack.c.b16 %v5267, %v5266
        %v5346 = vpack.c.b16 %v5269, %v5268
        %v5347 = vpack.c.b16 %v5271, %v5270
        %v5348 = vpack.c.b16 %v5273, %v5272
        %v5349 = vpack.c.b16 %v5275, %v5274
        %v5350 = vpack.c.b16 %v5277, %v5276
        %v5351 = vpack.c.b16 %v5279, %v5278
        %5424 = vmatpush.bf16.msra.mxu0 %v5287
        %5425 = vmatpush.bf16.msra.mxu0 %v5286
        %5426 = vmatpush.bf16.msra.mxu0 %v5285
        %5427 = vmatpush.bf16.msra.mxu0 %v5284
        %5428 = vmatpush.bf16.msra.mxu0 %v5283
        %5429 = vmatpush.bf16.msra.mxu0 %v5282
        %5430 = vmatpush.bf16.msra.mxu0 %v5281
        %5431 = vmatpush.bf16.msra.mxu0 %v5280
        %5432 = vmatmul.bf16.gmra.mxu0 %v3634
        %v5433 = vpop.f32.mrf.mxu0
        %v5434 = vadd.f32 %v3615, %v5433
        %v5435 = vpop.f32.mrf.mxu0
        %v5436 = vadd.f32 %v3615, %v5435
        %5437 = vmatmul.bf16.gmra.mxu0 %v3779
        %v5438 = vpop.f32.mrf.mxu0
        %v5439 = vadd.f32 %v3615, %v5438
        %v5440 = vpop.f32.mrf.mxu0
        %v5441 = vadd.f32 %v3615, %v5440
        %5442 = vmatmul.bf16.gmra.mxu0 %v3852
        %v5443 = vpop.f32.mrf.mxu0
        %v5444 = vadd.f32 %v3615, %v5443
        %v5445 = vpop.f32.mrf.mxu0
        %v5446 = vadd.f32 %v3615, %v5445
        %5447 = vmatmul.bf16.gmra.mxu0 %v3924
        %v5448 = vpop.f32.mrf.mxu0
        %v5449 = vadd.f32 %v3615, %v5448
        %v5450 = vpop.f32.mrf.mxu0
        %v5451 = vadd.f32 %v3615, %v5450
        %5452 = vmatmul.bf16.gmra.mxu0 %v3996
        %v5453 = vpop.f32.mrf.mxu0
        %v5454 = vadd.f32 %v3615, %v5453
        %v5455 = vpop.f32.mrf.mxu0
        %v5456 = vadd.f32 %v3615, %v5455
        %5457 = vmatmul.bf16.gmra.mxu0 %v4068
        %v5458 = vpop.f32.mrf.mxu0
        %v5459 = vadd.f32 %v3615, %v5458
        %v5460 = vpop.f32.mrf.mxu0
        %v5461 = vadd.f32 %v3615, %v5460
        %5462 = vmatmul.bf16.gmra.mxu0 %v4140
        %v5463 = vpop.f32.mrf.mxu0
        %v5464 = vadd.f32 %v3615, %v5463
        %v5465 = vpop.f32.mrf.mxu0
        %v5466 = vadd.f32 %v3615, %v5465
        %5467 = vmatmul.bf16.gmra.mxu0 %v4212
        %v5468 = vpop.f32.mrf.mxu0
        %v5469 = vadd.f32 %v3615, %v5468
        %v5470 = vpop.f32.mrf.mxu0
        %v5471 = vadd.f32 %v3615, %v5470
        %5472 = vmatmul.bf16.gmra.mxu0 %v4284
        %v5473 = vpop.f32.mrf.mxu0
        %v5474 = vadd.f32 %v3615, %v5473
        %v5475 = vpop.f32.mrf.mxu0
        %v5476 = vadd.f32 %v3615, %v5475
        %5477 = vmatmul.bf16.gmra.mxu0 %v4356
        %v5478 = vpop.f32.mrf.mxu0
        %v5479 = vadd.f32 %v3615, %v5478
        %v5480 = vpop.f32.mrf.mxu0
        %v5481 = vadd.f32 %v3615, %v5480
        %5482 = vmatmul.bf16.gmra.mxu0 %v4428
        %v5483 = vpop.f32.mrf.mxu0
        %v5484 = vadd.f32 %v3615, %v5483
        %v5485 = vpop.f32.mrf.mxu0
        %v5486 = vadd.f32 %v3615, %v5485
        %5487 = vmatmul.bf16.gmra.mxu0 %v4500
        %v5488 = vpop.f32.mrf.mxu0
        %v5489 = vadd.f32 %v3615, %v5488
        %v5490 = vpop.f32.mrf.mxu0
        %v5491 = vadd.f32 %v3615, %v5490
        %5492 = vmatmul.bf16.gmra.mxu0 %v4572
        %v5493 = vpop.f32.mrf.mxu0
        %v5494 = vadd.f32 %v3615, %v5493
        %v5495 = vpop.f32.mrf.mxu0
        %v5496 = vadd.f32 %v3615, %v5495
        %5497 = vmatmul.bf16.gmra.mxu0 %v4644
        %v5498 = vpop.f32.mrf.mxu0
        %v5499 = vadd.f32 %v3615, %v5498
        %v5500 = vpop.f32.mrf.mxu0
        %v5501 = vadd.f32 %v3615, %v5500
        %5502 = vmatmul.bf16.gmra.mxu0 %v4716
        %v5503 = vpop.f32.mrf.mxu0
        %v5504 = vadd.f32 %v3615, %v5503
        %v5505 = vpop.f32.mrf.mxu0
        %v5506 = vadd.f32 %v3615, %v5505
        %5507 = vmatmul.bf16.gmra.mxu0 %v4788
        %v5508 = vpop.f32.mrf.mxu0
        %v5509 = vadd.f32 %v3615, %v5508
        %v5510 = vpop.f32.mrf.mxu0
        %v5511 = vadd.f32 %v3615, %v5510
        %5512 = vdwg.mxu0
        %5513 = vmatpush.bf16.msra.mxu0 %v5295
        %5514 = vmatpush.bf16.msra.mxu0 %v5294
        %5515 = vmatpush.bf16.msra.mxu0 %v5293
        %5516 = vmatpush.bf16.msra.mxu0 %v5292
        %5517 = vmatpush.bf16.msra.mxu0 %v5291
        %5518 = vmatpush.bf16.msra.mxu0 %v5290
        %5519 = vmatpush.bf16.msra.mxu0 %v5289
        %5520 = vmatpush.bf16.msra.mxu0 %v5288
        %5521 = vmatmul.bf16.gmra.mxu0 %v3651
        %v5522 = vpop.f32.mrf.mxu0
        %v5523 = vadd.f32 %v5434, %v5522
        %v5524 = vpop.f32.mrf.mxu0
        %v5525 = vadd.f32 %v5436, %v5524
        %5526 = vmatmul.bf16.gmra.mxu0 %v3788
        %v5527 = vpop.f32.mrf.mxu0
        %v5528 = vadd.f32 %v5439, %v5527
        %v5529 = vpop.f32.mrf.mxu0
        %v5530 = vadd.f32 %v5441, %v5529
        %5531 = vmatmul.bf16.gmra.mxu0 %v3861
        %v5532 = vpop.f32.mrf.mxu0
        %v5533 = vadd.f32 %v5444, %v5532
        %v5534 = vpop.f32.mrf.mxu0
        %v5535 = vadd.f32 %v5446, %v5534
        %5536 = vmatmul.bf16.gmra.mxu0 %v3933
        %v5537 = vpop.f32.mrf.mxu0
        %v5538 = vadd.f32 %v5449, %v5537
        %v5539 = vpop.f32.mrf.mxu0
        %v5540 = vadd.f32 %v5451, %v5539
        %5541 = vmatmul.bf16.gmra.mxu0 %v4005
        %v5542 = vpop.f32.mrf.mxu0
        %v5543 = vadd.f32 %v5454, %v5542
        %v5544 = vpop.f32.mrf.mxu0
        %v5545 = vadd.f32 %v5456, %v5544
        %5546 = vmatmul.bf16.gmra.mxu0 %v4077
        %v5547 = vpop.f32.mrf.mxu0
        %v5548 = vadd.f32 %v5459, %v5547
        %v5549 = vpop.f32.mrf.mxu0
        %v5550 = vadd.f32 %v5461, %v5549
        %5551 = vmatmul.bf16.gmra.mxu0 %v4149
        %v5552 = vpop.f32.mrf.mxu0
        %v5553 = vadd.f32 %v5464, %v5552
        %v5554 = vpop.f32.mrf.mxu0
        %v5555 = vadd.f32 %v5466, %v5554
        %5556 = vmatmul.bf16.gmra.mxu0 %v4221
        %v5557 = vpop.f32.mrf.mxu0
        %v5558 = vadd.f32 %v5469, %v5557
        %v5559 = vpop.f32.mrf.mxu0
        %v5560 = vadd.f32 %v5471, %v5559
        %5561 = vmatmul.bf16.gmra.mxu0 %v4293
        %v5562 = vpop.f32.mrf.mxu0
        %v5563 = vadd.f32 %v5474, %v5562
        %v5564 = vpop.f32.mrf.mxu0
        %v5565 = vadd.f32 %v5476, %v5564
        %5566 = vmatmul.bf16.gmra.mxu0 %v4365
        %v5567 = vpop.f32.mrf.mxu0
        %v5568 = vadd.f32 %v5479, %v5567
        %v5569 = vpop.f32.mrf.mxu0
        %v5570 = vadd.f32 %v5481, %v5569
        %5571 = vmatmul.bf16.gmra.mxu0 %v4437
        %v5572 = vpop.f32.mrf.mxu0
        %v5573 = vadd.f32 %v5484, %v5572
        %v5574 = vpop.f32.mrf.mxu0
        %v5575 = vadd.f32 %v5486, %v5574
        %5576 = vmatmul.bf16.gmra.mxu0 %v4509
        %v5577 = vpop.f32.mrf.mxu0
        %v5578 = vadd.f32 %v5489, %v5577
        %v5579 = vpop.f32.mrf.mxu0
        %v5580 = vadd.f32 %v5491, %v5579
        %5581 = vmatmul.bf16.gmra.mxu0 %v4581
        %v5582 = vpop.f32.mrf.mxu0
        %v5583 = vadd.f32 %v5494, %v5582
        %v5584 = vpop.f32.mrf.mxu0
        %v5585 = vadd.f32 %v5496, %v5584
        %5586 = vmatmul.bf16.gmra.mxu0 %v4653
        %v5587 = vpop.f32.mrf.mxu0
        %v5588 = vadd.f32 %v5499, %v5587
        %v5589 = vpop.f32.mrf.mxu0
        %v5590 = vadd.f32 %v5501, %v5589
        %5591 = vmatmul.bf16.gmra.mxu0 %v4725
        %v5592 = vpop.f32.mrf.mxu0
        %v5593 = vadd.f32 %v5504, %v5592
        %v5594 = vpop.f32.mrf.mxu0
        %v5595 = vadd.f32 %v5506, %v5594
        %5596 = vmatmul.bf16.gmra.mxu0 %v4797
        %v5597 = vpop.f32.mrf.mxu0
        %v5598 = vadd.f32 %v5509, %v5597
        %v5599 = vpop.f32.mrf.mxu0
        %v5600 = vadd.f32 %v5511, %v5599
        %5601 = vdwg.mxu0
        %5602 = vmatpush.bf16.msra.mxu0 %v5303
        %5603 = vmatpush.bf16.msra.mxu0 %v5302
        %5604 = vmatpush.bf16.msra.mxu0 %v5301
        %5605 = vmatpush.bf16.msra.mxu0 %v5300
        %5606 = vmatpush.bf16.msra.mxu0 %v5299
        %5607 = vmatpush.bf16.msra.mxu0 %v5298
        %5608 = vmatpush.bf16.msra.mxu0 %v5297
        %5609 = vmatpush.bf16.msra.mxu0 %v5296
        %5610 = vmatmul.bf16.gmra.mxu0 %v3668
        %v5611 = vpop.f32.mrf.mxu0
        %v5612 = vadd.f32 %v5523, %v5611
        %v5613 = vpop.f32.mrf.mxu0
        %v5614 = vadd.f32 %v5525, %v5613
        %5615 = vmatmul.bf16.gmra.mxu0 %v3797
        %v5616 = vpop.f32.mrf.mxu0
        %v5617 = vadd.f32 %v5528, %v5616
        %v5618 = vpop.f32.mrf.mxu0
        %v5619 = vadd.f32 %v5530, %v5618
        %5620 = vmatmul.bf16.gmra.mxu0 %v3870
        %v5621 = vpop.f32.mrf.mxu0
        %v5622 = vadd.f32 %v5533, %v5621
        %v5623 = vpop.f32.mrf.mxu0
        %v5624 = vadd.f32 %v5535, %v5623
        %5625 = vmatmul.bf16.gmra.mxu0 %v3942
        %v5626 = vpop.f32.mrf.mxu0
        %v5627 = vadd.f32 %v5538, %v5626
        %v5628 = vpop.f32.mrf.mxu0
        %v5629 = vadd.f32 %v5540, %v5628
        %5630 = vmatmul.bf16.gmra.mxu0 %v4014
        %v5631 = vpop.f32.mrf.mxu0
        %v5632 = vadd.f32 %v5543, %v5631
        %v5633 = vpop.f32.mrf.mxu0
        %v5634 = vadd.f32 %v5545, %v5633
        %5635 = vmatmul.bf16.gmra.mxu0 %v4086
        %v5636 = vpop.f32.mrf.mxu0
        %v5637 = vadd.f32 %v5548, %v5636
        %v5638 = vpop.f32.mrf.mxu0
        %v5639 = vadd.f32 %v5550, %v5638
        %5640 = vmatmul.bf16.gmra.mxu0 %v4158
        %v5641 = vpop.f32.mrf.mxu0
        %v5642 = vadd.f32 %v5553, %v5641
        %v5643 = vpop.f32.mrf.mxu0
        %v5644 = vadd.f32 %v5555, %v5643
        %5645 = vmatmul.bf16.gmra.mxu0 %v4230
        %v5646 = vpop.f32.mrf.mxu0
        %v5647 = vadd.f32 %v5558, %v5646
        %v5648 = vpop.f32.mrf.mxu0
        %v5649 = vadd.f32 %v5560, %v5648
        %5650 = vmatmul.bf16.gmra.mxu0 %v4302
        %v5651 = vpop.f32.mrf.mxu0
        %v5652 = vadd.f32 %v5563, %v5651
        %v5653 = vpop.f32.mrf.mxu0
        %v5654 = vadd.f32 %v5565, %v5653
        %5655 = vmatmul.bf16.gmra.mxu0 %v4374
        %v5656 = vpop.f32.mrf.mxu0
        %v5657 = vadd.f32 %v5568, %v5656
        %v5658 = vpop.f32.mrf.mxu0
        %v5659 = vadd.f32 %v5570, %v5658
        %5660 = vmatmul.bf16.gmra.mxu0 %v4446
        %v5661 = vpop.f32.mrf.mxu0
        %v5662 = vadd.f32 %v5573, %v5661
        %v5663 = vpop.f32.mrf.mxu0
        %v5664 = vadd.f32 %v5575, %v5663
        %5665 = vmatmul.bf16.gmra.mxu0 %v4518
        %v5666 = vpop.f32.mrf.mxu0
        %v5667 = vadd.f32 %v5578, %v5666
        %v5668 = vpop.f32.mrf.mxu0
        %v5669 = vadd.f32 %v5580, %v5668
        %5670 = vmatmul.bf16.gmra.mxu0 %v4590
        %v5671 = vpop.f32.mrf.mxu0
        %v5672 = vadd.f32 %v5583, %v5671
        %v5673 = vpop.f32.mrf.mxu0
        %v5674 = vadd.f32 %v5585, %v5673
        %5675 = vmatmul.bf16.gmra.mxu0 %v4662
        %v5676 = vpop.f32.mrf.mxu0
        %v5677 = vadd.f32 %v5588, %v5676
        %v5678 = vpop.f32.mrf.mxu0
        %v5679 = vadd.f32 %v5590, %v5678
        %5680 = vmatmul.bf16.gmra.mxu0 %v4734
        %v5681 = vpop.f32.mrf.mxu0
        %v5682 = vadd.f32 %v5593, %v5681
        %v5683 = vpop.f32.mrf.mxu0
        %v5684 = vadd.f32 %v5595, %v5683
        %5685 = vmatmul.bf16.gmra.mxu0 %v4806
        %v5686 = vpop.f32.mrf.mxu0
        %v5687 = vadd.f32 %v5598, %v5686
        %v5688 = vpop.f32.mrf.mxu0
        %v5689 = vadd.f32 %v5600, %v5688
        %5690 = vdwg.mxu0
        %5691 = vmatpush.bf16.msra.mxu0 %v5311
        %5692 = vmatpush.bf16.msra.mxu0 %v5310
        %5693 = vmatpush.bf16.msra.mxu0 %v5309
        %5694 = vmatpush.bf16.msra.mxu0 %v5308
        %5695 = vmatpush.bf16.msra.mxu0 %v5307
        %5696 = vmatpush.bf16.msra.mxu0 %v5306
        %5697 = vmatpush.bf16.msra.mxu0 %v5305
        %5698 = vmatpush.bf16.msra.mxu0 %v5304
        %5699 = vmatmul.bf16.gmra.mxu0 %v3685
        %v5700 = vpop.f32.mrf.mxu0
        %v5701 = vadd.f32 %v5612, %v5700
        %v5702 = vpop.f32.mrf.mxu0
        %v5703 = vadd.f32 %v5614, %v5702
        %5704 = vmatmul.bf16.gmra.mxu0 %v3806
        %v5705 = vpop.f32.mrf.mxu0
        %v5706 = vadd.f32 %v5617, %v5705
        %v5707 = vpop.f32.mrf.mxu0
        %v5708 = vadd.f32 %v5619, %v5707
        %5709 = vmatmul.bf16.gmra.mxu0 %v3879
        %v5710 = vpop.f32.mrf.mxu0
        %v5711 = vadd.f32 %v5622, %v5710
        %v5712 = vpop.f32.mrf.mxu0
        %v5713 = vadd.f32 %v5624, %v5712
        %5714 = vmatmul.bf16.gmra.mxu0 %v3951
        %v5715 = vpop.f32.mrf.mxu0
        %v5716 = vadd.f32 %v5627, %v5715
        %v5717 = vpop.f32.mrf.mxu0
        %v5718 = vadd.f32 %v5629, %v5717
        %5719 = vmatmul.bf16.gmra.mxu0 %v4023
        %v5720 = vpop.f32.mrf.mxu0
        %v5721 = vadd.f32 %v5632, %v5720
        %v5722 = vpop.f32.mrf.mxu0
        %v5723 = vadd.f32 %v5634, %v5722
        %5724 = vmatmul.bf16.gmra.mxu0 %v4095
        %v5725 = vpop.f32.mrf.mxu0
        %v5726 = vadd.f32 %v5637, %v5725
        %v5727 = vpop.f32.mrf.mxu0
        %v5728 = vadd.f32 %v5639, %v5727
        %5729 = vmatmul.bf16.gmra.mxu0 %v4167
        %v5730 = vpop.f32.mrf.mxu0
        %v5731 = vadd.f32 %v5642, %v5730
        %v5732 = vpop.f32.mrf.mxu0
        %v5733 = vadd.f32 %v5644, %v5732
        %5734 = vmatmul.bf16.gmra.mxu0 %v4239
        %v5735 = vpop.f32.mrf.mxu0
        %v5736 = vadd.f32 %v5647, %v5735
        %v5737 = vpop.f32.mrf.mxu0
        %v5738 = vadd.f32 %v5649, %v5737
        %5739 = vmatmul.bf16.gmra.mxu0 %v4311
        %v5740 = vpop.f32.mrf.mxu0
        %v5741 = vadd.f32 %v5652, %v5740
        %v5742 = vpop.f32.mrf.mxu0
        %v5743 = vadd.f32 %v5654, %v5742
        %5744 = vmatmul.bf16.gmra.mxu0 %v4383
        %v5745 = vpop.f32.mrf.mxu0
        %v5746 = vadd.f32 %v5657, %v5745
        %v5747 = vpop.f32.mrf.mxu0
        %v5748 = vadd.f32 %v5659, %v5747
        %5749 = vmatmul.bf16.gmra.mxu0 %v4455
        %v5750 = vpop.f32.mrf.mxu0
        %v5751 = vadd.f32 %v5662, %v5750
        %v5752 = vpop.f32.mrf.mxu0
        %v5753 = vadd.f32 %v5664, %v5752
        %5754 = vmatmul.bf16.gmra.mxu0 %v4527
        %v5755 = vpop.f32.mrf.mxu0
        %v5756 = vadd.f32 %v5667, %v5755
        %v5757 = vpop.f32.mrf.mxu0
        %v5758 = vadd.f32 %v5669, %v5757
        %5759 = vmatmul.bf16.gmra.mxu0 %v4599
        %v5760 = vpop.f32.mrf.mxu0
        %v5761 = vadd.f32 %v5672, %v5760
        %v5762 = vpop.f32.mrf.mxu0
        %v5763 = vadd.f32 %v5674, %v5762
        %5764 = vmatmul.bf16.gmra.mxu0 %v4671
        %v5765 = vpop.f32.mrf.mxu0
        %v5766 = vadd.f32 %v5677, %v5765
        %v5767 = vpop.f32.mrf.mxu0
        %v5768 = vadd.f32 %v5679, %v5767
        %5769 = vmatmul.bf16.gmra.mxu0 %v4743
        %v5770 = vpop.f32.mrf.mxu0
        %v5771 = vadd.f32 %v5682, %v5770
        %v5772 = vpop.f32.mrf.mxu0
        %v5773 = vadd.f32 %v5684, %v5772
        %5774 = vmatmul.bf16.gmra.mxu0 %v4815
        %v5775 = vpop.f32.mrf.mxu0
        %v5776 = vadd.f32 %v5687, %v5775
        %v5777 = vpop.f32.mrf.mxu0
        %v5778 = vadd.f32 %v5689, %v5777
        %5779 = vdwg.mxu0
        %5780 = vmatpush.bf16.msra.mxu0 %v5319
        %5781 = vmatpush.bf16.msra.mxu0 %v5318
        %5782 = vmatpush.bf16.msra.mxu0 %v5317
        %5783 = vmatpush.bf16.msra.mxu0 %v5316
        %5784 = vmatpush.bf16.msra.mxu0 %v5315
        %5785 = vmatpush.bf16.msra.mxu0 %v5314
        %5786 = vmatpush.bf16.msra.mxu0 %v5313
        %5787 = vmatpush.bf16.msra.mxu0 %v5312
        %5788 = vmatmul.bf16.gmra.mxu0 %v3702
        %v5789 = vpop.f32.mrf.mxu0
        %v5790 = vadd.f32 %v5701, %v5789
        %v5791 = vpop.f32.mrf.mxu0
        %v5792 = vadd.f32 %v5703, %v5791
        %5793 = vmatmul.bf16.gmra.mxu0 %v3807
        %v5794 = vpop.f32.mrf.mxu0
        %v5795 = vadd.f32 %v5706, %v5794
        %v5796 = vpop.f32.mrf.mxu0
        %v5797 = vadd.f32 %v5708, %v5796
        %5798 = vmatmul.bf16.gmra.mxu0 %v3834
        %v5799 = vpop.f32.mrf.mxu0
        %v5800 = vadd.f32 %v5711, %v5799
        %v5801 = vpop.f32.mrf.mxu0
        %v5802 = vadd.f32 %v5713, %v5801
        %5803 = vmatmul.bf16.gmra.mxu0 %v3906
        %v5804 = vpop.f32.mrf.mxu0
        %v5805 = vadd.f32 %v5716, %v5804
        %v5806 = vpop.f32.mrf.mxu0
        %v5807 = vadd.f32 %v5718, %v5806
        %5808 = vmatmul.bf16.gmra.mxu0 %v3978
        %v5809 = vpop.f32.mrf.mxu0
        %v5810 = vadd.f32 %v5721, %v5809
        %v5811 = vpop.f32.mrf.mxu0
        %v5812 = vadd.f32 %v5723, %v5811
        %5813 = vmatmul.bf16.gmra.mxu0 %v4050
        %v5814 = vpop.f32.mrf.mxu0
        %v5815 = vadd.f32 %v5726, %v5814
        %v5816 = vpop.f32.mrf.mxu0
        %v5817 = vadd.f32 %v5728, %v5816
        %5818 = vmatmul.bf16.gmra.mxu0 %v4122
        %v5819 = vpop.f32.mrf.mxu0
        %v5820 = vadd.f32 %v5731, %v5819
        %v5821 = vpop.f32.mrf.mxu0
        %v5822 = vadd.f32 %v5733, %v5821
        %5823 = vmatmul.bf16.gmra.mxu0 %v4194
        %v5824 = vpop.f32.mrf.mxu0
        %v5825 = vadd.f32 %v5736, %v5824
        %v5826 = vpop.f32.mrf.mxu0
        %v5827 = vadd.f32 %v5738, %v5826
        %5828 = vmatmul.bf16.gmra.mxu0 %v4266
        %v5829 = vpop.f32.mrf.mxu0
        %v5830 = vadd.f32 %v5741, %v5829
        %v5831 = vpop.f32.mrf.mxu0
        %v5832 = vadd.f32 %v5743, %v5831
        %5833 = vmatmul.bf16.gmra.mxu0 %v4338
        %v5834 = vpop.f32.mrf.mxu0
        %v5835 = vadd.f32 %v5746, %v5834
        %v5836 = vpop.f32.mrf.mxu0
        %v5837 = vadd.f32 %v5748, %v5836
        %5838 = vmatmul.bf16.gmra.mxu0 %v4410
        %v5839 = vpop.f32.mrf.mxu0
        %v5840 = vadd.f32 %v5751, %v5839
        %v5841 = vpop.f32.mrf.mxu0
        %v5842 = vadd.f32 %v5753, %v5841
        %5843 = vmatmul.bf16.gmra.mxu0 %v4482
        %v5844 = vpop.f32.mrf.mxu0
        %v5845 = vadd.f32 %v5756, %v5844
        %v5846 = vpop.f32.mrf.mxu0
        %v5847 = vadd.f32 %v5758, %v5846
        %5848 = vmatmul.bf16.gmra.mxu0 %v4554
        %v5849 = vpop.f32.mrf.mxu0
        %v5850 = vadd.f32 %v5761, %v5849
        %v5851 = vpop.f32.mrf.mxu0
        %v5852 = vadd.f32 %v5763, %v5851
        %5853 = vmatmul.bf16.gmra.mxu0 %v4626
        %v5854 = vpop.f32.mrf.mxu0
        %v5855 = vadd.f32 %v5766, %v5854
        %v5856 = vpop.f32.mrf.mxu0
        %v5857 = vadd.f32 %v5768, %v5856
        %5858 = vmatmul.bf16.gmra.mxu0 %v4698
        %v5859 = vpop.f32.mrf.mxu0
        %v5860 = vadd.f32 %v5771, %v5859
        %v5861 = vpop.f32.mrf.mxu0
        %v5862 = vadd.f32 %v5773, %v5861
        %5863 = vmatmul.bf16.gmra.mxu0 %v4824
        %v5864 = vpop.f32.mrf.mxu0
        %v5865 = vadd.f32 %v5776, %v5864
        %v5866 = vpop.f32.mrf.mxu0
        %v5867 = vadd.f32 %v5778, %v5866
        %5868 = vdwg.mxu0
        %5869 = vmatpush.bf16.msra.mxu0 %v5327
        %5870 = vmatpush.bf16.msra.mxu0 %v5326
        %5871 = vmatpush.bf16.msra.mxu0 %v5325
        %5872 = vmatpush.bf16.msra.mxu0 %v5324
        %5873 = vmatpush.bf16.msra.mxu0 %v5323
        %5874 = vmatpush.bf16.msra.mxu0 %v5322
        %5875 = vmatpush.bf16.msra.mxu0 %v5321
        %5876 = vmatpush.bf16.msra.mxu0 %v5320
        %5877 = vmatmul.bf16.gmra.mxu0 %v3719
        %v5878 = vpop.f32.mrf.mxu0
        %v5879 = vadd.f32 %v5790, %v5878
        %v5880 = vpop.f32.mrf.mxu0
        %v5881 = vadd.f32 %v5792, %v5880
        %5882 = vmatmul.bf16.gmra.mxu0 %v3816
        %v5883 = vpop.f32.mrf.mxu0
        %v5884 = vadd.f32 %v5795, %v5883
        %v5885 = vpop.f32.mrf.mxu0
        %v5886 = vadd.f32 %v5797, %v5885
        %5887 = vmatmul.bf16.gmra.mxu0 %v3888
        %v5888 = vpop.f32.mrf.mxu0
        %v5889 = vadd.f32 %v5800, %v5888
        %v5890 = vpop.f32.mrf.mxu0
        %v5891 = vadd.f32 %v5802, %v5890
        %5892 = vmatmul.bf16.gmra.mxu0 %v3960
        %v5893 = vpop.f32.mrf.mxu0
        %v5894 = vadd.f32 %v5805, %v5893
        %v5895 = vpop.f32.mrf.mxu0
        %v5896 = vadd.f32 %v5807, %v5895
        %5897 = vmatmul.bf16.gmra.mxu0 %v4032
        %v5898 = vpop.f32.mrf.mxu0
        %v5899 = vadd.f32 %v5810, %v5898
        %v5900 = vpop.f32.mrf.mxu0
        %v5901 = vadd.f32 %v5812, %v5900
        %5902 = vmatmul.bf16.gmra.mxu0 %v4104
        %v5903 = vpop.f32.mrf.mxu0
        %v5904 = vadd.f32 %v5815, %v5903
        %v5905 = vpop.f32.mrf.mxu0
        %v5906 = vadd.f32 %v5817, %v5905
        %5907 = vmatmul.bf16.gmra.mxu0 %v4176
        %v5908 = vpop.f32.mrf.mxu0
        %v5909 = vadd.f32 %v5820, %v5908
        %v5910 = vpop.f32.mrf.mxu0
        %v5911 = vadd.f32 %v5822, %v5910
        %5912 = vmatmul.bf16.gmra.mxu0 %v4248
        %v5913 = vpop.f32.mrf.mxu0
        %v5914 = vadd.f32 %v5825, %v5913
        %v5915 = vpop.f32.mrf.mxu0
        %v5916 = vadd.f32 %v5827, %v5915
        %5917 = vmatmul.bf16.gmra.mxu0 %v4320
        %v5918 = vpop.f32.mrf.mxu0
        %v5919 = vadd.f32 %v5830, %v5918
        %v5920 = vpop.f32.mrf.mxu0
        %v5921 = vadd.f32 %v5832, %v5920
        %5922 = vmatmul.bf16.gmra.mxu0 %v4392
        %v5923 = vpop.f32.mrf.mxu0
        %v5924 = vadd.f32 %v5835, %v5923
        %v5925 = vpop.f32.mrf.mxu0
        %v5926 = vadd.f32 %v5837, %v5925
        %5927 = vmatmul.bf16.gmra.mxu0 %v4464
        %v5928 = vpop.f32.mrf.mxu0
        %v5929 = vadd.f32 %v5840, %v5928
        %v5930 = vpop.f32.mrf.mxu0
        %v5931 = vadd.f32 %v5842, %v5930
        %5932 = vmatmul.bf16.gmra.mxu0 %v4536
        %v5933 = vpop.f32.mrf.mxu0
        %v5934 = vadd.f32 %v5845, %v5933
        %v5935 = vpop.f32.mrf.mxu0
        %v5936 = vadd.f32 %v5847, %v5935
        %5937 = vmatmul.bf16.gmra.mxu0 %v4608
        %v5938 = vpop.f32.mrf.mxu0
        %v5939 = vadd.f32 %v5850, %v5938
        %v5940 = vpop.f32.mrf.mxu0
        %v5941 = vadd.f32 %v5852, %v5940
        %5942 = vmatmul.bf16.gmra.mxu0 %v4680
        %v5943 = vpop.f32.mrf.mxu0
        %v5944 = vadd.f32 %v5855, %v5943
        %v5945 = vpop.f32.mrf.mxu0
        %v5946 = vadd.f32 %v5857, %v5945
        %5947 = vmatmul.bf16.gmra.mxu0 %v4752
        %v5948 = vpop.f32.mrf.mxu0
        %v5949 = vadd.f32 %v5860, %v5948
        %v5950 = vpop.f32.mrf.mxu0
        %v5951 = vadd.f32 %v5862, %v5950
        %5952 = vmatmul.bf16.gmra.mxu0 %v4833
        %v5953 = vpop.f32.mrf.mxu0
        %v5954 = vadd.f32 %v5865, %v5953
        %v5955 = vpop.f32.mrf.mxu0
        %v5956 = vadd.f32 %v5867, %v5955
        %5957 = vdwg.mxu0
        %5958 = vmatpush.bf16.msra.mxu0 %v5335
        %5959 = vmatpush.bf16.msra.mxu0 %v5334
        %5960 = vmatpush.bf16.msra.mxu0 %v5333
        %5961 = vmatpush.bf16.msra.mxu0 %v5332
        %5962 = vmatpush.bf16.msra.mxu0 %v5331
        %5963 = vmatpush.bf16.msra.mxu0 %v5330
        %5964 = vmatpush.bf16.msra.mxu0 %v5329
        %5965 = vmatpush.bf16.msra.mxu0 %v5328
        %5966 = vmatmul.bf16.gmra.mxu0 %v3736
        %v5967 = vpop.f32.mrf.mxu0
        %v5968 = vadd.f32 %v5879, %v5967
        %v5969 = vpop.f32.mrf.mxu0
        %v5970 = vadd.f32 %v5881, %v5969
        %5971 = vmatmul.bf16.gmra.mxu0 %v3825
        %v5972 = vpop.f32.mrf.mxu0
        %v5973 = vadd.f32 %v5884, %v5972
        %v5974 = vpop.f32.mrf.mxu0
        %v5975 = vadd.f32 %v5886, %v5974
        %5976 = vmatmul.bf16.gmra.mxu0 %v3897
        %v5977 = vpop.f32.mrf.mxu0
        %v5978 = vadd.f32 %v5889, %v5977
        %v5979 = vpop.f32.mrf.mxu0
        %v5980 = vadd.f32 %v5891, %v5979
        %5981 = vmatmul.bf16.gmra.mxu0 %v3969
        %v5982 = vpop.f32.mrf.mxu0
        %v5983 = vadd.f32 %v5894, %v5982
        %v5984 = vpop.f32.mrf.mxu0
        %v5985 = vadd.f32 %v5896, %v5984
        %5986 = vmatmul.bf16.gmra.mxu0 %v4041
        %v5987 = vpop.f32.mrf.mxu0
        %v5988 = vadd.f32 %v5899, %v5987
        %v5989 = vpop.f32.mrf.mxu0
        %v5990 = vadd.f32 %v5901, %v5989
        %5991 = vmatmul.bf16.gmra.mxu0 %v4113
        %v5992 = vpop.f32.mrf.mxu0
        %v5993 = vadd.f32 %v5904, %v5992
        %v5994 = vpop.f32.mrf.mxu0
        %v5995 = vadd.f32 %v5906, %v5994
        %5996 = vmatmul.bf16.gmra.mxu0 %v4185
        %v5997 = vpop.f32.mrf.mxu0
        %v5998 = vadd.f32 %v5909, %v5997
        %v5999 = vpop.f32.mrf.mxu0
        %v6000 = vadd.f32 %v5911, %v5999
        %6001 = vmatmul.bf16.gmra.mxu0 %v4257
        %v6002 = vpop.f32.mrf.mxu0
        %v6003 = vadd.f32 %v5914, %v6002
        %v6004 = vpop.f32.mrf.mxu0
        %v6005 = vadd.f32 %v5916, %v6004
        %6006 = vmatmul.bf16.gmra.mxu0 %v4329
        %v6007 = vpop.f32.mrf.mxu0
        %v6008 = vadd.f32 %v5919, %v6007
        %v6009 = vpop.f32.mrf.mxu0
        %v6010 = vadd.f32 %v5921, %v6009
        %6011 = vmatmul.bf16.gmra.mxu0 %v4401
        %v6012 = vpop.f32.mrf.mxu0
        %v6013 = vadd.f32 %v5924, %v6012
        %v6014 = vpop.f32.mrf.mxu0
        %v6015 = vadd.f32 %v5926, %v6014
        %6016 = vmatmul.bf16.gmra.mxu0 %v4473
        %v6017 = vpop.f32.mrf.mxu0
        %v6018 = vadd.f32 %v5929, %v6017
        %v6019 = vpop.f32.mrf.mxu0
        %v6020 = vadd.f32 %v5931, %v6019
        %6021 = vmatmul.bf16.gmra.mxu0 %v4545
        %v6022 = vpop.f32.mrf.mxu0
        %v6023 = vadd.f32 %v5934, %v6022
        %v6024 = vpop.f32.mrf.mxu0
        %v6025 = vadd.f32 %v5936, %v6024
        %6026 = vmatmul.bf16.gmra.mxu0 %v4617
        %v6027 = vpop.f32.mrf.mxu0
        %v6028 = vadd.f32 %v5939, %v6027
        %v6029 = vpop.f32.mrf.mxu0
        %v6030 = vadd.f32 %v5941, %v6029
        %6031 = vmatmul.bf16.gmra.mxu0 %v4689
        %v6032 = vpop.f32.mrf.mxu0
        %v6033 = vadd.f32 %v5944, %v6032
        %v6034 = vpop.f32.mrf.mxu0
        %v6035 = vadd.f32 %v5946, %v6034
        %6036 = vmatmul.bf16.gmra.mxu0 %v4761
        %v6037 = vpop.f32.mrf.mxu0
        %v6038 = vadd.f32 %v5949, %v6037
        %v6039 = vpop.f32.mrf.mxu0
        %v6040 = vadd.f32 %v5951, %v6039
        %6041 = vmatmul.bf16.gmra.mxu0 %v4842
        %v6042 = vpop.f32.mrf.mxu0
        %v6043 = vadd.f32 %v5954, %v6042
        %v6044 = vpop.f32.mrf.mxu0
        %v6045 = vadd.f32 %v5956, %v6044
        %6046 = vdwg.mxu0
        %6047 = vmatpush.bf16.msra.mxu0 %v5343
        %6048 = vmatpush.bf16.msra.mxu0 %v5342
        %6049 = vmatpush.bf16.msra.mxu0 %v5341
        %6050 = vmatpush.bf16.msra.mxu0 %v5340
        %6051 = vmatpush.bf16.msra.mxu0 %v5339
        %6052 = vmatpush.bf16.msra.mxu0 %v5338
        %6053 = vmatpush.bf16.msra.mxu0 %v5337
        %6054 = vmatpush.bf16.msra.mxu0 %v5336
        %6055 = vmatmul.bf16.gmra.mxu0 %v3753
        %v6056 = vpop.f32.mrf.mxu0
        %v6057 = vadd.f32 %v5968, %v6056
        %v6058 = vpop.f32.mrf.mxu0
        %v6059 = vadd.f32 %v5970, %v6058
        %6060 = vmatmul.bf16.gmra.mxu0 %v3834
        %v6061 = vpop.f32.mrf.mxu0
        %v6062 = vadd.f32 %v5973, %v6061
        %v6063 = vpop.f32.mrf.mxu0
        %v6064 = vadd.f32 %v5975, %v6063
        %6065 = vmatmul.bf16.gmra.mxu0 %v3906
        %v6066 = vpop.f32.mrf.mxu0
        %v6067 = vadd.f32 %v5978, %v6066
        %v6068 = vpop.f32.mrf.mxu0
        %v6069 = vadd.f32 %v5980, %v6068
        %6070 = vmatmul.bf16.gmra.mxu0 %v3978
        %v6071 = vpop.f32.mrf.mxu0
        %v6072 = vadd.f32 %v5983, %v6071
        %v6073 = vpop.f32.mrf.mxu0
        %v6074 = vadd.f32 %v5985, %v6073
        %6075 = vmatmul.bf16.gmra.mxu0 %v4050
        %v6076 = vpop.f32.mrf.mxu0
        %v6077 = vadd.f32 %v5988, %v6076
        %v6078 = vpop.f32.mrf.mxu0
        %v6079 = vadd.f32 %v5990, %v6078
        %6080 = vmatmul.bf16.gmra.mxu0 %v4122
        %v6081 = vpop.f32.mrf.mxu0
        %v6082 = vadd.f32 %v5993, %v6081
        %v6083 = vpop.f32.mrf.mxu0
        %v6084 = vadd.f32 %v5995, %v6083
        %6085 = vmatmul.bf16.gmra.mxu0 %v4194
        %v6086 = vpop.f32.mrf.mxu0
        %v6087 = vadd.f32 %v5998, %v6086
        %v6088 = vpop.f32.mrf.mxu0
        %v6089 = vadd.f32 %v6000, %v6088
        %6090 = vmatmul.bf16.gmra.mxu0 %v4266
        %v6091 = vpop.f32.mrf.mxu0
        %v6092 = vadd.f32 %v6003, %v6091
        %v6093 = vpop.f32.mrf.mxu0
        %v6094 = vadd.f32 %v6005, %v6093
        %6095 = vmatmul.bf16.gmra.mxu0 %v4338
        %v6096 = vpop.f32.mrf.mxu0
        %v6097 = vadd.f32 %v6008, %v6096
        %v6098 = vpop.f32.mrf.mxu0
        %v6099 = vadd.f32 %v6010, %v6098
        %6100 = vmatmul.bf16.gmra.mxu0 %v4410
        %v6101 = vpop.f32.mrf.mxu0
        %v6102 = vadd.f32 %v6013, %v6101
        %v6103 = vpop.f32.mrf.mxu0
        %v6104 = vadd.f32 %v6015, %v6103
        %6105 = vmatmul.bf16.gmra.mxu0 %v4482
        %v6106 = vpop.f32.mrf.mxu0
        %v6107 = vadd.f32 %v6018, %v6106
        %v6108 = vpop.f32.mrf.mxu0
        %v6109 = vadd.f32 %v6020, %v6108
        %6110 = vmatmul.bf16.gmra.mxu0 %v4554
        %v6111 = vpop.f32.mrf.mxu0
        %v6112 = vadd.f32 %v6023, %v6111
        %v6113 = vpop.f32.mrf.mxu0
        %v6114 = vadd.f32 %v6025, %v6113
        %6115 = vmatmul.bf16.gmra.mxu0 %v4626
        %v6116 = vpop.f32.mrf.mxu0
        %v6117 = vadd.f32 %v6028, %v6116
        %v6118 = vpop.f32.mrf.mxu0
        %v6119 = vadd.f32 %v6030, %v6118
        %6120 = vmatmul.bf16.gmra.mxu0 %v4698
        %v6121 = vpop.f32.mrf.mxu0
        %v6122 = vadd.f32 %v6033, %v6121
        %v6123 = vpop.f32.mrf.mxu0
        %v6124 = vadd.f32 %v6035, %v6123
        %6125 = vmatmul.bf16.gmra.mxu0 %v4770
        %v6126 = vpop.f32.mrf.mxu0
        %v6127 = vadd.f32 %v6038, %v6126
        %v6128 = vpop.f32.mrf.mxu0
        %v6129 = vadd.f32 %v6040, %v6128
        %6130 = vmatmul.bf16.gmra.mxu0 %v4851
        %v6131 = vpop.f32.mrf.mxu0
        %v6132 = vadd.f32 %v6043, %v6131
        %v6133 = vpop.f32.mrf.mxu0
        %v6134 = vadd.f32 %v6045, %v6133
        %6135 = vdwg.mxu0
        %6136 = vmatpush.bf16.msra.mxu0 %v5351
        %6137 = vmatpush.bf16.msra.mxu0 %v5350
        %6138 = vmatpush.bf16.msra.mxu0 %v5349
        %6139 = vmatpush.bf16.msra.mxu0 %v5348
        %6140 = vmatpush.bf16.msra.mxu0 %v5347
        %6141 = vmatpush.bf16.msra.mxu0 %v5346
        %6142 = vmatpush.bf16.msra.mxu0 %v5345
        %6143 = vmatpush.bf16.msra.mxu0 %v5344
        %6144 = vmatmul.bf16.gmra.mxu0 %v3770
        %v6145 = vpop.f32.mrf.mxu0
        %v6146 = vadd.f32 %v6057, %v6145
        %v6147 = vpop.f32.mrf.mxu0
        %v6148 = vadd.f32 %v6059, %v6147
        %6149 = vmatmul.bf16.gmra.mxu0 %v3843
        %v6150 = vpop.f32.mrf.mxu0
        %v6151 = vadd.f32 %v6062, %v6150
        %v6152 = vpop.f32.mrf.mxu0
        %v6153 = vadd.f32 %v6064, %v6152
        %6154 = vmatmul.bf16.gmra.mxu0 %v3915
        %v6155 = vpop.f32.mrf.mxu0
        %v6156 = vadd.f32 %v6067, %v6155
        %v6157 = vpop.f32.mrf.mxu0
        %v6158 = vadd.f32 %v6069, %v6157
        %6159 = vmatmul.bf16.gmra.mxu0 %v3987
        %v6160 = vpop.f32.mrf.mxu0
        %v6161 = vadd.f32 %v6072, %v6160
        %v6162 = vpop.f32.mrf.mxu0
        %v6163 = vadd.f32 %v6074, %v6162
        %6164 = vmatmul.bf16.gmra.mxu0 %v4059
        %v6165 = vpop.f32.mrf.mxu0
        %v6166 = vadd.f32 %v6077, %v6165
        %v6167 = vpop.f32.mrf.mxu0
        %v6168 = vadd.f32 %v6079, %v6167
        %6169 = vmatmul.bf16.gmra.mxu0 %v4131
        %v6170 = vpop.f32.mrf.mxu0
        %v6171 = vadd.f32 %v6082, %v6170
        %v6172 = vpop.f32.mrf.mxu0
        %v6173 = vadd.f32 %v6084, %v6172
        %6174 = vmatmul.bf16.gmra.mxu0 %v4203
        %v6175 = vpop.f32.mrf.mxu0
        %v6176 = vadd.f32 %v6087, %v6175
        %v6177 = vpop.f32.mrf.mxu0
        %v6178 = vadd.f32 %v6089, %v6177
        %6179 = vmatmul.bf16.gmra.mxu0 %v4275
        %v6180 = vpop.f32.mrf.mxu0
        %v6181 = vadd.f32 %v6092, %v6180
        %v6182 = vpop.f32.mrf.mxu0
        %v6183 = vadd.f32 %v6094, %v6182
        %6184 = vmatmul.bf16.gmra.mxu0 %v4347
        %v6185 = vpop.f32.mrf.mxu0
        %v6186 = vadd.f32 %v6097, %v6185
        %v6187 = vpop.f32.mrf.mxu0
        %v6188 = vadd.f32 %v6099, %v6187
        %6189 = vmatmul.bf16.gmra.mxu0 %v4419
        %v6190 = vpop.f32.mrf.mxu0
        %v6191 = vadd.f32 %v6102, %v6190
        %v6192 = vpop.f32.mrf.mxu0
        %v6193 = vadd.f32 %v6104, %v6192
        %6194 = vmatmul.bf16.gmra.mxu0 %v4491
        %v6195 = vpop.f32.mrf.mxu0
        %v6196 = vadd.f32 %v6107, %v6195
        %v6197 = vpop.f32.mrf.mxu0
        %v6198 = vadd.f32 %v6109, %v6197
        %6199 = vmatmul.bf16.gmra.mxu0 %v4563
        %v6200 = vpop.f32.mrf.mxu0
        %v6201 = vadd.f32 %v6112, %v6200
        %v6202 = vpop.f32.mrf.mxu0
        %v6203 = vadd.f32 %v6114, %v6202
        %6204 = vmatmul.bf16.gmra.mxu0 %v4635
        %v6205 = vpop.f32.mrf.mxu0
        %v6206 = vadd.f32 %v6117, %v6205
        %v6207 = vpop.f32.mrf.mxu0
        %v6208 = vadd.f32 %v6119, %v6207
        %6209 = vmatmul.bf16.gmra.mxu0 %v4707
        %v6210 = vpop.f32.mrf.mxu0
        %v6211 = vadd.f32 %v6122, %v6210
        %v6212 = vpop.f32.mrf.mxu0
        %v6213 = vadd.f32 %v6124, %v6212
        %6214 = vmatmul.bf16.gmra.mxu0 %v4779
        %v6215 = vpop.f32.mrf.mxu0
        %v6216 = vadd.f32 %v6127, %v6215
        %v6217 = vpop.f32.mrf.mxu0
        %v6218 = vadd.f32 %v6129, %v6217
        %6219 = vmatmul.bf16.gmra.mxu0 %v4860
        %v6220 = vpop.f32.mrf.mxu0
        %v6221 = vadd.f32 %v6132, %v6220
        %v6222 = vpop.f32.mrf.mxu0
        %v6223 = vadd.f32 %v6134, %v6222
        %6224 = vdwg.mxu0
        %v6225 = vmax.f32 %v6146, 0.0
        %v6226 = vmax.f32 %v6148, 0.0
        %v6227 = vmax.f32 %v6151, 0.0
        %v6228 = vmax.f32 %v6153, 0.0
        %v6229 = vmax.f32 %v6156, 0.0
        %v6230 = vmax.f32 %v6158, 0.0
        %v6231 = vmax.f32 %v6161, 0.0
        %v6232 = vmax.f32 %v6163, 0.0
        %v6233 = vmax.f32 %v6166, 0.0
        %v6234 = vmax.f32 %v6168, 0.0
        %v6235 = vmax.f32 %v6171, 0.0
        %v6236 = vmax.f32 %v6173, 0.0
        %v6237 = vmax.f32 %v6176, 0.0
        %v6238 = vmax.f32 %v6178, 0.0
        %v6239 = vmax.f32 %v6181, 0.0
        %v6240 = vmax.f32 %v6183, 0.0
        %v6241 = vmax.f32 %v6186, 0.0
        %v6242 = vmax.f32 %v6188, 0.0
        %v6243 = vmax.f32 %v6191, 0.0
        %v6244 = vmax.f32 %v6193, 0.0
        %v6245 = vmax.f32 %v6196, 0.0
        %v6246 = vmax.f32 %v6198, 0.0
        %v6247 = vmax.f32 %v6201, 0.0
        %v6248 = vmax.f32 %v6203, 0.0
        %v6249 = vmax.f32 %v6206, 0.0
        %v6250 = vmax.f32 %v6208, 0.0
        %v6251 = vmax.f32 %v6211, 0.0
        %v6252 = vmax.f32 %v6213, 0.0
        %v6253 = vmax.f32 %v6216, 0.0
        %v6254 = vmax.f32 %v6218, 0.0
        %v6255 = vmax.f32 %v6221, 0.0
        %v6256 = vmax.f32 %v6223, 0.0
        %v6257 = vpack.c.bf16 %v6226, %v6225
        %v6258 = vpack.c.bf16 %v6228, %v6227
        %v6259 = vpack.c.bf16 %v6230, %v6229
        %v6260 = vpack.c.bf16 %v6232, %v6231
        %v6261 = vpack.c.bf16 %v6234, %v6233
        %v6262 = vpack.c.bf16 %v6236, %v6235
        %v6263 = vpack.c.bf16 %v6238, %v6237
        %v6264 = vpack.c.bf16 %v6240, %v6239
        %v6265 = vpack.c.bf16 %v6242, %v6241
        %v6266 = vpack.c.bf16 %v6244, %v6243
        %v6267 = vpack.c.bf16 %v6246, %v6245
        %v6268 = vpack.c.bf16 %v6248, %v6247
        %v6269 = vpack.c.bf16 %v6250, %v6249
        %v6270 = vpack.c.bf16 %v6252, %v6251
        %v6271 = vpack.c.bf16 %v6254, %v6253
        %v6272 = vpack.c.bf16 %v6256, %v6255
        %v6273 = vld [vmem:[%s5] sm:$0xf]
        %v6274 = vld [vmem:[%s5 + $0x4] sm:$0xf]
        %v6275 = vld [vmem:[%s5 + $0x8] sm:$0xf]
        %v6276 = vld [vmem:[%s5 + $0xc] sm:$0xf]
        %v6277 = vld [vmem:[%s5 + $0x10] sm:$0xf]
        %v6278 = vld [vmem:[%s5 + $0x14] sm:$0xf]
        %v6279 = vld [vmem:[%s5 + $0x18] sm:$0xf]
        %v6280 = vld [vmem:[%s5 + $0x1c] sm:$0xf]
        %v6281 = vld [vmem:[%s5 + $0x20] sm:$0xf]
        %v6282 = vld [vmem:[%s5 + $0x24] sm:$0xf]
        %v6283 = vld [vmem:[%s5 + $0x28] sm:$0xf]
        %v6284 = vld [vmem:[%s5 + $0x2c] sm:$0xf]
        %v6285 = vld [vmem:[%s5 + $0x30] sm:$0xf]
        %v6286 = vld [vmem:[%s5 + $0x34] sm:$0xf]
        %v6287 = vld [vmem:[%s5 + $0x38] sm:$0xf]
        %v6288 = vld [vmem:[%s5 + $0x3c] sm:$0xf]
        %v6289 = vld [vmem:[%s6] sm:$0x1]
        %v6291 = vperm.slane %v6289, 0
        %v6309 = vunpack.c.l.b16 %v6273
        %v6310 = vunpack.c.l.b16 %v6274
        %v6311 = vunpack.c.l.b16 %v6275
        %v6312 = vunpack.c.l.b16 %v6276
        %v6313 = vunpack.c.l.b16 %v6277
        %v6314 = vunpack.c.l.b16 %v6278
        %v6315 = vunpack.c.l.b16 %v6279
        %v6316 = vunpack.c.l.b16 %v6280
        %v6317 = vunpack.c.l.b16 %v6281
        %v6318 = vunpack.c.l.b16 %v6282
        %v6319 = vunpack.c.l.b16 %v6283
        %v6320 = vunpack.c.l.b16 %v6284
        %v6321 = vunpack.c.l.b16 %v6285
        %v6322 = vunpack.c.l.b16 %v6286
        %v6323 = vunpack.c.l.b16 %v6287
        %v6324 = vunpack.c.l.b16 %v6288
        %v6325 = vpack.c.b16 %v6310, %v6309
        %v6326 = vpack.c.b16 %v6312, %v6311
        %v6327 = vpack.c.b16 %v6314, %v6313
        %v6328 = vpack.c.b16 %v6316, %v6315
        %v6329 = vpack.c.b16 %v6318, %v6317
        %v6330 = vpack.c.b16 %v6320, %v6319
        %v6331 = vpack.c.b16 %v6322, %v6321
        %v6332 = vpack.c.b16 %v6324, %v6323
        %6341 = vmatpush.bf16.msra.mxu0 %v6332
        %6342 = vmatpush.bf16.msra.mxu0 %v6331
        %6343 = vmatpush.bf16.msra.mxu0 %v6330
        %6344 = vmatpush.bf16.msra.mxu0 %v6329
        %6345 = vmatpush.bf16.msra.mxu0 %v6328
        %6346 = vmatpush.bf16.msra.mxu0 %v6327
        %6347 = vmatpush.bf16.msra.mxu0 %v6326
        %6348 = vmatpush.bf16.msra.mxu0 %v6325
        %6349 = vmatmul.bf16.gmra.mxu0 %v6257
        %v6350 = vpop.f32.mrf.mxu0
        %v6351 = vadd.f32 %v6291, %v6350
        %v6352 = vpop.f32.mrf.mxu0
        %v6353 = vadd.f32 %v6291, %v6352
        %6354 = vmatmul.bf16.gmra.mxu0 %v6258
        %v6355 = vpop.f32.mrf.mxu0
        %v6356 = vadd.f32 %v6291, %v6355
        %v6357 = vpop.f32.mrf.mxu0
        %v6358 = vadd.f32 %v6291, %v6357
        %6359 = vmatmul.bf16.gmra.mxu0 %v6259
        %v6360 = vpop.f32.mrf.mxu0
        %v6361 = vadd.f32 %v6291, %v6360
        %v6362 = vpop.f32.mrf.mxu0
        %v6363 = vadd.f32 %v6291, %v6362
        %6364 = vmatmul.bf16.gmra.mxu0 %v6260
        %v6365 = vpop.f32.mrf.mxu0
        %v6366 = vadd.f32 %v6291, %v6365
        %v6367 = vpop.f32.mrf.mxu0
        %v6368 = vadd.f32 %v6291, %v6367
        %6369 = vmatmul.bf16.gmra.mxu0 %v6261
        %v6370 = vpop.f32.mrf.mxu0
        %v6371 = vadd.f32 %v6291, %v6370
        %v6372 = vpop.f32.mrf.mxu0
        %v6373 = vadd.f32 %v6291, %v6372
        %6374 = vmatmul.bf16.gmra.mxu0 %v6262
        %v6375 = vpop.f32.mrf.mxu0
        %v6376 = vadd.f32 %v6291, %v6375
        %v6377 = vpop.f32.mrf.mxu0
        %v6378 = vadd.f32 %v6291, %v6377
        %6379 = vmatmul.bf16.gmra.mxu0 %v6263
        %v6380 = vpop.f32.mrf.mxu0
        %v6381 = vadd.f32 %v6291, %v6380
        %v6382 = vpop.f32.mrf.mxu0
        %v6383 = vadd.f32 %v6291, %v6382
        %6384 = vmatmul.bf16.gmra.mxu0 %v6264
        %v6385 = vpop.f32.mrf.mxu0
        %v6386 = vadd.f32 %v6291, %v6385
        %v6387 = vpop.f32.mrf.mxu0
        %v6388 = vadd.f32 %v6291, %v6387
        %6389 = vmatmul.bf16.gmra.mxu0 %v6265
        %v6390 = vpop.f32.mrf.mxu0
        %v6391 = vadd.f32 %v6291, %v6390
        %v6392 = vpop.f32.mrf.mxu0
        %v6393 = vadd.f32 %v6291, %v6392
        %6394 = vmatmul.bf16.gmra.mxu0 %v6266
        %v6395 = vpop.f32.mrf.mxu0
        %v6396 = vadd.f32 %v6291, %v6395
        %v6397 = vpop.f32.mrf.mxu0
        %v6398 = vadd.f32 %v6291, %v6397
        %6399 = vmatmul.bf16.gmra.mxu0 %v6267
        %v6400 = vpop.f32.mrf.mxu0
        %v6401 = vadd.f32 %v6291, %v6400
        %v6402 = vpop.f32.mrf.mxu0
        %v6403 = vadd.f32 %v6291, %v6402
        %6404 = vmatmul.bf16.gmra.mxu0 %v6268
        %v6405 = vpop.f32.mrf.mxu0
        %v6406 = vadd.f32 %v6291, %v6405
        %v6407 = vpop.f32.mrf.mxu0
        %v6408 = vadd.f32 %v6291, %v6407
        %6409 = vmatmul.bf16.gmra.mxu0 %v6269
        %v6410 = vpop.f32.mrf.mxu0
        %v6411 = vadd.f32 %v6291, %v6410
        %v6412 = vpop.f32.mrf.mxu0
        %v6413 = vadd.f32 %v6291, %v6412
        %6414 = vmatmul.bf16.gmra.mxu0 %v6270
        %v6415 = vpop.f32.mrf.mxu0
        %v6416 = vadd.f32 %v6291, %v6415
        %v6417 = vpop.f32.mrf.mxu0
        %v6418 = vadd.f32 %v6291, %v6417
        %6419 = vmatmul.bf16.gmra.mxu0 %v6271
        %v6420 = vpop.f32.mrf.mxu0
        %v6421 = vadd.f32 %v6291, %v6420
        %v6422 = vpop.f32.mrf.mxu0
        %v6423 = vadd.f32 %v6291, %v6422
        %6424 = vmatmul.bf16.gmra.mxu0 %v6272
        %v6425 = vpop.f32.mrf.mxu0
        %v6426 = vadd.f32 %v6291, %v6425
        %v6427 = vpop.f32.mrf.mxu0
        %v6428 = vadd.f32 %v6291, %v6427
        %6429 = vdwg.mxu0
        %v6430 = vmax.f32 %v6351, 0.0
        %v6431 = vmax.f32 %v6353, 0.0
        %v6432 = vmax.f32 %v6356, 0.0
        %v6433 = vmax.f32 %v6358, 0.0
        %v6434 = vmax.f32 %v6361, 0.0
        %v6435 = vmax.f32 %v6363, 0.0
        %v6436 = vmax.f32 %v6366, 0.0
        %v6437 = vmax.f32 %v6368, 0.0
        %v6438 = vmax.f32 %v6371, 0.0
        %v6439 = vmax.f32 %v6373, 0.0
        %v6440 = vmax.f32 %v6376, 0.0
        %v6441 = vmax.f32 %v6378, 0.0
        %v6442 = vmax.f32 %v6381, 0.0
        %v6443 = vmax.f32 %v6383, 0.0
        %v6444 = vmax.f32 %v6386, 0.0
        %v6445 = vmax.f32 %v6388, 0.0
        %v6446 = vmax.f32 %v6391, 0.0
        %v6447 = vmax.f32 %v6393, 0.0
        %v6448 = vmax.f32 %v6396, 0.0
        %v6449 = vmax.f32 %v6398, 0.0
        %v6450 = vmax.f32 %v6401, 0.0
        %v6451 = vmax.f32 %v6403, 0.0
        %v6452 = vmax.f32 %v6406, 0.0
        %v6453 = vmax.f32 %v6408, 0.0
        %v6454 = vmax.f32 %v6411, 0.0
        %v6455 = vmax.f32 %v6413, 0.0
        %v6456 = vmax.f32 %v6416, 0.0
        %v6457 = vmax.f32 %v6418, 0.0
        %v6458 = vmax.f32 %v6421, 0.0
        %v6459 = vmax.f32 %v6423, 0.0
        %v6460 = vmax.f32 %v6426, 0.0
        %v6461 = vmax.f32 %v6428, 0.0
        %v6462 = vadd.f32 %v6430, %v598
        %v6463 = vadd.f32 %v6431, %v600
        %v6464 = vadd.f32 %v6432, %v603
        %v6465 = vadd.f32 %v6433, %v605
        %v6466 = vadd.f32 %v6434, %v608
        %v6467 = vadd.f32 %v6435, %v610
        %v6468 = vadd.f32 %v6436, %v613
        %v6469 = vadd.f32 %v6437, %v615
        %v6470 = vadd.f32 %v6438, %v618
        %v6471 = vadd.f32 %v6439, %v620
        %v6472 = vadd.f32 %v6440, %v623
        %v6473 = vadd.f32 %v6441, %v625
        %v6474 = vadd.f32 %v6442, %v628
        %v6475 = vadd.f32 %v6443, %v630
        %v6476 = vadd.f32 %v6444, %v633
        %v6477 = vadd.f32 %v6445, %v635
        %v6478 = vadd.f32 %v6446, %v638
        %v6479 = vadd.f32 %v6447, %v640
        %v6480 = vadd.f32 %v6448, %v643
        %v6481 = vadd.f32 %v6449, %v645
        %v6482 = vadd.f32 %v6450, %v648
        %v6483 = vadd.f32 %v6451, %v650
        %v6484 = vadd.f32 %v6452, %v653
        %v6485 = vadd.f32 %v6453, %v655
        %v6486 = vadd.f32 %v6454, %v658
        %v6487 = vadd.f32 %v6455, %v660
        %v6488 = vadd.f32 %v6456, %v663
        %v6489 = vadd.f32 %v6457, %v665
        %v6490 = vadd.f32 %v6458, %v668
        %v6491 = vadd.f32 %v6459, %v670
        %v6492 = vadd.f32 %v6460, %v673
        %v6493 = vadd.f32 %v6461, %v675
        %v6494 = vmax.f32 %v6462, 0.0
        %v6495 = vmax.f32 %v6463, 0.0
        %v6496 = vmax.f32 %v6464, 0.0
        %v6497 = vmax.f32 %v6465, 0.0
        %v6498 = vmax.f32 %v6466, 0.0
        %v6499 = vmax.f32 %v6467, 0.0
        %v6500 = vmax.f32 %v6468, 0.0
        %v6501 = vmax.f32 %v6469, 0.0
        %v6502 = vmax.f32 %v6470, 0.0
        %v6503 = vmax.f32 %v6471, 0.0
        %v6504 = vmax.f32 %v6472, 0.0
        %v6505 = vmax.f32 %v6473, 0.0
        %v6506 = vmax.f32 %v6474, 0.0
        %v6507 = vmax.f32 %v6475, 0.0
        %v6508 = vmax.f32 %v6476, 0.0
        %v6509 = vmax.f32 %v6477, 0.0
        %v6510 = vmax.f32 %v6478, 0.0
        %v6511 = vmax.f32 %v6479, 0.0
        %v6512 = vmax.f32 %v6480, 0.0
        %v6513 = vmax.f32 %v6481, 0.0
        %v6514 = vmax.f32 %v6482, 0.0
        %v6515 = vmax.f32 %v6483, 0.0
        %v6516 = vmax.f32 %v6484, 0.0
        %v6517 = vmax.f32 %v6485, 0.0
        %v6518 = vmax.f32 %v6486, 0.0
        %v6519 = vmax.f32 %v6487, 0.0
        %v6520 = vmax.f32 %v6488, 0.0
        %v6521 = vmax.f32 %v6489, 0.0
        %v6522 = vmax.f32 %v6490, 0.0
        %v6523 = vmax.f32 %v6491, 0.0
        %v6524 = vmax.f32 %v6492, 0.0
        %v6525 = vmax.f32 %v6493, 0.0
        %v6526 = vpack.c.bf16 %v6494, %v6494
        %v6527 = vpack.c.bf16 %v6495, %v6495
        %v6528 = vpack.c.bf16 %v6496, %v6496
        %v6529 = vpack.c.bf16 %v6497, %v6497
        %v6530 = vpack.c.bf16 %v6498, %v6498
        %v6531 = vpack.c.bf16 %v6499, %v6499
        %v6532 = vpack.c.bf16 %v6500, %v6500
        %v6533 = vpack.c.bf16 %v6501, %v6501
        %v6534 = vpack.c.bf16 %v6502, %v6502
        %v6535 = vpack.c.bf16 %v6503, %v6503
        %v6536 = vpack.c.bf16 %v6504, %v6504
        %v6537 = vpack.c.bf16 %v6505, %v6505
        %v6538 = vpack.c.bf16 %v6506, %v6506
        %v6539 = vpack.c.bf16 %v6507, %v6507
        %v6540 = vpack.c.bf16 %v6508, %v6508
        %v6541 = vpack.c.bf16 %v6509, %v6509
        %v6542 = vpack.c.bf16 %v6510, %v6510
        %v6543 = vpack.c.bf16 %v6511, %v6511
        %v6544 = vpack.c.bf16 %v6512, %v6512
        %v6545 = vpack.c.bf16 %v6513, %v6513
        %v6546 = vpack.c.bf16 %v6514, %v6514
        %v6547 = vpack.c.bf16 %v6515, %v6515
        %v6548 = vpack.c.bf16 %v6516, %v6516
        %v6549 = vpack.c.bf16 %v6517, %v6517
        %v6550 = vpack.c.bf16 %v6518, %v6518
        %v6551 = vpack.c.bf16 %v6519, %v6519
        %v6552 = vpack.c.bf16 %v6520, %v6520
        %v6553 = vpack.c.bf16 %v6521, %v6521
        %v6554 = vpack.c.bf16 %v6522, %v6522
        %v6555 = vpack.c.bf16 %v6523, %v6523
        %v6556 = vpack.c.bf16 %v6524, %v6524
        %v6557 = vpack.c.bf16 %v6525, %v6525
        %6558 = vst [vmem:[%s315] sm:$0xf] %v6526
        %6559 = vst [vmem:[%s315 + $0x4] sm:$0xf] %v6527
        %6560 = vst [vmem:[%s315 + $0x8] sm:$0xf] %v6528
        %6561 = vst [vmem:[%s315 + $0xc] sm:$0xf] %v6529
        %6562 = vst [vmem:[%s315 + $0x10] sm:$0xf] %v6530
        %6563 = vst [vmem:[%s315 + $0x14] sm:$0xf] %v6531
        %6564 = vst [vmem:[%s315 + $0x18] sm:$0xf] %v6532
        %6565 = vst [vmem:[%s315 + $0x1c] sm:$0xf] %v6533
        %6566 = vst [vmem:[%s315 + $0x20] sm:$0xf] %v6534
        %6567 = vst [vmem:[%s315 + $0x24] sm:$0xf] %v6535
        %6568 = vst [vmem:[%s315 + $0x28] sm:$0xf] %v6536
        %6569 = vst [vmem:[%s315 + $0x2c] sm:$0xf] %v6537
        %6570 = vst [vmem:[%s315 + $0x30] sm:$0xf] %v6538
        %6571 = vst [vmem:[%s315 + $0x34] sm:$0xf] %v6539
        %6572 = vst [vmem:[%s315 + $0x38] sm:$0xf] %v6540
        %6573 = vst [vmem:[%s315 + $0x3c] sm:$0xf] %v6541
        %6574 = vst [vmem:[%s315 + $0x40] sm:$0xf] %v6542
        %6575 = vst [vmem:[%s315 + $0x44] sm:$0xf] %v6543
        %6576 = vst [vmem:[%s315 + $0x48] sm:$0xf] %v6544
        %6577 = vst [vmem:[%s315 + $0x4c] sm:$0xf] %v6545
        %6578 = vst [vmem:[%s315 + $0x50] sm:$0xf] %v6546
        %6579 = vst [vmem:[%s315 + $0x54] sm:$0xf] %v6547
        %6580 = vst [vmem:[%s315 + $0x58] sm:$0xf] %v6548
        %6581 = vst [vmem:[%s315 + $0x5c] sm:$0xf] %v6549
        %6582 = vst [vmem:[%s315 + $0x60] sm:$0xf] %v6550
        %6583 = vst [vmem:[%s315 + $0x64] sm:$0xf] %v6551
        %6584 = vst [vmem:[%s315 + $0x68] sm:$0xf] %v6552
        %6585 = vst [vmem:[%s315 + $0x6c] sm:$0xf] %v6553
        %6586 = vst [vmem:[%s315 + $0x70] sm:$0xf] %v6554
        %6587 = vst [vmem:[%s315 + $0x74] sm:$0xf] %v6555
        %6588 = vst [vmem:[%s315 + $0x78] sm:$0xf] %v6556
        %6589 = vst [vmem:[%s315 + $0x7c] sm:$0xf] %v6557
        %s6590 = sand.u32 %s204, 1
        %s6591 = scalar_lea.sflag [#allocation5], %s6590
        %s6592 = sand.u32 %s204, 1
        %s6593 = smul.addr %s6592, 128
        %s6594 = scalar_lea.vmem [#allocation6], %s6593
        // Predicated region
        $region57: #{tpu_custom_call.1} parent=51 // pred_check
          %p6595 = pneg %p214
        $region58: #{tpu_custom_call.1} parent=51 // pred_check_branch
          %6597 = sbr.rel (%p6595) target = $region60
        $region59: #{tpu_custom_call.1} parent=51 // pred_region
          %6599 = vsyncadd %s6591, 0
          %s6600 = smul.addr %s23, 32
          %s6601 = smul.addr %s6600, 4
          %s6602 = scalar_lea.hbm %s8, %s6601
          %s6603 = sshll.u32 %s6594, 4
          %s6604 = int_to_ptr.vmem [resolvable:$true] %s6603
          %s6605 = sshll.u32 %s6602, 4
          %s6606 = int_to_ptr.hbm [resolvable:$true] %s6605
          %6611 = dma.vmem_to_hbm [thread:$0]  %s6604, 2048, %s6606, %s6591, 64, 64, 4
        $region60: #{tpu_custom_call.1} parent=51 // pred_fallthru
          _
      $region52: #{tpu_custom_call.1} parent=5 // pred_fallthru
        _
      %p6612 = scmp.le.s32.totalorder 2, %s18
      // Predicated region
      $region61: #{tpu_custom_call.1} parent=5 // pred_check
        %p6613 = pneg %p6612
      $region62: #{tpu_custom_call.1} parent=5 // pred_check_branch
        %6615 = sbr.rel (%p6613) target = $region64
      $region63: #{tpu_custom_call.1} parent=5 // pred_region
        %s6616 = ssub.s32 %s18, 2
        // Predicated region
        $region65: #{tpu_custom_call.1} parent=63 // pred_check
          %p6617 = pneg %p220
        $region66: #{tpu_custom_call.1} parent=63 // pred_check_branch
          %6619 = sbr.rel (%p6617) target = $region68
        $region67: #{tpu_custom_call.1} parent=63 // pred_region
          %s6620 = sand.u32 %s205, 1
          %s6621 = scalar_lea.sflag [#allocation5], %s6620
          %s6622 = sand.u32 %s205, 1
          %s6623 = smul.addr %s6622, 128
          %s6624 = scalar_lea.vmem [#allocation6], %s6623
          %6626 = dma.done %s6621, 2048
        $region68: #{tpu_custom_call.1} parent=63 // pred_fallthru
          _
      $region64: #{tpu_custom_call.1} parent=5 // pred_fallthru
        _
    $region6: #{tpu_custom_call.1} parent=1 // loop_footer
      %s22 = sadd.s32 1, %s18
    $region7: #{tpu_custom_call.1} parent=1 // loop_footer_branch
      %17 = sbr.rel target = $region3
    $region8: #{tpu_custom_call.1} parent=1 // loop_exit
      _
    %6627 = vsyncpa [#allocation4], 1
    %s6628 = scalar_lea.sflag [#allocation4], 1
    %6629 = vsyncpa %s6628, 1
    %6630 = vsyncpa [#allocation5], 1
    %s6631 = scalar_lea.sflag [#allocation5], 1
    %6632 = vsyncpa %s6631, 1

</llo_original>
